<compile_context>
chip_gen: v7x
topology: tpu7x:2x2x1
jax: 0.10.0
libtpu: 0.0.40
codegen_flags: <defaults>
</compile_context>

<pallas_src>
from functools import partial

import jax
import jax.numpy as jnp
from jax.experimental import pallas as pl
from jax.experimental.pallas import tpu as pltpu


def _decoder_kernel(emb_ref, enc_ref, h0_ref,
                    aw1e_ref, ab1_ref, aw2_ref,
                    hw_ref, wihx_ref, wihc_ref, bi_ref, bh_ref,
                    wout_ref, bout_ref,
                    logp_ref,
                    hs_ref, gix_ref):
    T, Bb, W = emb_ref.shape
    enc = enc_ref[...]                                   # (Bb, S, H)  mxu dtype
    _, S, H = enc.shape
    mxu_dtype = enc.dtype

    # ---------------- Hoisted (computed once per grid step) ----------------
    # Encoder half of Attention.linear1.
    enc_proj = jnp.dot(enc.reshape(Bb * S, H), aw1e_ref[...],
                       preferred_element_type=jnp.float32).reshape(Bb, S, H)
    enc_proj = enc_proj + ab1_ref[...]                   # (Bb, S, H) f32

    # Word-input part of the GRU gates for ALL T steps in one batched matmul.
    gi_x = jnp.dot(emb_ref[...].reshape(T * Bb, W), wihx_ref[...],
                   preferred_element_type=jnp.float32).reshape(T, Bb, 3 * H)
    gix_ref[...] = gi_x + bi_ref[...]                    # (T, Bb, 3H) f32, + b_ih

    hw = hw_ref[...]                                     # (H, 4H)  [aw1_h | W_hh(r,z,n)]
    wihc = wihc_ref[...]                                 # (H, 3H)  GRU W_ih (context part)

    # Loop-invariant broadcasts, hoisted (unroll would re-emit them per step).
    b_h = jnp.broadcast_to(bh_ref[...], (Bb, 3 * H))     # (Bb, 3H) f32
    aw2_b = jnp.broadcast_to(aw2_ref[...], (Bb, S, H))   # (Bb, S, H) f32

    # Context contraction: MXU batched matvec only pays off at production S/H.
    use_mxu_context = (S >= 128) or (H >= 256)
    if not use_mxu_context:
        enc_f32 = enc.astype(jnp.float32)                # hoisted cast for VALU path

    def step(t, h):                                      # h: (Bb, H) f32 recurrent state
        # Fused hidden-state matmul: attention h-projection + GRU W_hh gates.
        hp = jnp.dot(h.astype(mxu_dtype), hw,
                     preferred_element_type=jnp.float32)               # (Bb, 4H)
        h_proj = hp[:, :H]                                             # (Bb, H)
        gh = hp[:, H:] + b_h                                           # (Bb, 3H)

        # ---------------- Attention ----------------
        o = jnp.tanh(enc_proj + h_proj[:, None, :])                    # (Bb, S, H)
        e = jnp.sum(o * aw2_b, axis=2)                                 # (Bb, S)  linear2
        e = e - jnp.max(e, axis=1, keepdims=True)
        p = jnp.exp(e)
        inv = pl.reciprocal(jnp.sum(p, axis=1, keepdims=True),
                            approx=True)                               # (Bb, 1)  EUP
        if use_mxu_context:
            ctx_un = jax.lax.dot_general(
                p[:, None, :].astype(mxu_dtype), enc,
                dimension_numbers=(((2,), (1,)), ((0,), (0,))),
                preferred_element_type=jnp.float32)[:, 0, :]           # (Bb, H)
        else:
            ctx_un = jnp.sum(p[:, :, None] * enc_f32, axis=1)          # (Bb, H) VALU+XLU
        context = ctx_un * inv                                         # normalized context

        # ---------------- GRU cell (PyTorch gate order r, z, n) ----------------
        gi = gix_ref[t] + jnp.dot(context.astype(mxu_dtype), wihc,
                                  preferred_element_type=jnp.float32)  # (Bb, 3H)
        r = jax.nn.sigmoid(gi[:, :H] + gh[:, :H])
        z = jax.nn.sigmoid(gi[:, H:2 * H] + gh[:, H:2 * H])
        n = jnp.tanh(gi[:, 2 * H:] + r * gh[:, 2 * H:])
        h_new = (1.0 - z) * n + z * h                                  # (Bb, H) f32

        hs_ref[t] = h_new                                              # stash for batched proj
        return h_new

    # Fully unrolled at small T; switch to partial unroll for large max_length.
    unroll = True if T <= 16 else 4
    jax.lax.fori_loop(0, T, step, h0_ref[...].astype(jnp.float32), unroll=unroll)

    # ------- Batched output projection + log_softmax over ALL T steps -------
    Vp = logp_ref.shape[2]
    hs = hs_ref[...].reshape(T * Bb, H).astype(mxu_dtype)
    logits = jnp.dot(hs, wout_ref[...],
                     preferred_element_type=jnp.float32) + bout_ref[...]   # (T*Bb, Vp)
    m = jnp.max(logits, axis=1, keepdims=True)
    lse = jnp.log(jnp.sum(jnp.exp(logits - m), axis=1, keepdims=True)) + m
    logp_ref[...] = (logits - lse).reshape(T, Bb, Vp).astype(logp_ref.dtype)


def init_params(key, vocab_size, dim_hidden, dim_word):
    """Deterministic synthetic parameters matching DecoderRNN.__init__ shapes."""
    H, W, V = dim_hidden, dim_word, vocab_size
    keys = jax.random.split(key, 12)
    s = 0.1
    return dict(
        emb=jax.random.normal(keys[0], (V, W), jnp.float32) * s,        # nn.Embedding(V, W)
        aw1_e=jax.random.normal(keys[1], (H, H), jnp.float32) * s,      # Attention.linear1 (enc half)
        aw1_h=jax.random.normal(keys[2], (H, H), jnp.float32) * s,      # Attention.linear1 (hidden half)
        ab1=jax.random.normal(keys[3], (1, H), jnp.float32) * s,        # Attention.linear1 bias
        aw2=jax.random.normal(keys[4], (1, H), jnp.float32) * s,        # Attention.linear2 (H -> 1, no bias)
        wih_w=jax.random.normal(keys[5], (3, W, H), jnp.float32) * s,   # GRU W_ih, word-input part (r,z,n)
        wih_c=jax.random.normal(keys[6], (3, H, H), jnp.float32) * s,   # GRU W_ih, context-input part (r,z,n)
        b_ih=jax.random.normal(keys[7], (3, 1, H), jnp.float32) * s,    # GRU b_ih
        w_hh=jax.random.normal(keys[8], (3, H, H), jnp.float32) * s,    # GRU W_hh (r,z,n)
        b_hh=jax.random.normal(keys[9], (3, 1, H), jnp.float32) * s,    # GRU b_hh
        w_out=jax.random.normal(keys[10], (H, V), jnp.float32) * s,     # nn.Linear(H, V) weight
        b_out=jax.random.normal(keys[11], (1, V), jnp.float32) * s,     # nn.Linear(H, V) bias
    )


def _round_up(x, m):
    return (x + m - 1) // m * m


@partial(jax.jit, static_argnames=("max_length", "mxu_dtype"))
def decoder_rnn_train_forward(encoder_outputs, encoder_hidden, targets, params,
                              max_length, mxu_dtype=jnp.bfloat16):
    """Train-mode forward: returns seq_logprobs of shape (B, max_length-1, vocab_size)."""
    assert encoder_hidden.shape[0] == 1, "kernel assumes n_layers=1 (unidirectional GRU)"
    B, S, H = encoder_outputs.shape
    V, W = params['emb'].shape
    T = max_length - 1
    Bp = _round_up(B, 8)          # sublane-dense batch
    Vp = _round_up(V, 128)        # lane-dense vocab

    # Batch-block grid: 2-way split (one block per v7x TensorCore) when the
    # padded batch allows 8-row-aligned halves; otherwise a single program.
    block_b = Bp // 2 if Bp % 16 == 0 else Bp
    n_b = Bp // block_b

    # Embedding lookup (plain-JAX glue), time-major for the in-kernel loop.
    targets_emb = jnp.take(params['emb'], targets[:, :T], axis=0)          # (B, T, W)
    emb_t = jnp.transpose(targets_emb, (1, 0, 2))                          # (T, B, W)
    emb_t = jnp.pad(emb_t, ((0, 0), (0, Bp - B), (0, 0))).astype(mxu_dtype)

    enc_pad = jnp.pad(encoder_outputs, ((0, Bp - B), (0, 0), (0, 0))).astype(mxu_dtype)
    h0_pad = jnp.pad(encoder_hidden[0], ((0, Bp - B), (0, 0))).astype(jnp.float32)

    # ---- fuse GRU gate weights / biases (r, z, n order preserved) ----
    wihx = jnp.concatenate([params['wih_w'][g] for g in range(3)], axis=1).astype(mxu_dtype)  # (W, 3H)
    wihc = jnp.concatenate([params['wih_c'][g] for g in range(3)], axis=1).astype(mxu_dtype)  # (H, 3H)
    whh = jnp.concatenate([params['w_hh'][g] for g in range(3)], axis=1)                      # (H, 3H)
    b_i = jnp.concatenate([params['b_ih'][g] for g in range(3)], axis=1).astype(jnp.float32)  # (1, 3H)
    b_h = jnp.concatenate([params['b_hh'][g] for g in range(3)], axis=1).astype(jnp.float32)  # (1, 3H)
    # Shared-LHS fusion: [attention hidden-projection | GRU W_hh] -> one (H, 4H) matmul per step.
    hw = jnp.concatenate([params['aw1_h'], whh], axis=1).astype(mxu_dtype)                    # (H, 4H)

    # ---- pad output projection for lane density; mask pad columns via -1e30 bias ----
    w_out = jnp.pad(params['w_out'], ((0, 0), (0, Vp - V))).astype(mxu_dtype)                  # (H, Vp)
    b_out = jnp.pad(params['b_out'], ((0, 0), (0, Vp - V)),
                    constant_values=-1e30).astype(jnp.float32)                                 # (1, Vp)

    aw1e = params['aw1_e'].astype(mxu_dtype)
    ab1 = params['ab1'].astype(jnp.float32)
    aw2 = params['aw2'].astype(jnp.float32)

    full2d = lambda b: (0, 0)   # whole-array weight blocks, loaded once per grid step
    grid_spec = pltpu.PrefetchScalarGridSpec(
        num_scalar_prefetch=0,
        grid=(n_b,),
        in_specs=[
            pl.BlockSpec((T, block_b, W), lambda b: (0, b, 0)),   # emb_t
            pl.BlockSpec((block_b, S, H), lambda b: (b, 0, 0)),   # enc
            pl.BlockSpec((block_b, H), lambda b: (b, 0)),         # h0
            pl.BlockSpec((H, H), full2d),                         # aw1e
            pl.BlockSpec((1, H), full2d),                         # ab1
            pl.BlockSpec((1, H), full2d),                         # aw2
            pl.BlockSpec((H, 4 * H), full2d),                     # hw = [aw1_h | whh]
            pl.BlockSpec((W, 3 * H), full2d),                     # wihx
            pl.BlockSpec((H, 3 * H), full2d),                     # wihc
            pl.BlockSpec((1, 3 * H), full2d),                     # b_ih
            pl.BlockSpec((1, 3 * H), full2d),                     # b_hh
            pl.BlockSpec((H, Vp), full2d),                        # w_out
            pl.BlockSpec((1, Vp), full2d),                        # b_out
        ],
        out_specs=pl.BlockSpec((T, block_b, Vp), lambda b: (0, b, 0)),
        scratch_shapes=[
            pltpu.VMEM((T, block_b, H), jnp.float32),             # per-step hidden states
            pltpu.VMEM((T, block_b, 3 * H), jnp.float32),         # precomputed word-input gates
        ],
    )

    out = pl.pallas_call(
        _decoder_kernel,
        out_shape=jax.ShapeDtypeStruct((T, Bp, Vp), jnp.float32),
        grid_spec=grid_spec,
        compiler_params=pltpu.CompilerParams(
            dimension_semantics=("parallel",)),
    )(emb_t, enc_pad, h0_pad,
      aw1e, ab1, aw2,
      hw, wihx, wihc, b_i, b_h,
      w_out, b_out)

    # Strip padding, back to batch-major (B, T, V).  Fused under jit.
    return jnp.transpose(out[:, :B, :V], (1, 0, 2))


if __name__ == "__main__":
    # Small shapes consistent with the module's forward.
    vocab_size, max_len, dim_hidden, dim_word = 64, 8, 32, 32
    B, S = 2, 8   # batch, encoder sequence length

    key = jax.random.PRNGKey(0)
    kp, ke, kh, kt = jax.random.split(key, 4)

    params = init_params(kp, vocab_size, dim_hidden, dim_word)
    encoder_outputs = jax.random.normal(ke, (B, S, dim_hidden), jnp.float32)
    encoder_hidden = jax.random.normal(kh, (1, B, dim_hidden), jnp.float32)   # (n_layers, B, H)
    targets = jax.random.randint(kt, (B, max_len), 0, vocab_size, dtype=jnp.int32)

    seq_logprobs = decoder_rnn_train_forward(
        encoder_outputs, encoder_hidden, targets, params, max_len)
    jax.block_until_ready(seq_logprobs)

    assert seq_logprobs.shape == (B, max_len - 1, vocab_size)
    assert bool(jnp.all(jnp.isfinite(seq_logprobs)))
    # log_softmax sanity: probabilities over the real vocab sum to 1.
    prob_sums = jnp.sum(jnp.exp(seq_logprobs), axis=-1)
    assert bool(jnp.all(jnp.abs(prob_sums - 1.0) < 5e-3))
    print("KERNEL_OK")
</pallas_src>

<mosaic_0001>
module attributes {stable_mosaic.version = 11 : i64} {
  func.func @_decoder_kernel(%arg0: i32, %arg1: memref<7x8x32xbf16, #tpu.memory_space<vmem>>, %arg2: memref<8x8x32xbf16, #tpu.memory_space<vmem>>, %arg3: memref<8x32xf32, #tpu.memory_space<vmem>>, %arg4: memref<32x32xbf16, #tpu.memory_space<vmem>>, %arg5: memref<1x32xf32, #tpu.memory_space<vmem>>, %arg6: memref<1x32xf32, #tpu.memory_space<vmem>>, %arg7: memref<32x128xbf16, #tpu.memory_space<vmem>>, %arg8: memref<32x96xbf16, #tpu.memory_space<vmem>>, %arg9: memref<32x96xbf16, #tpu.memory_space<vmem>>, %arg10: memref<1x96xf32, #tpu.memory_space<vmem>>, %arg11: memref<1x96xf32, #tpu.memory_space<vmem>>, %arg12: memref<32x128xbf16, #tpu.memory_space<vmem>>, %arg13: memref<1x128xf32, #tpu.memory_space<vmem>>, %arg14: memref<7x8x128xf32, #tpu.memory_space<vmem>>, %arg15: memref<7x8x32xf32, #tpu.memory_space<vmem>>, %arg16: memref<7x8x96xf32, #tpu.memory_space<vmem>>) attributes {dimension_semantics = [#tpu.dimension_semantics<parallel>], iteration_bounds = array<i64: 1>, scalar_prefetch = 0 : i64, scratch_operands = 2 : i64, tpu.core_type = #tpu.core_type<tc>, window_params = [{transform_indices = @transform_0, window_bounds = array<i64: 7, 8, 32>}, {transform_indices = @transform_1, window_bounds = array<i64: 8, 8, 32>}, {transform_indices = @transform_2, window_bounds = array<i64: 8, 32>}, {pipeline_mode = #tpu.pipeline_mode<synchronous>, transform_indices = @transform_3, window_bounds = array<i64: 32, 32>}, {pipeline_mode = #tpu.pipeline_mode<synchronous>, transform_indices = @transform_4, window_bounds = array<i64: 1, 32>}, {pipeline_mode = #tpu.pipeline_mode<synchronous>, transform_indices = @transform_5, window_bounds = array<i64: 1, 32>}, {pipeline_mode = #tpu.pipeline_mode<synchronous>, transform_indices = @transform_6, window_bounds = array<i64: 32, 128>}, {pipeline_mode = #tpu.pipeline_mode<synchronous>, transform_indices = @transform_7, window_bounds = array<i64: 32, 96>}, {pipeline_mode = #tpu.pipeline_mode<synchronous>, transform_indices = @transform_8, window_bounds = array<i64: 32, 96>}, {pipeline_mode = #tpu.pipeline_mode<synchronous>, transform_indices = @transform_9, window_bounds = array<i64: 1, 96>}, {pipeline_mode = #tpu.pipeline_mode<synchronous>, transform_indices = @transform_10, window_bounds = array<i64: 1, 96>}, {pipeline_mode = #tpu.pipeline_mode<synchronous>, transform_indices = @transform_11, window_bounds = array<i64: 32, 128>}, {pipeline_mode = #tpu.pipeline_mode<synchronous>, transform_indices = @transform_12, window_bounds = array<i64: 1, 128>}, {transform_indices = @transform_13, window_bounds = array<i64: 7, 8, 128>}]} {
    %c0 = arith.constant 0 : index
    %c0_0 = arith.constant 0 : index
    %c0_1 = arith.constant 0 : index
    %0 = vector.load %arg2[%c0, %c0_0, %c0_1] : memref<8x8x32xbf16, #tpu.memory_space<vmem>>, vector<8x8x32xbf16>
    %1 = vector.shape_cast %0 : vector<8x8x32xbf16> to vector<64x32xbf16>
    %c0_2 = arith.constant 0 : index
    %c0_3 = arith.constant 0 : index
    %2 = vector.load %arg4[%c0_2, %c0_3] : memref<32x32xbf16, #tpu.memory_space<vmem>>, vector<32x32xbf16>
    %cst = arith.constant dense<0.000000e+00> : vector<64x32xf32>
    %3 = tpu.matmul %1, %2, %cst {dimension_numbers = #tpu.dot_dimension_numbers<[1], [0], [0], [1], [0, 0, 1, 1], [], []>} : vector<64x32xbf16>, vector<32x32xbf16>, vector<64x32xf32> -> vector<64x32xf32>
    %4 = vector.shape_cast %3 : vector<64x32xf32> to vector<8x8x32xf32>
    %c0_4 = arith.constant 0 : index
    %c0_5 = arith.constant 0 : index
    %5 = vector.load %arg5[%c0_4, %c0_5] : memref<1x32xf32, #tpu.memory_space<vmem>>, vector<1x32xf32>
    %6 = vector.shape_cast %5 : vector<1x32xf32> to vector<1x1x32xf32>
    %7 = vector.broadcast %6 : vector<1x1x32xf32> to vector<8x8x32xf32>
    %8 = arith.addf %4, %7 : vector<8x8x32xf32>
    %c0_6 = arith.constant 0 : index
    %c0_7 = arith.constant 0 : index
    %c0_8 = arith.constant 0 : index
    %9 = vector.load %arg1[%c0_6, %c0_7, %c0_8] : memref<7x8x32xbf16, #tpu.memory_space<vmem>>, vector<7x8x32xbf16>
    %10 = vector.shape_cast %9 : vector<7x8x32xbf16> to vector<56x32xbf16>
    %c0_9 = arith.constant 0 : index
    %c0_10 = arith.constant 0 : index
    %11 = vector.load %arg8[%c0_9, %c0_10] : memref<32x96xbf16, #tpu.memory_space<vmem>>, vector<32x96xbf16>
    %cst_11 = arith.constant dense<0.000000e+00> : vector<56x96xf32>
    %12 = tpu.matmul %10, %11, %cst_11 {dimension_numbers = #tpu.dot_dimension_numbers<[1], [0], [0], [1], [0, 0, 1, 1], [], []>} : vector<56x32xbf16>, vector<32x96xbf16>, vector<56x96xf32> -> vector<56x96xf32>
    %13 = vector.shape_cast %12 : vector<56x96xf32> to vector<7x8x96xf32>
    %c0_12 = arith.constant 0 : index
    %c0_13 = arith.constant 0 : index
    %14 = vector.load %arg10[%c0_12, %c0_13] : memref<1x96xf32, #tpu.memory_space<vmem>>, vector<1x96xf32>
    %15 = vector.shape_cast %14 : vector<1x96xf32> to vector<1x1x96xf32>
    %16 = vector.broadcast %15 : vector<1x1x96xf32> to vector<7x8x96xf32>
    %17 = arith.addf %13, %16 : vector<7x8x96xf32>
    %c0_14 = arith.constant 0 : index
    %c0_15 = arith.constant 0 : index
    %c0_16 = arith.constant 0 : index
    %18 = vector.load %arg16[%c0_14, %c0_15, %c0_16] : memref<7x8x96xf32, #tpu.memory_space<vmem>>, vector<7x8x96xf32>
    tpu.vector_store %arg16[%c0_14, %c0_15, %c0_16], %17 {strides = array<i32>} : memref<7x8x96xf32, #tpu.memory_space<vmem>>, vector<7x8x96xf32>,
    %c0_17 = arith.constant 0 : index
    %c0_18 = arith.constant 0 : index
    %19 = vector.load %arg7[%c0_17, %c0_18] : memref<32x128xbf16, #tpu.memory_space<vmem>>, vector<32x128xbf16>
    %c0_19 = arith.constant 0 : index
    %c0_20 = arith.constant 0 : index
    %20 = vector.load %arg9[%c0_19, %c0_20] : memref<32x96xbf16, #tpu.memory_space<vmem>>, vector<32x96xbf16>
    %c0_21 = arith.constant 0 : index
    %c0_22 = arith.constant 0 : index
    %21 = vector.load %arg11[%c0_21, %c0_22] : memref<1x96xf32, #tpu.memory_space<vmem>>, vector<1x96xf32>
    %22 = vector.shape_cast %21 : vector<1x96xf32> to vector<1x96xf32>
    %23 = vector.broadcast %22 : vector<1x96xf32> to vector<8x96xf32>
    %c0_23 = arith.constant 0 : index
    %c0_24 = arith.constant 0 : index
    %24 = vector.load %arg6[%c0_23, %c0_24] : memref<1x32xf32, #tpu.memory_space<vmem>>, vector<1x32xf32>
    %25 = vector.shape_cast %24 : vector<1x32xf32> to vector<1x1x32xf32>
    %26 = vector.broadcast %25 : vector<1x1x32xf32> to vector<8x8x32xf32>
    %27 = arith.extf %0 : vector<8x8x32xbf16> to vector<8x8x32xf32>
    %c0_25 = arith.constant 0 : index
    %c0_26 = arith.constant 0 : index
    %28 = vector.load %arg3[%c0_25, %c0_26] : memref<8x32xf32, #tpu.memory_space<vmem>>, vector<8x32xf32>
    %c0_i32 = arith.constant 0 : i32
    %29 = arith.truncf %28 : vector<8x32xf32> to vector<8x32xbf16>
    %cst_27 = arith.constant dense<0.000000e+00> : vector<8x128xf32>
    %30 = tpu.matmul %29, %19, %cst_27 {dimension_numbers = #tpu.dot_dimension_numbers<[1], [0], [0], [1], [0, 0, 1, 1], [], []>} : vector<8x32xbf16>, vector<32x128xbf16>, vector<8x128xf32> -> vector<8x128xf32>
    %31 = vector.extract_strided_slice %30 {offsets = [0, 0], sizes = [8, 32], strides = [1, 1]} : vector<8x128xf32> to vector<8x32xf32>
    %32 = vector.extract_strided_slice %30 {offsets = [0, 32], sizes = [8, 96], strides = [1, 1]} : vector<8x128xf32> to vector<8x96xf32>
    %33 = arith.addf %32, %23 : vector<8x96xf32>
    %34 = vector.shape_cast %31 : vector<8x32xf32> to vector<8x1x32xf32>
    %35 = vector.broadcast %34 : vector<8x1x32xf32> to vector<8x8x32xf32>
    %36 = arith.addf %8, %35 : vector<8x8x32xf32>
    %37 = math.tanh %36 : vector<8x8x32xf32>
    %38 = arith.mulf %37, %26 : vector<8x8x32xf32>
    %cst_28 = arith.constant dense<0.000000e+00> : vector<8x8xf32>
    %39 = vector.multi_reduction <add>, %38, %cst_28 [2] : vector<8x8x32xf32> to vector<8x8xf32>
    %cst_29 = arith.constant dense<0xFF800000> : vector<8xf32>
    %40 = vector.multi_reduction <maximumf>, %39, %cst_29 [1] : vector<8x8xf32> to vector<8xf32>
    %41 = vector.shape_cast %40 : vector<8xf32> to vector<8x1xf32>
    %42 = vector.broadcast %41 : vector<8x1xf32> to vector<8x8xf32>
    %43 = arith.subf %39, %42 : vector<8x8xf32>
    %44 = math.exp %43 : vector<8x8xf32>
    %cst_30 = arith.constant dense<0.000000e+00> : vector<8xf32>
    %45 = vector.multi_reduction <add>, %44, %cst_30 [1] : vector<8x8xf32> to vector<8xf32>
    %46 = vector.shape_cast %45 : vector<8xf32> to vector<8x1xf32>
    %47 = tpu.reciprocal %46 {approx = true} : vector<8x1xf32> -> vector<8x1xf32>
    %48 = vector.shape_cast %44 : vector<8x8xf32> to vector<8x8x1xf32>
    %49 = vector.broadcast %48 : vector<8x8x1xf32> to vector<8x8x32xf32>
    %50 = arith.mulf %49, %27 : vector<8x8x32xf32>
    %cst_31 = arith.constant dense<0.000000e+00> : vector<8x32xf32>
    %51 = vector.multi_reduction <add>, %50, %cst_31 [1] : vector<8x8x32xf32> to vector<8x32xf32>
    %52 = vector.broadcast %47 : vector<8x1xf32> to vector<8x32xf32>
    %53 = arith.mulf %51, %52 : vector<8x32xf32>
    %54 = arith.index_cast %c0_i32 : i32 to index
    %c0_32 = arith.constant 0 : index
    %c0_33 = arith.constant 0 : index
    %55 = vector.load %arg16[%54, %c0_32, %c0_33] : memref<7x8x96xf32, #tpu.memory_space<vmem>>, vector<1x8x96xf32>
    %56 = vector.shape_cast %55 : vector<1x8x96xf32> to vector<8x96xf32>
    %57 = arith.truncf %53 : vector<8x32xf32> to vector<8x32xbf16>
    %cst_34 = arith.constant dense<0.000000e+00> : vector<8x96xf32>
    %58 = tpu.matmul %57, %20, %cst_34 {dimension_numbers = #tpu.dot_dimension_numbers<[1], [0], [0], [1], [0, 0, 1, 1], [], []>} : vector<8x32xbf16>, vector<32x96xbf16>, vector<8x96xf32> -> vector<8x96xf32>
    %59 = arith.addf %56, %58 : vector<8x96xf32>
    %60 = vector.extract_strided_slice %59 {offsets = [0, 0], sizes = [8, 32], strides = [1, 1]} : vector<8x96xf32> to vector<8x32xf32>
    %61 = vector.extract_strided_slice %33 {offsets = [0, 0], sizes = [8, 32], strides = [1, 1]} : vector<8x96xf32> to vector<8x32xf32>
    %62 = arith.addf %60, %61 : vector<8x32xf32>
    %63 = arith.negf %62 : vector<8x32xf32>
    %64 = math.exp %63 : vector<8x32xf32>
    %cst_35 = arith.constant 1.000000e+00 : f32
    %65 = vector.broadcast %cst_35 : f32 to vector<8x32xf32>
    %66 = arith.addf %65, %64 : vector<8x32xf32>
    %67 = arith.divf %65, %66 : vector<8x32xf32>
    %68 = vector.extract_strided_slice %59 {offsets = [0, 32], sizes = [8, 32], strides = [1, 1]} : vector<8x96xf32> to vector<8x32xf32>
    %69 = vector.extract_strided_slice %33 {offsets = [0, 32], sizes = [8, 32], strides = [1, 1]} : vector<8x96xf32> to vector<8x32xf32>
    %70 = arith.addf %68, %69 : vector<8x32xf32>
    %71 = arith.negf %70 : vector<8x32xf32>
    %72 = math.exp %71 : vector<8x32xf32>
    %cst_36 = arith.constant 1.000000e+00 : f32
    %73 = vector.broadcast %cst_36 : f32 to vector<8x32xf32>
    %74 = arith.addf %73, %72 : vector<8x32xf32>
    %75 = arith.divf %73, %74 : vector<8x32xf32>
    %76 = vector.extract_strided_slice %59 {offsets = [0, 64], sizes = [8, 32], strides = [1, 1]} : vector<8x96xf32> to vector<8x32xf32>
    %77 = vector.extract_strided_slice %33 {offsets = [0, 64], sizes = [8, 32], strides = [1, 1]} : vector<8x96xf32> to vector<8x32xf32>
    %78 = arith.mulf %67, %77 : vector<8x32xf32>
    %79 = arith.addf %76, %78 : vector<8x32xf32>
    %80 = math.tanh %79 : vector<8x32xf32>
    %cst_37 = arith.constant 1.000000e+00 : f32
    %81 = vector.broadcast %cst_37 : f32 to vector<8x32xf32>
    %82 = arith.subf %81, %75 : vector<8x32xf32>
    %83 = arith.mulf %82, %80 : vector<8x32xf32>
    %84 = arith.mulf %75, %28 : vector<8x32xf32>
    %85 = arith.addf %83, %84 : vector<8x32xf32>
    %86 = arith.index_cast %c0_i32 : i32 to index
    %c0_38 = arith.constant 0 : index
    %c0_39 = arith.constant 0 : index
    %87 = vector.load %arg15[%86, %c0_38, %c0_39] : memref<7x8x32xf32, #tpu.memory_space<vmem>>, vector<1x8x32xf32>
    %88 = vector.shape_cast %87 : vector<1x8x32xf32> to vector<8x32xf32>
    %89 = vector.shape_cast %85 : vector<8x32xf32> to vector<1x8x32xf32>
    tpu.vector_store %arg15[%86, %c0_38, %c0_39], %89 {strides = array<i32>} : memref<7x8x32xf32, #tpu.memory_space<vmem>>, vector<1x8x32xf32>,
    %c1_i32 = arith.constant 1 : i32
    %90 = arith.truncf %85 : vector<8x32xf32> to vector<8x32xbf16>
    %cst_40 = arith.constant dense<0.000000e+00> : vector<8x128xf32>
    %91 = tpu.matmul %90, %19, %cst_40 {dimension_numbers = #tpu.dot_dimension_numbers<[1], [0], [0], [1], [0, 0, 1, 1], [], []>} : vector<8x32xbf16>, vector<32x128xbf16>, vector<8x128xf32> -> vector<8x128xf32>
    %92 = vector.extract_strided_slice %91 {offsets = [0, 0], sizes = [8, 32], strides = [1, 1]} : vector<8x128xf32> to vector<8x32xf32>
    %93 = vector.extract_strided_slice %91 {offsets = [0, 32], sizes = [8, 96], strides = [1, 1]} : vector<8x128xf32> to vector<8x96xf32>
    %94 = arith.addf %93, %23 : vector<8x96xf32>
    %95 = vector.shape_cast %92 : vector<8x32xf32> to vector<8x1x32xf32>
    %96 = vector.broadcast %95 : vector<8x1x32xf32> to vector<8x8x32xf32>
    %97 = arith.addf %8, %96 : vector<8x8x32xf32>
    %98 = math.tanh %97 : vector<8x8x32xf32>
    %99 = arith.mulf %98, %26 : vector<8x8x32xf32>
    %cst_41 = arith.constant dense<0.000000e+00> : vector<8x8xf32>
    %100 = vector.multi_reduction <add>, %99, %cst_41 [2] : vector<8x8x32xf32> to vector<8x8xf32>
    %cst_42 = arith.constant dense<0xFF800000> : vector<8xf32>
    %101 = vector.multi_reduction <maximumf>, %100, %cst_42 [1] : vector<8x8xf32> to vector<8xf32>
    %102 = vector.shape_cast %101 : vector<8xf32> to vector<8x1xf32>
    %103 = vector.broadcast %102 : vector<8x1xf32> to vector<8x8xf32>
    %104 = arith.subf %100, %103 : vector<8x8xf32>
    %105 = math.exp %104 : vector<8x8xf32>
    %cst_43 = arith.constant dense<0.000000e+00> : vector<8xf32>
    %106 = vector.multi_reduction <add>, %105, %cst_43 [1] : vector<8x8xf32> to vector<8xf32>
    %107 = vector.shape_cast %106 : vector<8xf32> to vector<8x1xf32>
    %108 = tpu.reciprocal %107 {approx = true} : vector<8x1xf32> -> vector<8x1xf32>
    %109 = vector.shape_cast %105 : vector<8x8xf32> to vector<8x8x1xf32>
    %110 = vector.broadcast %109 : vector<8x8x1xf32> to vector<8x8x32xf32>
    %111 = arith.mulf %110, %27 : vector<8x8x32xf32>
    %cst_44 = arith.constant dense<0.000000e+00> : vector<8x32xf32>
    %112 = vector.multi_reduction <add>, %111, %cst_44 [1] : vector<8x8x32xf32> to vector<8x32xf32>
    %113 = vector.broadcast %108 : vector<8x1xf32> to vector<8x32xf32>
    %114 = arith.mulf %112, %113 : vector<8x32xf32>
    %115 = arith.index_cast %c1_i32 : i32 to index
    %c0_45 = arith.constant 0 : index
    %c0_46 = arith.constant 0 : index
    %116 = vector.load %arg16[%115, %c0_45, %c0_46] : memref<7x8x96xf32, #tpu.memory_space<vmem>>, vector<1x8x96xf32>
    %117 = vector.shape_cast %116 : vector<1x8x96xf32> to vector<8x96xf32>
    %118 = arith.truncf %114 : vector<8x32xf32> to vector<8x32xbf16>
    %cst_47 = arith.constant dense<0.000000e+00> : vector<8x96xf32>
    %119 = tpu.matmul %118, %20, %cst_47 {dimension_numbers = #tpu.dot_dimension_numbers<[1], [0], [0], [1], [0, 0, 1, 1], [], []>} : vector<8x32xbf16>, vector<32x96xbf16>, vector<8x96xf32> -> vector<8x96xf32>
    %120 = arith.addf %117, %119 : vector<8x96xf32>
    %121 = vector.extract_strided_slice %120 {offsets = [0, 0], sizes = [8, 32], strides = [1, 1]} : vector<8x96xf32> to vector<8x32xf32>
    %122 = vector.extract_strided_slice %94 {offsets = [0, 0], sizes = [8, 32], strides = [1, 1]} : vector<8x96xf32> to vector<8x32xf32>
    %123 = arith.addf %121, %122 : vector<8x32xf32>
    %124 = arith.negf %123 : vector<8x32xf32>
    %125 = math.exp %124 : vector<8x32xf32>
    %cst_48 = arith.constant 1.000000e+00 : f32
    %126 = vector.broadcast %cst_48 : f32 to vector<8x32xf32>
    %127 = arith.addf %126, %125 : vector<8x32xf32>
    %128 = arith.divf %126, %127 : vector<8x32xf32>
    %129 = vector.extract_strided_slice %120 {offsets = [0, 32], sizes = [8, 32], strides = [1, 1]} : vector<8x96xf32> to vector<8x32xf32>
    %130 = vector.extract_strided_slice %94 {offsets = [0, 32], sizes = [8, 32], strides = [1, 1]} : vector<8x96xf32> to vector<8x32xf32>
    %131 = arith.addf %129, %130 : vector<8x32xf32>
    %132 = arith.negf %131 : vector<8x32xf32>
    %133 = math.exp %132 : vector<8x32xf32>
    %cst_49 = arith.constant 1.000000e+00 : f32
    %134 = vector.broadcast %cst_49 : f32 to vector<8x32xf32>
    %135 = arith.addf %134, %133 : vector<8x32xf32>
    %136 = arith.divf %134, %135 : vector<8x32xf32>
    %137 = vector.extract_strided_slice %120 {offsets = [0, 64], sizes = [8, 32], strides = [1, 1]} : vector<8x96xf32> to vector<8x32xf32>
    %138 = vector.extract_strided_slice %94 {offsets = [0, 64], sizes = [8, 32], strides = [1, 1]} : vector<8x96xf32> to vector<8x32xf32>
    %139 = arith.mulf %128, %138 : vector<8x32xf32>
    %140 = arith.addf %137, %139 : vector<8x32xf32>
    %141 = math.tanh %140 : vector<8x32xf32>
    %cst_50 = arith.constant 1.000000e+00 : f32
    %142 = vector.broadcast %cst_50 : f32 to vector<8x32xf32>
    %143 = arith.subf %142, %136 : vector<8x32xf32>
    %144 = arith.mulf %143, %141 : vector<8x32xf32>
    %145 = arith.mulf %136, %85 : vector<8x32xf32>
    %146 = arith.addf %144, %145 : vector<8x32xf32>
    %147 = arith.index_cast %c1_i32 : i32 to index
    %c0_51 = arith.constant 0 : index
    %c0_52 = arith.constant 0 : index
    %148 = vector.load %arg15[%147, %c0_51, %c0_52] : memref<7x8x32xf32, #tpu.memory_space<vmem>>, vector<1x8x32xf32>
    %149 = vector.shape_cast %148 : vector<1x8x32xf32> to vector<8x32xf32>
    %150 = vector.shape_cast %146 : vector<8x32xf32> to vector<1x8x32xf32>
    tpu.vector_store %arg15[%147, %c0_51, %c0_52], %150 {strides = array<i32>} : memref<7x8x32xf32, #tpu.memory_space<vmem>>, vector<1x8x32xf32>,
    %c2_i32 = arith.constant 2 : i32
    %151 = arith.truncf %146 : vector<8x32xf32> to vector<8x32xbf16>
    %cst_53 = arith.constant dense<0.000000e+00> : vector<8x128xf32>
    %152 = tpu.matmul %151, %19, %cst_53 {dimension_numbers = #tpu.dot_dimension_numbers<[1], [0], [0], [1], [0, 0, 1, 1], [], []>} : vector<8x32xbf16>, vector<32x128xbf16>, vector<8x128xf32> -> vector<8x128xf32>
    %153 = vector.extract_strided_slice %152 {offsets = [0, 0], sizes = [8, 32], strides = [1, 1]} : vector<8x128xf32> to vector<8x32xf32>
    %154 = vector.extract_strided_slice %152 {offsets = [0, 32], sizes = [8, 96], strides = [1, 1]} : vector<8x128xf32> to vector<8x96xf32>
    %155 = arith.addf %154, %23 : vector<8x96xf32>
    %156 = vector.shape_cast %153 : vector<8x32xf32> to vector<8x1x32xf32>
    %157 = vector.broadcast %156 : vector<8x1x32xf32> to vector<8x8x32xf32>
    %158 = arith.addf %8, %157 : vector<8x8x32xf32>
    %159 = math.tanh %158 : vector<8x8x32xf32>
    %160 = arith.mulf %159, %26 : vector<8x8x32xf32>
    %cst_54 = arith.constant dense<0.000000e+00> : vector<8x8xf32>
    %161 = vector.multi_reduction <add>, %160, %cst_54 [2] : vector<8x8x32xf32> to vector<8x8xf32>
    %cst_55 = arith.constant dense<0xFF800000> : vector<8xf32>
    %162 = vector.multi_reduction <maximumf>, %161, %cst_55 [1] : vector<8x8xf32> to vector<8xf32>
    %163 = vector.shape_cast %162 : vector<8xf32> to vector<8x1xf32>
    %164 = vector.broadcast %163 : vector<8x1xf32> to vector<8x8xf32>
    %165 = arith.subf %161, %164 : vector<8x8xf32>
    %166 = math.exp %165 : vector<8x8xf32>
    %cst_56 = arith.constant dense<0.000000e+00> : vector<8xf32>
    %167 = vector.multi_reduction <add>, %166, %cst_56 [1] : vector<8x8xf32> to vector<8xf32>
    %168 = vector.shape_cast %167 : vector<8xf32> to vector<8x1xf32>
    %169 = tpu.reciprocal %168 {approx = true} : vector<8x1xf32> -> vector<8x1xf32>
    %170 = vector.shape_cast %166 : vector<8x8xf32> to vector<8x8x1xf32>
    %171 = vector.broadcast %170 : vector<8x8x1xf32> to vector<8x8x32xf32>
    %172 = arith.mulf %171, %27 : vector<8x8x32xf32>
    %cst_57 = arith.constant dense<0.000000e+00> : vector<8x32xf32>
    %173 = vector.multi_reduction <add>, %172, %cst_57 [1] : vector<8x8x32xf32> to vector<8x32xf32>
    %174 = vector.broadcast %169 : vector<8x1xf32> to vector<8x32xf32>
    %175 = arith.mulf %173, %174 : vector<8x32xf32>
    %176 = arith.index_cast %c2_i32 : i32 to index
    %c0_58 = arith.constant 0 : index
    %c0_59 = arith.constant 0 : index
    %177 = vector.load %arg16[%176, %c0_58, %c0_59] : memref<7x8x96xf32, #tpu.memory_space<vmem>>, vector<1x8x96xf32>
    %178 = vector.shape_cast %177 : vector<1x8x96xf32> to vector<8x96xf32>
    %179 = arith.truncf %175 : vector<8x32xf32> to vector<8x32xbf16>
    %cst_60 = arith.constant dense<0.000000e+00> : vector<8x96xf32>
    %180 = tpu.matmul %179, %20, %cst_60 {dimension_numbers = #tpu.dot_dimension_numbers<[1], [0], [0], [1], [0, 0, 1, 1], [], []>} : vector<8x32xbf16>, vector<32x96xbf16>, vector<8x96xf32> -> vector<8x96xf32>
    %181 = arith.addf %178, %180 : vector<8x96xf32>
    %182 = vector.extract_strided_slice %181 {offsets = [0, 0], sizes = [8, 32], strides = [1, 1]} : vector<8x96xf32> to vector<8x32xf32>
    %183 = vector.extract_strided_slice %155 {offsets = [0, 0], sizes = [8, 32], strides = [1, 1]} : vector<8x96xf32> to vector<8x32xf32>
    %184 = arith.addf %182, %183 : vector<8x32xf32>
    %185 = arith.negf %184 : vector<8x32xf32>
    %186 = math.exp %185 : vector<8x32xf32>
    %cst_61 = arith.constant 1.000000e+00 : f32
    %187 = vector.broadcast %cst_61 : f32 to vector<8x32xf32>
    %188 = arith.addf %187, %186 : vector<8x32xf32>
    %189 = arith.divf %187, %188 : vector<8x32xf32>
    %190 = vector.extract_strided_slice %181 {offsets = [0, 32], sizes = [8, 32], strides = [1, 1]} : vector<8x96xf32> to vector<8x32xf32>
    %191 = vector.extract_strided_slice %155 {offsets = [0, 32], sizes = [8, 32], strides = [1, 1]} : vector<8x96xf32> to vector<8x32xf32>
    %192 = arith.addf %190, %191 : vector<8x32xf32>
    %193 = arith.negf %192 : vector<8x32xf32>
    %194 = math.exp %193 : vector<8x32xf32>
    %cst_62 = arith.constant 1.000000e+00 : f32
    %195 = vector.broadcast %cst_62 : f32 to vector<8x32xf32>
    %196 = arith.addf %195, %194 : vector<8x32xf32>
    %197 = arith.divf %195, %196 : vector<8x32xf32>
    %198 = vector.extract_strided_slice %181 {offsets = [0, 64], sizes = [8, 32], strides = [1, 1]} : vector<8x96xf32> to vector<8x32xf32>
    %199 = vector.extract_strided_slice %155 {offsets = [0, 64], sizes = [8, 32], strides = [1, 1]} : vector<8x96xf32> to vector<8x32xf32>
    %200 = arith.mulf %189, %199 : vector<8x32xf32>
    %201 = arith.addf %198, %200 : vector<8x32xf32>
    %202 = math.tanh %201 : vector<8x32xf32>
    %cst_63 = arith.constant 1.000000e+00 : f32
    %203 = vector.broadcast %cst_63 : f32 to vector<8x32xf32>
    %204 = arith.subf %203, %197 : vector<8x32xf32>
    %205 = arith.mulf %204, %202 : vector<8x32xf32>
    %206 = arith.mulf %197, %146 : vector<8x32xf32>
    %207 = arith.addf %205, %206 : vector<8x32xf32>
    %208 = arith.index_cast %c2_i32 : i32 to index
    %c0_64 = arith.constant 0 : index
    %c0_65 = arith.constant 0 : index
    %209 = vector.load %arg15[%208, %c0_64, %c0_65] : memref<7x8x32xf32, #tpu.memory_space<vmem>>, vector<1x8x32xf32>
    %210 = vector.shape_cast %209 : vector<1x8x32xf32> to vector<8x32xf32>
    %211 = vector.shape_cast %207 : vector<8x32xf32> to vector<1x8x32xf32>
    tpu.vector_store %arg15[%208, %c0_64, %c0_65], %211 {strides = array<i32>} : memref<7x8x32xf32, #tpu.memory_space<vmem>>, vector<1x8x32xf32>,
    %c3_i32 = arith.constant 3 : i32
    %212 = arith.truncf %207 : vector<8x32xf32> to vector<8x32xbf16>
    %cst_66 = arith.constant dense<0.000000e+00> : vector<8x128xf32>
    %213 = tpu.matmul %212, %19, %cst_66 {dimension_numbers = #tpu.dot_dimension_numbers<[1], [0], [0], [1], [0, 0, 1, 1], [], []>} : vector<8x32xbf16>, vector<32x128xbf16>, vector<8x128xf32> -> vector<8x128xf32>
    %214 = vector.extract_strided_slice %213 {offsets = [0, 0], sizes = [8, 32], strides = [1, 1]} : vector<8x128xf32> to vector<8x32xf32>
    %215 = vector.extract_strided_slice %213 {offsets = [0, 32], sizes = [8, 96], strides = [1, 1]} : vector<8x128xf32> to vector<8x96xf32>
    %216 = arith.addf %215, %23 : vector<8x96xf32>
    %217 = vector.shape_cast %214 : vector<8x32xf32> to vector<8x1x32xf32>
    %218 = vector.broadcast %217 : vector<8x1x32xf32> to vector<8x8x32xf32>
    %219 = arith.addf %8, %218 : vector<8x8x32xf32>
    %220 = math.tanh %219 : vector<8x8x32xf32>
    %221 = arith.mulf %220, %26 : vector<8x8x32xf32>
    %cst_67 = arith.constant dense<0.000000e+00> : vector<8x8xf32>
    %222 = vector.multi_reduction <add>, %221, %cst_67 [2] : vector<8x8x32xf32> to vector<8x8xf32>
    %cst_68 = arith.constant dense<0xFF800000> : vector<8xf32>
    %223 = vector.multi_reduction <maximumf>, %222, %cst_68 [1] : vector<8x8xf32> to vector<8xf32>
    %224 = vector.shape_cast %223 : vector<8xf32> to vector<8x1xf32>
    %225 = vector.broadcast %224 : vector<8x1xf32> to vector<8x8xf32>
    %226 = arith.subf %222, %225 : vector<8x8xf32>
    %227 = math.exp %226 : vector<8x8xf32>
    %cst_69 = arith.constant dense<0.000000e+00> : vector<8xf32>
    %228 = vector.multi_reduction <add>, %227, %cst_69 [1] : vector<8x8xf32> to vector<8xf32>
    %229 = vector.shape_cast %228 : vector<8xf32> to vector<8x1xf32>
    %230 = tpu.reciprocal %229 {approx = true} : vector<8x1xf32> -> vector<8x1xf32>
    %231 = vector.shape_cast %227 : vector<8x8xf32> to vector<8x8x1xf32>
    %232 = vector.broadcast %231 : vector<8x8x1xf32> to vector<8x8x32xf32>
    %233 = arith.mulf %232, %27 : vector<8x8x32xf32>
    %cst_70 = arith.constant dense<0.000000e+00> : vector<8x32xf32>
    %234 = vector.multi_reduction <add>, %233, %cst_70 [1] : vector<8x8x32xf32> to vector<8x32xf32>
    %235 = vector.broadcast %230 : vector<8x1xf32> to vector<8x32xf32>
    %236 = arith.mulf %234, %235 : vector<8x32xf32>
    %237 = arith.index_cast %c3_i32 : i32 to index
    %c0_71 = arith.constant 0 : index
    %c0_72 = arith.constant 0 : index
    %238 = vector.load %arg16[%237, %c0_71, %c0_72] : memref<7x8x96xf32, #tpu.memory_space<vmem>>, vector<1x8x96xf32>
    %239 = vector.shape_cast %238 : vector<1x8x96xf32> to vector<8x96xf32>
    %240 = arith.truncf %236 : vector<8x32xf32> to vector<8x32xbf16>
    %cst_73 = arith.constant dense<0.000000e+00> : vector<8x96xf32>
    %241 = tpu.matmul %240, %20, %cst_73 {dimension_numbers = #tpu.dot_dimension_numbers<[1], [0], [0], [1], [0, 0, 1, 1], [], []>} : vector<8x32xbf16>, vector<32x96xbf16>, vector<8x96xf32> -> vector<8x96xf32>
    %242 = arith.addf %239, %241 : vector<8x96xf32>
    %243 = vector.extract_strided_slice %242 {offsets = [0, 0], sizes = [8, 32], strides = [1, 1]} : vector<8x96xf32> to vector<8x32xf32>
    %244 = vector.extract_strided_slice %216 {offsets = [0, 0], sizes = [8, 32], strides = [1, 1]} : vector<8x96xf32> to vector<8x32xf32>
    %245 = arith.addf %243, %244 : vector<8x32xf32>
    %246 = arith.negf %245 : vector<8x32xf32>
    %247 = math.exp %246 : vector<8x32xf32>
    %cst_74 = arith.constant 1.000000e+00 : f32
    %248 = vector.broadcast %cst_74 : f32 to vector<8x32xf32>
    %249 = arith.addf %248, %247 : vector<8x32xf32>
    %250 = arith.divf %248, %249 : vector<8x32xf32>
    %251 = vector.extract_strided_slice %242 {offsets = [0, 32], sizes = [8, 32], strides = [1, 1]} : vector<8x96xf32> to vector<8x32xf32>
    %252 = vector.extract_strided_slice %216 {offsets = [0, 32], sizes = [8, 32], strides = [1, 1]} : vector<8x96xf32> to vector<8x32xf32>
    %253 = arith.addf %251, %252 : vector<8x32xf32>
    %254 = arith.negf %253 : vector<8x32xf32>
    %255 = math.exp %254 : vector<8x32xf32>
    %cst_75 = arith.constant 1.000000e+00 : f32
    %256 = vector.broadcast %cst_75 : f32 to vector<8x32xf32>
    %257 = arith.addf %256, %255 : vector<8x32xf32>
    %258 = arith.divf %256, %257 : vector<8x32xf32>
    %259 = vector.extract_strided_slice %242 {offsets = [0, 64], sizes = [8, 32], strides = [1, 1]} : vector<8x96xf32> to vector<8x32xf32>
    %260 = vector.extract_strided_slice %216 {offsets = [0, 64], sizes = [8, 32], strides = [1, 1]} : vector<8x96xf32> to vector<8x32xf32>
    %261 = arith.mulf %250, %260 : vector<8x32xf32>
    %262 = arith.addf %259, %261 : vector<8x32xf32>
    %263 = math.tanh %262 : vector<8x32xf32>
    %cst_76 = arith.constant 1.000000e+00 : f32
    %264 = vector.broadcast %cst_76 : f32 to vector<8x32xf32>
    %265 = arith.subf %264, %258 : vector<8x32xf32>
    %266 = arith.mulf %265, %263 : vector<8x32xf32>
    %267 = arith.mulf %258, %207 : vector<8x32xf32>
    %268 = arith.addf %266, %267 : vector<8x32xf32>
    %269 = arith.index_cast %c3_i32 : i32 to index
    %c0_77 = arith.constant 0 : index
    %c0_78 = arith.constant 0 : index
    %270 = vector.load %arg15[%269, %c0_77, %c0_78] : memref<7x8x32xf32, #tpu.memory_space<vmem>>, vector<1x8x32xf32>
    %271 = vector.shape_cast %270 : vector<1x8x32xf32> to vector<8x32xf32>
    %272 = vector.shape_cast %268 : vector<8x32xf32> to vector<1x8x32xf32>
    tpu.vector_store %arg15[%269, %c0_77, %c0_78], %272 {strides = array<i32>} : memref<7x8x32xf32, #tpu.memory_space<vmem>>, vector<1x8x32xf32>,
    %c4_i32 = arith.constant 4 : i32
    %273 = arith.truncf %268 : vector<8x32xf32> to vector<8x32xbf16>
    %cst_79 = arith.constant dense<0.000000e+00> : vector<8x128xf32>
    %274 = tpu.matmul %273, %19, %cst_79 {dimension_numbers = #tpu.dot_dimension_numbers<[1], [0], [0], [1], [0, 0, 1, 1], [], []>} : vector<8x32xbf16>, vector<32x128xbf16>, vector<8x128xf32> -> vector<8x128xf32>
    %275 = vector.extract_strided_slice %274 {offsets = [0, 0], sizes = [8, 32], strides = [1, 1]} : vector<8x128xf32> to vector<8x32xf32>
    %276 = vector.extract_strided_slice %274 {offsets = [0, 32], sizes = [8, 96], strides = [1, 1]} : vector<8x128xf32> to vector<8x96xf32>
    %277 = arith.addf %276, %23 : vector<8x96xf32>
    %278 = vector.shape_cast %275 : vector<8x32xf32> to vector<8x1x32xf32>
    %279 = vector.broadcast %278 : vector<8x1x32xf32> to vector<8x8x32xf32>
    %280 = arith.addf %8, %279 : vector<8x8x32xf32>
    %281 = math.tanh %280 : vector<8x8x32xf32>
    %282 = arith.mulf %281, %26 : vector<8x8x32xf32>
    %cst_80 = arith.constant dense<0.000000e+00> : vector<8x8xf32>
    %283 = vector.multi_reduction <add>, %282, %cst_80 [2] : vector<8x8x32xf32> to vector<8x8xf32>
    %cst_81 = arith.constant dense<0xFF800000> : vector<8xf32>
    %284 = vector.multi_reduction <maximumf>, %283, %cst_81 [1] : vector<8x8xf32> to vector<8xf32>
    %285 = vector.shape_cast %284 : vector<8xf32> to vector<8x1xf32>
    %286 = vector.broadcast %285 : vector<8x1xf32> to vector<8x8xf32>
    %287 = arith.subf %283, %286 : vector<8x8xf32>
    %288 = math.exp %287 : vector<8x8xf32>
    %cst_82 = arith.constant dense<0.000000e+00> : vector<8xf32>
    %289 = vector.multi_reduction <add>, %288, %cst_82 [1] : vector<8x8xf32> to vector<8xf32>
    %290 = vector.shape_cast %289 : vector<8xf32> to vector<8x1xf32>
    %291 = tpu.reciprocal %290 {approx = true} : vector<8x1xf32> -> vector<8x1xf32>
    %292 = vector.shape_cast %288 : vector<8x8xf32> to vector<8x8x1xf32>
    %293 = vector.broadcast %292 : vector<8x8x1xf32> to vector<8x8x32xf32>
    %294 = arith.mulf %293, %27 : vector<8x8x32xf32>
    %cst_83 = arith.constant dense<0.000000e+00> : vector<8x32xf32>
    %295 = vector.multi_reduction <add>, %294, %cst_83 [1] : vector<8x8x32xf32> to vector<8x32xf32>
    %296 = vector.broadcast %291 : vector<8x1xf32> to vector<8x32xf32>
    %297 = arith.mulf %295, %296 : vector<8x32xf32>
    %298 = arith.index_cast %c4_i32 : i32 to index
    %c0_84 = arith.constant 0 : index
    %c0_85 = arith.constant 0 : index
    %299 = vector.load %arg16[%298, %c0_84, %c0_85] : memref<7x8x96xf32, #tpu.memory_space<vmem>>, vector<1x8x96xf32>
    %300 = vector.shape_cast %299 : vector<1x8x96xf32> to vector<8x96xf32>
    %301 = arith.truncf %297 : vector<8x32xf32> to vector<8x32xbf16>
    %cst_86 = arith.constant dense<0.000000e+00> : vector<8x96xf32>
    %302 = tpu.matmul %301, %20, %cst_86 {dimension_numbers = #tpu.dot_dimension_numbers<[1], [0], [0], [1], [0, 0, 1, 1], [], []>} : vector<8x32xbf16>, vector<32x96xbf16>, vector<8x96xf32> -> vector<8x96xf32>
    %303 = arith.addf %300, %302 : vector<8x96xf32>
    %304 = vector.extract_strided_slice %303 {offsets = [0, 0], sizes = [8, 32], strides = [1, 1]} : vector<8x96xf32> to vector<8x32xf32>
    %305 = vector.extract_strided_slice %277 {offsets = [0, 0], sizes = [8, 32], strides = [1, 1]} : vector<8x96xf32> to vector<8x32xf32>
    %306 = arith.addf %304, %305 : vector<8x32xf32>
    %307 = arith.negf %306 : vector<8x32xf32>
    %308 = math.exp %307 : vector<8x32xf32>
    %cst_87 = arith.constant 1.000000e+00 : f32
    %309 = vector.broadcast %cst_87 : f32 to vector<8x32xf32>
    %310 = arith.addf %309, %308 : vector<8x32xf32>
    %311 = arith.divf %309, %310 : vector<8x32xf32>
    %312 = vector.extract_strided_slice %303 {offsets = [0, 32], sizes = [8, 32], strides = [1, 1]} : vector<8x96xf32> to vector<8x32xf32>
    %313 = vector.extract_strided_slice %277 {offsets = [0, 32], sizes = [8, 32], strides = [1, 1]} : vector<8x96xf32> to vector<8x32xf32>
    %314 = arith.addf %312, %313 : vector<8x32xf32>
    %315 = arith.negf %314 : vector<8x32xf32>
    %316 = math.exp %315 : vector<8x32xf32>
    %cst_88 = arith.constant 1.000000e+00 : f32
    %317 = vector.broadcast %cst_88 : f32 to vector<8x32xf32>
    %318 = arith.addf %317, %316 : vector<8x32xf32>
    %319 = arith.divf %317, %318 : vector<8x32xf32>
    %320 = vector.extract_strided_slice %303 {offsets = [0, 64], sizes = [8, 32], strides = [1, 1]} : vector<8x96xf32> to vector<8x32xf32>
    %321 = vector.extract_strided_slice %277 {offsets = [0, 64], sizes = [8, 32], strides = [1, 1]} : vector<8x96xf32> to vector<8x32xf32>
    %322 = arith.mulf %311, %321 : vector<8x32xf32>
    %323 = arith.addf %320, %322 : vector<8x32xf32>
    %324 = math.tanh %323 : vector<8x32xf32>
    %cst_89 = arith.constant 1.000000e+00 : f32
    %325 = vector.broadcast %cst_89 : f32 to vector<8x32xf32>
    %326 = arith.subf %325, %319 : vector<8x32xf32>
    %327 = arith.mulf %326, %324 : vector<8x32xf32>
    %328 = arith.mulf %319, %268 : vector<8x32xf32>
    %329 = arith.addf %327, %328 : vector<8x32xf32>
    %330 = arith.index_cast %c4_i32 : i32 to index
    %c0_90 = arith.constant 0 : index
    %c0_91 = arith.constant 0 : index
    %331 = vector.load %arg15[%330, %c0_90, %c0_91] : memref<7x8x32xf32, #tpu.memory_space<vmem>>, vector<1x8x32xf32>
    %332 = vector.shape_cast %331 : vector<1x8x32xf32> to vector<8x32xf32>
    %333 = vector.shape_cast %329 : vector<8x32xf32> to vector<1x8x32xf32>
    tpu.vector_store %arg15[%330, %c0_90, %c0_91], %333 {strides = array<i32>} : memref<7x8x32xf32, #tpu.memory_space<vmem>>, vector<1x8x32xf32>,
    %c5_i32 = arith.constant 5 : i32
    %334 = arith.truncf %329 : vector<8x32xf32> to vector<8x32xbf16>
    %cst_92 = arith.constant dense<0.000000e+00> : vector<8x128xf32>
    %335 = tpu.matmul %334, %19, %cst_92 {dimension_numbers = #tpu.dot_dimension_numbers<[1], [0], [0], [1], [0, 0, 1, 1], [], []>} : vector<8x32xbf16>, vector<32x128xbf16>, vector<8x128xf32> -> vector<8x128xf32>
    %336 = vector.extract_strided_slice %335 {offsets = [0, 0], sizes = [8, 32], strides = [1, 1]} : vector<8x128xf32> to vector<8x32xf32>
    %337 = vector.extract_strided_slice %335 {offsets = [0, 32], sizes = [8, 96], strides = [1, 1]} : vector<8x128xf32> to vector<8x96xf32>
    %338 = arith.addf %337, %23 : vector<8x96xf32>
    %339 = vector.shape_cast %336 : vector<8x32xf32> to vector<8x1x32xf32>
    %340 = vector.broadcast %339 : vector<8x1x32xf32> to vector<8x8x32xf32>
    %341 = arith.addf %8, %340 : vector<8x8x32xf32>
    %342 = math.tanh %341 : vector<8x8x32xf32>
    %343 = arith.mulf %342, %26 : vector<8x8x32xf32>
    %cst_93 = arith.constant dense<0.000000e+00> : vector<8x8xf32>
    %344 = vector.multi_reduction <add>, %343, %cst_93 [2] : vector<8x8x32xf32> to vector<8x8xf32>
    %cst_94 = arith.constant dense<0xFF800000> : vector<8xf32>
    %345 = vector.multi_reduction <maximumf>, %344, %cst_94 [1] : vector<8x8xf32> to vector<8xf32>
    %346 = vector.shape_cast %345 : vector<8xf32> to vector<8x1xf32>
    %347 = vector.broadcast %346 : vector<8x1xf32> to vector<8x8xf32>
    %348 = arith.subf %344, %347 : vector<8x8xf32>
    %349 = math.exp %348 : vector<8x8xf32>
    %cst_95 = arith.constant dense<0.000000e+00> : vector<8xf32>
    %350 = vector.multi_reduction <add>, %349, %cst_95 [1] : vector<8x8xf32> to vector<8xf32>
    %351 = vector.shape_cast %350 : vector<8xf32> to vector<8x1xf32>
    %352 = tpu.reciprocal %351 {approx = true} : vector<8x1xf32> -> vector<8x1xf32>
    %353 = vector.shape_cast %349 : vector<8x8xf32> to vector<8x8x1xf32>
    %354 = vector.broadcast %353 : vector<8x8x1xf32> to vector<8x8x32xf32>
    %355 = arith.mulf %354, %27 : vector<8x8x32xf32>
    %cst_96 = arith.constant dense<0.000000e+00> : vector<8x32xf32>
    %356 = vector.multi_reduction <add>, %355, %cst_96 [1] : vector<8x8x32xf32> to vector<8x32xf32>
    %357 = vector.broadcast %352 : vector<8x1xf32> to vector<8x32xf32>
    %358 = arith.mulf %356, %357 : vector<8x32xf32>
    %359 = arith.index_cast %c5_i32 : i32 to index
    %c0_97 = arith.constant 0 : index
    %c0_98 = arith.constant 0 : index
    %360 = vector.load %arg16[%359, %c0_97, %c0_98] : memref<7x8x96xf32, #tpu.memory_space<vmem>>, vector<1x8x96xf32>
    %361 = vector.shape_cast %360 : vector<1x8x96xf32> to vector<8x96xf32>
    %362 = arith.truncf %358 : vector<8x32xf32> to vector<8x32xbf16>
    %cst_99 = arith.constant dense<0.000000e+00> : vector<8x96xf32>
    %363 = tpu.matmul %362, %20, %cst_99 {dimension_numbers = #tpu.dot_dimension_numbers<[1], [0], [0], [1], [0, 0, 1, 1], [], []>} : vector<8x32xbf16>, vector<32x96xbf16>, vector<8x96xf32> -> vector<8x96xf32>
    %364 = arith.addf %361, %363 : vector<8x96xf32>
    %365 = vector.extract_strided_slice %364 {offsets = [0, 0], sizes = [8, 32], strides = [1, 1]} : vector<8x96xf32> to vector<8x32xf32>
    %366 = vector.extract_strided_slice %338 {offsets = [0, 0], sizes = [8, 32], strides = [1, 1]} : vector<8x96xf32> to vector<8x32xf32>
    %367 = arith.addf %365, %366 : vector<8x32xf32>
    %368 = arith.negf %367 : vector<8x32xf32>
    %369 = math.exp %368 : vector<8x32xf32>
    %cst_100 = arith.constant 1.000000e+00 : f32
    %370 = vector.broadcast %cst_100 : f32 to vector<8x32xf32>
    %371 = arith.addf %370, %369 : vector<8x32xf32>
    %372 = arith.divf %370, %371 : vector<8x32xf32>
    %373 = vector.extract_strided_slice %364 {offsets = [0, 32], sizes = [8, 32], strides = [1, 1]} : vector<8x96xf32> to vector<8x32xf32>
    %374 = vector.extract_strided_slice %338 {offsets = [0, 32], sizes = [8, 32], strides = [1, 1]} : vector<8x96xf32> to vector<8x32xf32>
    %375 = arith.addf %373, %374 : vector<8x32xf32>
    %376 = arith.negf %375 : vector<8x32xf32>
    %377 = math.exp %376 : vector<8x32xf32>
    %cst_101 = arith.constant 1.000000e+00 : f32
    %378 = vector.broadcast %cst_101 : f32 to vector<8x32xf32>
    %379 = arith.addf %378, %377 : vector<8x32xf32>
    %380 = arith.divf %378, %379 : vector<8x32xf32>
    %381 = vector.extract_strided_slice %364 {offsets = [0, 64], sizes = [8, 32], strides = [1, 1]} : vector<8x96xf32> to vector<8x32xf32>
    %382 = vector.extract_strided_slice %338 {offsets = [0, 64], sizes = [8, 32], strides = [1, 1]} : vector<8x96xf32> to vector<8x32xf32>
    %383 = arith.mulf %372, %382 : vector<8x32xf32>
    %384 = arith.addf %381, %383 : vector<8x32xf32>
    %385 = math.tanh %384 : vector<8x32xf32>
    %cst_102 = arith.constant 1.000000e+00 : f32
    %386 = vector.broadcast %cst_102 : f32 to vector<8x32xf32>
    %387 = arith.subf %386, %380 : vector<8x32xf32>
    %388 = arith.mulf %387, %385 : vector<8x32xf32>
    %389 = arith.mulf %380, %329 : vector<8x32xf32>
    %390 = arith.addf %388, %389 : vector<8x32xf32>
    %391 = arith.index_cast %c5_i32 : i32 to index
    %c0_103 = arith.constant 0 : index
    %c0_104 = arith.constant 0 : index
    %392 = vector.load %arg15[%391, %c0_103, %c0_104] : memref<7x8x32xf32, #tpu.memory_space<vmem>>, vector<1x8x32xf32>
    %393 = vector.shape_cast %392 : vector<1x8x32xf32> to vector<8x32xf32>
    %394 = vector.shape_cast %390 : vector<8x32xf32> to vector<1x8x32xf32>
    tpu.vector_store %arg15[%391, %c0_103, %c0_104], %394 {strides = array<i32>} : memref<7x8x32xf32, #tpu.memory_space<vmem>>, vector<1x8x32xf32>,
    %c6_i32 = arith.constant 6 : i32
    %395 = arith.truncf %390 : vector<8x32xf32> to vector<8x32xbf16>
    %cst_105 = arith.constant dense<0.000000e+00> : vector<8x128xf32>
    %396 = tpu.matmul %395, %19, %cst_105 {dimension_numbers = #tpu.dot_dimension_numbers<[1], [0], [0], [1], [0, 0, 1, 1], [], []>} : vector<8x32xbf16>, vector<32x128xbf16>, vector<8x128xf32> -> vector<8x128xf32>
    %397 = vector.extract_strided_slice %396 {offsets = [0, 0], sizes = [8, 32], strides = [1, 1]} : vector<8x128xf32> to vector<8x32xf32>
    %398 = vector.extract_strided_slice %396 {offsets = [0, 32], sizes = [8, 96], strides = [1, 1]} : vector<8x128xf32> to vector<8x96xf32>
    %399 = arith.addf %398, %23 : vector<8x96xf32>
    %400 = vector.shape_cast %397 : vector<8x32xf32> to vector<8x1x32xf32>
    %401 = vector.broadcast %400 : vector<8x1x32xf32> to vector<8x8x32xf32>
    %402 = arith.addf %8, %401 : vector<8x8x32xf32>
    %403 = math.tanh %402 : vector<8x8x32xf32>
    %404 = arith.mulf %403, %26 : vector<8x8x32xf32>
    %cst_106 = arith.constant dense<0.000000e+00> : vector<8x8xf32>
    %405 = vector.multi_reduction <add>, %404, %cst_106 [2] : vector<8x8x32xf32> to vector<8x8xf32>
    %cst_107 = arith.constant dense<0xFF800000> : vector<8xf32>
    %406 = vector.multi_reduction <maximumf>, %405, %cst_107 [1] : vector<8x8xf32> to vector<8xf32>
    %407 = vector.shape_cast %406 : vector<8xf32> to vector<8x1xf32>
    %408 = vector.broadcast %407 : vector<8x1xf32> to vector<8x8xf32>
    %409 = arith.subf %405, %408 : vector<8x8xf32>
    %410 = math.exp %409 : vector<8x8xf32>
    %cst_108 = arith.constant dense<0.000000e+00> : vector<8xf32>
    %411 = vector.multi_reduction <add>, %410, %cst_108 [1] : vector<8x8xf32> to vector<8xf32>
    %412 = vector.shape_cast %411 : vector<8xf32> to vector<8x1xf32>
    %413 = tpu.reciprocal %412 {approx = true} : vector<8x1xf32> -> vector<8x1xf32>
    %414 = vector.shape_cast %410 : vector<8x8xf32> to vector<8x8x1xf32>
    %415 = vector.broadcast %414 : vector<8x8x1xf32> to vector<8x8x32xf32>
    %416 = arith.mulf %415, %27 : vector<8x8x32xf32>
    %cst_109 = arith.constant dense<0.000000e+00> : vector<8x32xf32>
    %417 = vector.multi_reduction <add>, %416, %cst_109 [1] : vector<8x8x32xf32> to vector<8x32xf32>
    %418 = vector.broadcast %413 : vector<8x1xf32> to vector<8x32xf32>
    %419 = arith.mulf %417, %418 : vector<8x32xf32>
    %420 = arith.index_cast %c6_i32 : i32 to index
    %c0_110 = arith.constant 0 : index
    %c0_111 = arith.constant 0 : index
    %421 = vector.load %arg16[%420, %c0_110, %c0_111] : memref<7x8x96xf32, #tpu.memory_space<vmem>>, vector<1x8x96xf32>
    %422 = vector.shape_cast %421 : vector<1x8x96xf32> to vector<8x96xf32>
    %423 = arith.truncf %419 : vector<8x32xf32> to vector<8x32xbf16>
    %cst_112 = arith.constant dense<0.000000e+00> : vector<8x96xf32>
    %424 = tpu.matmul %423, %20, %cst_112 {dimension_numbers = #tpu.dot_dimension_numbers<[1], [0], [0], [1], [0, 0, 1, 1], [], []>} : vector<8x32xbf16>, vector<32x96xbf16>, vector<8x96xf32> -> vector<8x96xf32>
    %425 = arith.addf %422, %424 : vector<8x96xf32>
    %426 = vector.extract_strided_slice %425 {offsets = [0, 0], sizes = [8, 32], strides = [1, 1]} : vector<8x96xf32> to vector<8x32xf32>
    %427 = vector.extract_strided_slice %399 {offsets = [0, 0], sizes = [8, 32], strides = [1, 1]} : vector<8x96xf32> to vector<8x32xf32>
    %428 = arith.addf %426, %427 : vector<8x32xf32>
    %429 = arith.negf %428 : vector<8x32xf32>
    %430 = math.exp %429 : vector<8x32xf32>
    %cst_113 = arith.constant 1.000000e+00 : f32
    %431 = vector.broadcast %cst_113 : f32 to vector<8x32xf32>
    %432 = arith.addf %431, %430 : vector<8x32xf32>
    %433 = arith.divf %431, %432 : vector<8x32xf32>
    %434 = vector.extract_strided_slice %425 {offsets = [0, 32], sizes = [8, 32], strides = [1, 1]} : vector<8x96xf32> to vector<8x32xf32>
    %435 = vector.extract_strided_slice %399 {offsets = [0, 32], sizes = [8, 32], strides = [1, 1]} : vector<8x96xf32> to vector<8x32xf32>
    %436 = arith.addf %434, %435 : vector<8x32xf32>
    %437 = arith.negf %436 : vector<8x32xf32>
    %438 = math.exp %437 : vector<8x32xf32>
    %cst_114 = arith.constant 1.000000e+00 : f32
    %439 = vector.broadcast %cst_114 : f32 to vector<8x32xf32>
    %440 = arith.addf %439, %438 : vector<8x32xf32>
    %441 = arith.divf %439, %440 : vector<8x32xf32>
    %442 = vector.extract_strided_slice %425 {offsets = [0, 64], sizes = [8, 32], strides = [1, 1]} : vector<8x96xf32> to vector<8x32xf32>
    %443 = vector.extract_strided_slice %399 {offsets = [0, 64], sizes = [8, 32], strides = [1, 1]} : vector<8x96xf32> to vector<8x32xf32>
    %444 = arith.mulf %433, %443 : vector<8x32xf32>
    %445 = arith.addf %442, %444 : vector<8x32xf32>
    %446 = math.tanh %445 : vector<8x32xf32>
    %cst_115 = arith.constant 1.000000e+00 : f32
    %447 = vector.broadcast %cst_115 : f32 to vector<8x32xf32>
    %448 = arith.subf %447, %441 : vector<8x32xf32>
    %449 = arith.mulf %448, %446 : vector<8x32xf32>
    %450 = arith.mulf %441, %390 : vector<8x32xf32>
    %451 = arith.addf %449, %450 : vector<8x32xf32>
    %452 = arith.index_cast %c6_i32 : i32 to index
    %c0_116 = arith.constant 0 : index
    %c0_117 = arith.constant 0 : index
    %453 = vector.load %arg15[%452, %c0_116, %c0_117] : memref<7x8x32xf32, #tpu.memory_space<vmem>>, vector<1x8x32xf32>
    %454 = vector.shape_cast %453 : vector<1x8x32xf32> to vector<8x32xf32>
    %455 = vector.shape_cast %451 : vector<8x32xf32> to vector<1x8x32xf32>
    tpu.vector_store %arg15[%452, %c0_116, %c0_117], %455 {strides = array<i32>} : memref<7x8x32xf32, #tpu.memory_space<vmem>>, vector<1x8x32xf32>,
    %c7_i32 = arith.constant 7 : i32
    %c0_118 = arith.constant 0 : index
    %c0_119 = arith.constant 0 : index
    %c0_120 = arith.constant 0 : index
    %456 = vector.load %arg15[%c0_118, %c0_119, %c0_120] : memref<7x8x32xf32, #tpu.memory_space<vmem>>, vector<7x8x32xf32>
    %457 = vector.shape_cast %456 : vector<7x8x32xf32> to vector<56x32xf32>
    %458 = arith.truncf %457 : vector<56x32xf32> to vector<56x32xbf16>
    %c0_121 = arith.constant 0 : index
    %c0_122 = arith.constant 0 : index
    %459 = vector.load %arg12[%c0_121, %c0_122] : memref<32x128xbf16, #tpu.memory_space<vmem>>, vector<32x128xbf16>
    %cst_123 = arith.constant dense<0.000000e+00> : vector<56x128xf32>
    %460 = tpu.matmul %458, %459, %cst_123 {dimension_numbers = #tpu.dot_dimension_numbers<[1], [0], [0], [1], [0, 0, 1, 1], [], []>} : vector<56x32xbf16>, vector<32x128xbf16>, vector<56x128xf32> -> vector<56x128xf32>
    %c0_124 = arith.constant 0 : index
    %c0_125 = arith.constant 0 : index
    %461 = vector.load %arg13[%c0_124, %c0_125] : memref<1x128xf32, #tpu.memory_space<vmem>>, vector<1x128xf32>
    %462 = vector.broadcast %461 : vector<1x128xf32> to vector<56x128xf32>
    %463 = arith.addf %460, %462 : vector<56x128xf32>
    %cst_126 = arith.constant dense<0xFF800000> : vector<56xf32>
    %464 = vector.multi_reduction <maximumf>, %463, %cst_126 [1] : vector<56x128xf32> to vector<56xf32>
    %465 = vector.shape_cast %464 : vector<56xf32> to vector<56x1xf32>
    %466 = vector.broadcast %465 : vector<56x1xf32> to vector<56x128xf32>
    %467 = arith.subf %463, %466 : vector<56x128xf32>
    %468 = math.exp %467 : vector<56x128xf32>
    %cst_127 = arith.constant dense<0.000000e+00> : vector<56xf32>
    %469 = vector.multi_reduction <add>, %468, %cst_127 [1] : vector<56x128xf32> to vector<56xf32>
    %470 = vector.shape_cast %469 : vector<56xf32> to vector<56x1xf32>
    %471 = math.log %470 : vector<56x1xf32>
    %472 = arith.addf %471, %465 : vector<56x1xf32>
    %473 = vector.broadcast %472 : vector<56x1xf32> to vector<56x128xf32>
    %474 = arith.subf %463, %473 : vector<56x128xf32>
    %475 = vector.shape_cast %474 : vector<56x128xf32> to vector<7x8x128xf32>
    %c0_128 = arith.constant 0 : index
    %c0_129 = arith.constant 0 : index
    %c0_130 = arith.constant 0 : index
    %476 = vector.load %arg14[%c0_128, %c0_129, %c0_130] : memref<7x8x128xf32, #tpu.memory_space<vmem>>, vector<7x8x128xf32>
    tpu.vector_store %arg14[%c0_128, %c0_129, %c0_130], %475 {strides = array<i32>} : memref<7x8x128xf32, #tpu.memory_space<vmem>>, vector<7x8x128xf32>,
    return
  }
  func.func @transform_0(%arg0: i32) -> (i32, i32, i32) {
    %c0_i32 = arith.constant 0 : i32
    %c0_i32_0 = arith.constant 0 : i32
    %c0_i32_1 = arith.constant 0 : i32
    return %c0_i32, %arg0, %c0_i32_0 : i32, i32, i32
  }
  func.func @transform_1(%arg0: i32) -> (i32, i32, i32) {
    %c0_i32 = arith.constant 0 : i32
    %c0_i32_0 = arith.constant 0 : i32
    %c0_i32_1 = arith.constant 0 : i32
    return %arg0, %c0_i32, %c0_i32_0 : i32, i32, i32
  }
  func.func @transform_2(%arg0: i32) -> (i32, i32) {
    %c0_i32 = arith.constant 0 : i32
    %c0_i32_0 = arith.constant 0 : i32
    return %arg0, %c0_i32 : i32, i32
  }
  func.func @transform_3(%arg0: i32) -> (i32, i32) {
    %c0_i32 = arith.constant 0 : i32
    %c0_i32_0 = arith.constant 0 : i32
    %c0_i32_1 = arith.constant 0 : i32
    return %c0_i32, %c0_i32_0 : i32, i32
  }
  func.func @transform_4(%arg0: i32) -> (i32, i32) {
    %c0_i32 = arith.constant 0 : i32
    %c0_i32_0 = arith.constant 0 : i32
    %c0_i32_1 = arith.constant 0 : i32
    return %c0_i32, %c0_i32_0 : i32, i32
  }
  func.func @transform_5(%arg0: i32) -> (i32, i32) {
    %c0_i32 = arith.constant 0 : i32
    %c0_i32_0 = arith.constant 0 : i32
    %c0_i32_1 = arith.constant 0 : i32
    return %c0_i32, %c0_i32_0 : i32, i32
  }
  func.func @transform_6(%arg0: i32) -> (i32, i32) {
    %c0_i32 = arith.constant 0 : i32
    %c0_i32_0 = arith.constant 0 : i32
    %c0_i32_1 = arith.constant 0 : i32
    return %c0_i32, %c0_i32_0 : i32, i32
  }
  func.func @transform_7(%arg0: i32) -> (i32, i32) {
    %c0_i32 = arith.constant 0 : i32
    %c0_i32_0 = arith.constant 0 : i32
    %c0_i32_1 = arith.constant 0 : i32
    return %c0_i32, %c0_i32_0 : i32, i32
  }
  func.func @transform_8(%arg0: i32) -> (i32, i32) {
    %c0_i32 = arith.constant 0 : i32
    %c0_i32_0 = arith.constant 0 : i32
    %c0_i32_1 = arith.constant 0 : i32
    return %c0_i32, %c0_i32_0 : i32, i32
  }
  func.func @transform_9(%arg0: i32) -> (i32, i32) {
    %c0_i32 = arith.constant 0 : i32
    %c0_i32_0 = arith.constant 0 : i32
    %c0_i32_1 = arith.constant 0 : i32
    return %c0_i32, %c0_i32_0 : i32, i32
  }
  func.func @transform_10(%arg0: i32) -> (i32, i32) {
    %c0_i32 = arith.constant 0 : i32
    %c0_i32_0 = arith.constant 0 : i32
    %c0_i32_1 = arith.constant 0 : i32
    return %c0_i32, %c0_i32_0 : i32, i32
  }
  func.func @transform_11(%arg0: i32) -> (i32, i32) {
    %c0_i32 = arith.constant 0 : i32
    %c0_i32_0 = arith.constant 0 : i32
    %c0_i32_1 = arith.constant 0 : i32
    return %c0_i32, %c0_i32_0 : i32, i32
  }
  func.func @transform_12(%arg0: i32) -> (i32, i32) {
    %c0_i32 = arith.constant 0 : i32
    %c0_i32_0 = arith.constant 0 : i32
    %c0_i32_1 = arith.constant 0 : i32
    return %c0_i32, %c0_i32_0 : i32, i32
  }
  func.func @transform_13(%arg0: i32) -> (i32, i32, i32) {
    %c0_i32 = arith.constant 0 : i32
    %c0_i32_0 = arith.constant 0 : i32
    %c0_i32_1 = arith.constant 0 : i32
    return %c0_i32, %arg0, %c0_i32_0 : i32, i32, i32
  }
}

</mosaic_0001>

<llo_original>
// kernel: decoder_rnn_train_forward.1
$region0: #{decoder_rnn_train_forward.1}
  #allocation0 [shape = 'u32[]', space=smem, size = 0x4, offset = 0x4, fixed_abs, tag = 'smem constant byte address 0x4 - core index']
  #allocation1 [shape = 'u32[144,128]{1,0:T(1,128)}', space=vmem, size = 0x12000, scoped, tag = 'internal scratch']
  #allocation2 [shape = 'f32[7,8,32]{2,1,0:T(8,128)}', space=vmem, size = 0x7000, scoped, tag = 'scratch operand']
  #allocation3 [shape = 'f32[7,8,96]{2,1,0:T(8,128)}', space=vmem, size = 0x7000, scoped, tag = 'scratch operand']
  %s0 = inlined_call_operand.vmem [shape: bf16[7,8,32], index: 0, kind: input, shape index: {}]
  %s1 = inlined_call_operand.vmem [shape: bf16[8,8,32], index: 1, kind: input, shape index: {}]
  %s2 = inlined_call_operand.vmem [shape: f32[8,32], index: 2, kind: input, shape index: {}]
  %s3 = inlined_call_operand.vmem [shape: bf16[32,32], index: 3, kind: input, shape index: {}]
  %s4 = inlined_call_operand.vmem [shape: f32[1,32], index: 4, kind: input, shape index: {}]
  %s5 = inlined_call_operand.vmem [shape: f32[1,32], index: 5, kind: input, shape index: {}]
  %s6 = inlined_call_operand.vmem [shape: bf16[32,128], index: 6, kind: input, shape index: {}]
  %s7 = inlined_call_operand.vmem [shape: bf16[32,96], index: 7, kind: input, shape index: {}]
  %s8 = inlined_call_operand.vmem [shape: bf16[32,96], index: 8, kind: input, shape index: {}]
  %s9 = inlined_call_operand.vmem [shape: f32[1,96], index: 9, kind: input, shape index: {}]
  %s10 = inlined_call_operand.vmem [shape: f32[1,96], index: 10, kind: input, shape index: {}]
  %s11 = inlined_call_operand.vmem [shape: bf16[32,128], index: 11, kind: input, shape index: {}]
  %s12 = inlined_call_operand.vmem [shape: f32[1,128], index: 12, kind: input, shape index: {}]
  %s13 = inlined_call_operand.vmem [shape: f32[7,8,128], index: 13, kind: output, shape index: {}]
  %s14 = sld [smem:[#allocation0]]
  $region62: #{decoder_rnn_train_forward.1} parent=0
    _
  %s16 = ssub.s32 1, %s14
  %s17 = scalar_select 0, %s16, %s14
  // Predicated region
  $region2: #{decoder_rnn_train_forward.1} parent=0 // pred_check
    _
  $region3: #{decoder_rnn_train_forward.1} parent=0 // pred_check_branch
    %19 = sbr.rel (0) target = $region5
  $region4: #{decoder_rnn_train_forward.1} parent=0 // pred_region
    _
  $region5: #{decoder_rnn_train_forward.1} parent=0 // pred_fallthru
    _
  // Predicated region
  $region6: #{decoder_rnn_train_forward.1} parent=0 // pred_check
    _
  $region7: #{decoder_rnn_train_forward.1} parent=0 // pred_check_branch
    %21 = sbr.rel (0) target = $region9
  $region8: #{decoder_rnn_train_forward.1} parent=0 // pred_region
    _
  $region9: #{decoder_rnn_train_forward.1} parent=0 // pred_fallthru
    _
  // Predicated region
  $region10: #{decoder_rnn_train_forward.1} parent=0 // pred_check
    _
  $region11: #{decoder_rnn_train_forward.1} parent=0 // pred_check_branch
    %23 = sbr.rel (0) target = $region13
  $region12: #{decoder_rnn_train_forward.1} parent=0 // pred_region
    _
  $region13: #{decoder_rnn_train_forward.1} parent=0 // pred_fallthru
    _
  // Predicated region
  $region14: #{decoder_rnn_train_forward.1} parent=0 // pred_check
    _
  $region15: #{decoder_rnn_train_forward.1} parent=0 // pred_check_branch
    %25 = sbr.rel (0) target = $region17
  $region16: #{decoder_rnn_train_forward.1} parent=0 // pred_region
    _
  $region17: #{decoder_rnn_train_forward.1} parent=0 // pred_fallthru
    _
  // Predicated region
  $region18: #{decoder_rnn_train_forward.1} parent=0 // pred_check
    _
  $region19: #{decoder_rnn_train_forward.1} parent=0 // pred_check_branch
    %27 = sbr.rel (0) target = $region21
  $region20: #{decoder_rnn_train_forward.1} parent=0 // pred_region
    _
  $region21: #{decoder_rnn_train_forward.1} parent=0 // pred_fallthru
    _
  // Predicated region
  $region22: #{decoder_rnn_train_forward.1} parent=0 // pred_check
    _
  $region23: #{decoder_rnn_train_forward.1} parent=0 // pred_check_branch
    %29 = sbr.rel (0) target = $region25
  $region24: #{decoder_rnn_train_forward.1} parent=0 // pred_region
    _
  $region25: #{decoder_rnn_train_forward.1} parent=0 // pred_fallthru
    _
  // Predicated region
  $region26: #{decoder_rnn_train_forward.1} parent=0 // pred_check
    _
  $region27: #{decoder_rnn_train_forward.1} parent=0 // pred_check_branch
    %31 = sbr.rel (0) target = $region29
  $region28: #{decoder_rnn_train_forward.1} parent=0 // pred_region
    _
  $region29: #{decoder_rnn_train_forward.1} parent=0 // pred_fallthru
    _
  // Predicated region
  $region30: #{decoder_rnn_train_forward.1} parent=0 // pred_check
    _
  $region31: #{decoder_rnn_train_forward.1} parent=0 // pred_check_branch
    %33 = sbr.rel (0) target = $region33
  $region32: #{decoder_rnn_train_forward.1} parent=0 // pred_region
    _
  $region33: #{decoder_rnn_train_forward.1} parent=0 // pred_fallthru
    _
  // Predicated region
  $region34: #{decoder_rnn_train_forward.1} parent=0 // pred_check
    _
  $region35: #{decoder_rnn_train_forward.1} parent=0 // pred_check_branch
    %35 = sbr.rel (0) target = $region37
  $region36: #{decoder_rnn_train_forward.1} parent=0 // pred_region
    _
  $region37: #{decoder_rnn_train_forward.1} parent=0 // pred_fallthru
    _
  // Predicated region
  $region38: #{decoder_rnn_train_forward.1} parent=0 // pred_check
    _
  $region39: #{decoder_rnn_train_forward.1} parent=0 // pred_check_branch
    %37 = sbr.rel (0) target = $region41
  $region40: #{decoder_rnn_train_forward.1} parent=0 // pred_region
    _
  $region41: #{decoder_rnn_train_forward.1} parent=0 // pred_fallthru
    _
  // Predicated region
  $region42: #{decoder_rnn_train_forward.1} parent=0 // pred_check
    _
  $region43: #{decoder_rnn_train_forward.1} parent=0 // pred_check_branch
    %39 = sbr.rel (0) target = $region45
  $region44: #{decoder_rnn_train_forward.1} parent=0 // pred_region
    _
  $region45: #{decoder_rnn_train_forward.1} parent=0 // pred_fallthru
    _
  // Predicated region
  $region46: #{decoder_rnn_train_forward.1} parent=0 // pred_check
    _
  $region47: #{decoder_rnn_train_forward.1} parent=0 // pred_check_branch
    %41 = sbr.rel (0) target = $region49
  $region48: #{decoder_rnn_train_forward.1} parent=0 // pred_region
    _
  $region49: #{decoder_rnn_train_forward.1} parent=0 // pred_fallthru
    _
  // Predicated region
  $region50: #{decoder_rnn_train_forward.1} parent=0 // pred_check
    _
  $region51: #{decoder_rnn_train_forward.1} parent=0 // pred_check_branch
    %43 = sbr.rel (0) target = $region53
  $region52: #{decoder_rnn_train_forward.1} parent=0 // pred_region
    _
  $region53: #{decoder_rnn_train_forward.1} parent=0 // pred_fallthru
    _
  %v45 = vld [vmem:[%s1] sm:$0xf]
  %v46 = vld [vmem:[%s1 + $0x4] sm:$0xf]
  %v47 = vld [vmem:[%s1 + $0x8] sm:$0xf]
  %v48 = vld [vmem:[%s1 + $0xc] sm:$0xf]
  %v49 = vld [vmem:[%s1 + $0x10] sm:$0xf]
  %v50 = vld [vmem:[%s1 + $0x14] sm:$0xf]
  %v51 = vld [vmem:[%s1 + $0x18] sm:$0xf]
  %v52 = vld [vmem:[%s1 + $0x1c] sm:$0xf]
  %v53 = vld [vmem:[%s3] sm:$0xf]
  %v54 = vld [vmem:[%s3 + $0x4] sm:$0xf]
  %v55 = vld [vmem:[%s3 + $0x8] sm:$0xf]
  %v56 = vld [vmem:[%s3 + $0xc] sm:$0xf]
  %v65 = vunpack.c.l.b16 %v45
  %v66 = vunpack.c.l.b16 %v46
  %v67 = vunpack.c.l.b16 %v47
  %v68 = vunpack.c.l.b16 %v48
  %v69 = vunpack.c.l.b16 %v49
  %v70 = vunpack.c.l.b16 %v50
  %v71 = vunpack.c.l.b16 %v51
  %v72 = vunpack.c.l.b16 %v52
  %v73 = vpack.c.b16 %v66, %v65
  %v74 = vpack.c.b16 %v68, %v67
  %v75 = vpack.c.b16 %v70, %v69
  %v76 = vpack.c.b16 %v72, %v71
  %v81 = vunpack.c.l.b16 %v53
  %v82 = vunpack.c.l.b16 %v54
  %v83 = vunpack.c.l.b16 %v55
  %v84 = vunpack.c.l.b16 %v56
  %v85 = vpack.c.b16 %v82, %v81
  %v86 = vpack.c.b16 %v84, %v83
  %vm89 = vcmask 261120
  %v91 = vsel %vm89, %v73, 0
  %v94 = vsel %vm89, %v74, 0
  %v97 = vsel %vm89, %v75, 0
  %v100 = vsel %vm89, %v76, 0
  %102 = vmatprep.subr.bf16.mxu0 0
  %103 = vmatpush1.bf16.msra.mxu0 %v85
  %104 = vmatprep.subr.bf16.mxu0 0
  %105 = vmatpush1.bf16.msra.mxu0 %v86
  %106 = vmatprep.subr.bf16.mxu0 0
  %107 = vmatpush1.bf16.msra.mxu0 0
  %108 = vmatprep.subr.bf16.mxu0 0
  %109 = vmatpush1.bf16.msra.mxu0 0
  %110 = vmatprep.subr.bf16.mxu0 0
  %111 = vmatpush1.bf16.msra.mxu0 0
  %112 = vmatprep.subr.bf16.mxu0 0
  %113 = vmatpush1.bf16.msra.mxu0 0
  %114 = vmatprep.subr.bf16.mxu0 0
  %115 = vmatpush1.bf16.msra.mxu0 0
  %116 = vmatprep.subr.bf16.mxu0 0
  %117 = vmatpush1.bf16.msra.mxu0 0
  %118 = vmatprep.subr.bf16.mxu0 0
  %119 = vmatpush1.bf16.msra.mxu0 0
  %120 = vmatprep.subr.bf16.mxu0 0
  %121 = vmatpush1.bf16.msra.mxu0 0
  %122 = vmatprep.subr.bf16.mxu0 0
  %123 = vmatpush1.bf16.msra.mxu0 0
  %124 = vmatprep.subr.bf16.mxu0 0
  %125 = vmatpush1.bf16.msra.mxu0 0
  %126 = vmatprep.subr.bf16.mxu0 0
  %127 = vmatpush1.bf16.msra.mxu0 0
  %128 = vmatprep.subr.bf16.mxu0 0
  %129 = vmatpush1.bf16.msra.mxu0 0
  %130 = vmatprep.subr.bf16.mxu0 0
  %131 = vmatpush1.bf16.msra.mxu0 0
  %132 = vmatprep.subr.bf16.mxu0 0
  %133 = vmatpush1.bf16.msra.mxu0 0
  %134 = vmatprep.mubr.bf16.mxu0 0
  %135 = vmatmul.mubr.bf16.gmra.mrb[0].mxu0 %v91
  %v136 = vpop.f32.mrb[0].mxu0
  %v137 = vadd.f32 0.0, %v136
  %v138 = vpop.f32.mrb[0].mxu0
  %v139 = vpop.f32.mrb[0].mxu0
  %v140 = vadd.f32 0.0, %v139
  %v141 = vpop.f32.mrb[0].mxu0
  %142 = vmatprep.mubr.bf16.mxu0 0
  %143 = vmatmul.mubr.bf16.gmra.mrb[0].mxu0 %v94
  %v144 = vpop.f32.mrb[0].mxu0
  %v145 = vadd.f32 0.0, %v144
  %v146 = vpop.f32.mrb[0].mxu0
  %v147 = vpop.f32.mrb[0].mxu0
  %v148 = vadd.f32 0.0, %v147
  %v149 = vpop.f32.mrb[0].mxu0
  %150 = vmatprep.mubr.bf16.mxu0 0
  %151 = vmatmul.mubr.bf16.gmra.mrb[0].mxu0 %v97
  %v152 = vpop.f32.mrb[0].mxu0
  %v153 = vadd.f32 0.0, %v152
  %v154 = vpop.f32.mrb[0].mxu0
  %v155 = vpop.f32.mrb[0].mxu0
  %v156 = vadd.f32 0.0, %v155
  %v157 = vpop.f32.mrb[0].mxu0
  %158 = vmatprep.mubr.bf16.mxu0 0
  %159 = vmatmul.mubr.bf16.gmra.mrb[0].mxu0 %v100
  %v160 = vpop.f32.mrb[0].mxu0
  %v161 = vadd.f32 0.0, %v160
  %v162 = vpop.f32.mrb[0].mxu0
  %v163 = vpop.f32.mrb[0].mxu0
  %v164 = vadd.f32 0.0, %v163
  %v165 = vpop.f32.mrb[0].mxu0
  %166 = vdwg.mxu0
  %v167 = vld [vmem:[%s4] sm:$0x1]
  %v169 = vlaneseq
  %v170 = vshrl.u32 %v169, 7
  %v171 = vsub.s32 0, %v170
  %v172 = vrot.slane %v167, %v171
  %v174 = vadd.f32 %v137, %v172
  %v175 = vadd.f32 %v140, %v172
  %v176 = vadd.f32 %v145, %v172
  %v177 = vadd.f32 %v148, %v172
  %v178 = vadd.f32 %v153, %v172
  %v179 = vadd.f32 %v156, %v172
  %v180 = vadd.f32 %v161, %v172
  %v181 = vadd.f32 %v164, %v172
  %v182 = vld [vmem:[%s0] sm:$0xf]
  %v183 = vld [vmem:[%s0 + $0x4] sm:$0xf]
  %v184 = vld [vmem:[%s0 + $0x8] sm:$0xf]
  %v185 = vld [vmem:[%s0 + $0xc] sm:$0xf]
  %v186 = vld [vmem:[%s0 + $0x10] sm:$0xf]
  %v187 = vld [vmem:[%s0 + $0x14] sm:$0xf]
  %v188 = vld [vmem:[%s0 + $0x18] sm:$0xf]
  %v189 = vld [vmem:[%s7] sm:$0xf]
  %v190 = vld [vmem:[%s7 + $0x4] sm:$0xf]
  %v191 = vld [vmem:[%s7 + $0x8] sm:$0xf]
  %v192 = vld [vmem:[%s7 + $0xc] sm:$0xf]
  %v200 = vunpack.c.l.b16 %v182
  %v201 = vunpack.c.l.b16 %v183
  %v202 = vunpack.c.l.b16 %v184
  %v203 = vunpack.c.l.b16 %v185
  %v204 = vunpack.c.l.b16 %v186
  %v205 = vunpack.c.l.b16 %v187
  %v206 = vunpack.c.l.b16 %v188
  %v207 = vpack.c.b16 %v201, %v200
  %v208 = vpack.c.b16 %v203, %v202
  %v209 = vpack.c.b16 %v205, %v204
  %v210 = vpack.c.b16 %v206, %v206
  %v215 = vunpack.c.l.b16 %v189
  %v216 = vunpack.c.l.b16 %v190
  %v217 = vunpack.c.l.b16 %v191
  %v218 = vunpack.c.l.b16 %v192
  %v219 = vpack.c.b16 %v216, %v215
  %v220 = vpack.c.b16 %v218, %v217
  %v224 = vsel %vm89, %v207, 0
  %v227 = vsel %vm89, %v208, 0
  %v230 = vsel %vm89, %v209, 0
  %v233 = vsel %vm89, %v210, 0
  %235 = vmatprep.subr.bf16.mxu0 0
  %236 = vmatpush1.bf16.msra.mxu0 %v219
  %237 = vmatprep.subr.bf16.mxu0 0
  %238 = vmatpush1.bf16.msra.mxu0 %v220
  %239 = vmatprep.subr.bf16.mxu0 0
  %240 = vmatpush1.bf16.msra.mxu0 0
  %241 = vmatprep.subr.bf16.mxu0 0
  %242 = vmatpush1.bf16.msra.mxu0 0
  %243 = vmatprep.subr.bf16.mxu0 0
  %244 = vmatpush1.bf16.msra.mxu0 0
  %245 = vmatprep.subr.bf16.mxu0 0
  %246 = vmatpush1.bf16.msra.mxu0 0
  %247 = vmatprep.subr.bf16.mxu0 0
  %248 = vmatpush1.bf16.msra.mxu0 0
  %249 = vmatprep.subr.bf16.mxu0 0
  %250 = vmatpush1.bf16.msra.mxu0 0
  %251 = vmatprep.subr.bf16.mxu0 0
  %252 = vmatpush1.bf16.msra.mxu0 0
  %253 = vmatprep.subr.bf16.mxu0 0
  %254 = vmatpush1.bf16.msra.mxu0 0
  %255 = vmatprep.subr.bf16.mxu0 0
  %256 = vmatpush1.bf16.msra.mxu0 0
  %257 = vmatprep.subr.bf16.mxu0 0
  %258 = vmatpush1.bf16.msra.mxu0 0
  %259 = vmatprep.subr.bf16.mxu0 0
  %260 = vmatpush1.bf16.msra.mxu0 0
  %261 = vmatprep.subr.bf16.mxu0 0
  %262 = vmatpush1.bf16.msra.mxu0 0
  %263 = vmatprep.subr.bf16.mxu0 0
  %264 = vmatpush1.bf16.msra.mxu0 0
  %265 = vmatprep.subr.bf16.mxu0 0
  %266 = vmatpush1.bf16.msra.mxu0 0
  %267 = vmatprep.mubr.bf16.mxu0 0
  %268 = vmatmul.mubr.bf16.gmra.mrb[0].mxu0 %v224
  %v269 = vpop.f32.mrb[0].mxu0
  %v270 = vadd.f32 0.0, %v269
  %v271 = vpop.f32.mrb[0].mxu0
  %v272 = vpop.f32.mrb[0].mxu0
  %v273 = vadd.f32 0.0, %v272
  %v274 = vpop.f32.mrb[0].mxu0
  %275 = vmatprep.mubr.bf16.mxu0 0
  %276 = vmatmul.mubr.bf16.gmra.mrb[0].mxu0 %v227
  %v277 = vpop.f32.mrb[0].mxu0
  %v278 = vadd.f32 0.0, %v277
  %v279 = vpop.f32.mrb[0].mxu0
  %v280 = vpop.f32.mrb[0].mxu0
  %v281 = vadd.f32 0.0, %v280
  %v282 = vpop.f32.mrb[0].mxu0
  %283 = vmatprep.mubr.bf16.mxu0 0
  %284 = vmatmul.mubr.bf16.gmra.mrb[0].mxu0 %v230
  %v285 = vpop.f32.mrb[0].mxu0
  %v286 = vadd.f32 0.0, %v285
  %v287 = vpop.f32.mrb[0].mxu0
  %v288 = vpop.f32.mrb[0].mxu0
  %v289 = vadd.f32 0.0, %v288
  %v290 = vpop.f32.mrb[0].mxu0
  %291 = vmatprep.mubr.bf16.mxu0 0
  %292 = vmatmul.mubr.bf16.gmra.mrb[0].mxu0 %v233
  %v293 = vpop.f32.mrb[0].mxu0
  %v294 = vadd.f32 0.0, %v293
  %v295 = vpop.f32.mrb[0].mxu0
  %v296 = vpop.f32.mrb[0].mxu0
  %v297 = vpop.f32.mrb[0].mxu0
  %298 = vdwg.mxu0
  %v299 = vld [vmem:[%s9] sm:$0x1]
  %v301 = vlaneseq
  %v302 = vshrl.u32 %v301, 7
  %v303 = vsub.s32 0, %v302
  %v304 = vrot.slane %v299, %v303
  %v306 = vadd.f32 %v270, %v304
  %v307 = vadd.f32 %v273, %v304
  %v308 = vadd.f32 %v278, %v304
  %v309 = vadd.f32 %v281, %v304
  %v310 = vadd.f32 %v286, %v304
  %v311 = vadd.f32 %v289, %v304
  %v312 = vadd.f32 %v294, %v304
  %vm313 = vcmask 785408
  %314 = vst.msk [vmem:[#allocation3] sm:$0xff] %vm313, %v306
  %315 = vst.msk [vmem:[#allocation3 + $0x8] sm:$0xff] %vm313, %v307
  %316 = vst.msk [vmem:[#allocation3 + $0x10] sm:$0xff] %vm313, %v308
  %317 = vst.msk [vmem:[#allocation3 + $0x18] sm:$0xff] %vm313, %v309
  %318 = vst.msk [vmem:[#allocation3 + $0x20] sm:$0xff] %vm313, %v310
  %319 = vst.msk [vmem:[#allocation3 + $0x28] sm:$0xff] %vm313, %v311
  %320 = vst.msk [vmem:[#allocation3 + $0x30] sm:$0xff] %vm313, %v312
  %v321 = vld [vmem:[%s6] sm:$0xf]
  %v322 = vld [vmem:[%s6 + $0x4] sm:$0xf]
  %v323 = vld [vmem:[%s6 + $0x8] sm:$0xf]
  %v324 = vld [vmem:[%s6 + $0xc] sm:$0xf]
  %v325 = vld [vmem:[%s8] sm:$0xf]
  %v326 = vld [vmem:[%s8 + $0x4] sm:$0xf]
  %v327 = vld [vmem:[%s8 + $0x8] sm:$0xf]
  %v328 = vld [vmem:[%s8 + $0xc] sm:$0xf]
  %v329 = vld [vmem:[%s10] sm:$0x1]
  %v331 = vlaneseq
  %v332 = vshrl.u32 %v331, 7
  %v333 = vsub.s32 0, %v332
  %v334 = vrot.slane %v329, %v333
  %v335 = vld [vmem:[%s5] sm:$0x1]
  %v337 = vlaneseq
  %v338 = vshrl.u32 %v337, 7
  %v339 = vsub.s32 0, %v338
  %v340 = vrot.slane %v335, %v339
  %v342 = vunpack.c.l.bf16 %v45
  %v343 = vunpack.c.l.bf16 %v46
  %v344 = vunpack.c.l.bf16 %v47
  %v345 = vunpack.c.l.bf16 %v48
  %v346 = vunpack.c.l.bf16 %v49
  %v347 = vunpack.c.l.bf16 %v50
  %v348 = vunpack.c.l.bf16 %v51
  %v349 = vunpack.c.l.bf16 %v52
  %v350 = vld [vmem:[%s2] sm:$0xff]
  %v351 = vpack.c.bf16 %v350, %v350
  %v356 = vunpack.c.l.b16 %v321
  %v357 = vunpack.c.l.b16 %v322
  %v358 = vunpack.c.l.b16 %v323
  %v359 = vunpack.c.l.b16 %v324
  %v360 = vpack.c.b16 %v357, %v356
  %v361 = vpack.c.b16 %v359, %v358
  %v365 = vsel %vm89, %v351, 0
  %367 = vmatprep.subr.bf16.mxu0 0
  %368 = vmatpush1.bf16.msra.mxu0 %v360
  %369 = vmatprep.subr.bf16.mxu0 0
  %370 = vmatpush1.bf16.msra.mxu0 %v361
  %371 = vmatprep.subr.bf16.mxu0 0
  %372 = vmatpush1.bf16.msra.mxu0 0
  %373 = vmatprep.subr.bf16.mxu0 0
  %374 = vmatpush1.bf16.msra.mxu0 0
  %375 = vmatprep.subr.bf16.mxu0 0
  %376 = vmatpush1.bf16.msra.mxu0 0
  %377 = vmatprep.subr.bf16.mxu0 0
  %378 = vmatpush1.bf16.msra.mxu0 0
  %379 = vmatprep.subr.bf16.mxu0 0
  %380 = vmatpush1.bf16.msra.mxu0 0
  %381 = vmatprep.subr.bf16.mxu0 0
  %382 = vmatpush1.bf16.msra.mxu0 0
  %383 = vmatprep.subr.bf16.mxu0 0
  %384 = vmatpush1.bf16.msra.mxu0 0
  %385 = vmatprep.subr.bf16.mxu0 0
  %386 = vmatpush1.bf16.msra.mxu0 0
  %387 = vmatprep.subr.bf16.mxu0 0
  %388 = vmatpush1.bf16.msra.mxu0 0
  %389 = vmatprep.subr.bf16.mxu0 0
  %390 = vmatpush1.bf16.msra.mxu0 0
  %391 = vmatprep.subr.bf16.mxu0 0
  %392 = vmatpush1.bf16.msra.mxu0 0
  %393 = vmatprep.subr.bf16.mxu0 0
  %394 = vmatpush1.bf16.msra.mxu0 0
  %395 = vmatprep.subr.bf16.mxu0 0
  %396 = vmatpush1.bf16.msra.mxu0 0
  %397 = vmatprep.subr.bf16.mxu0 0
  %398 = vmatpush1.bf16.msra.mxu0 0
  %399 = vmatprep.mubr.bf16.mxu0 0
  %400 = vmatmul.mubr.bf16.gmra.mrb[0].mxu0 %v365
  %v401 = vpop.f32.mrb[0].mxu0
  %v402 = vadd.f32 0.0, %v401
  %v403 = vpop.f32.mrb[0].mxu0
  %v404 = vpop.f32.mrb[0].mxu0
  %v405 = vpop.f32.mrb[0].mxu0
  %406 = vdwg.mxu0
  %407 = vrot.lane.b32.xlu0 %v334, 32
  %v408 = vpop.permute.xlu0 %407
  %v410 = vadd.f32 %v402, %v408
  %v412 = vcombine.high %v402, %v402
  %v414 = vunpack.c.l.s4 1966171168
  %v415 = vunpack.c.0.s8 %v414
  %v416 = vlaneseq
  %v417 = vshrl.u32 %v416, 7
  %v418 = vsub.s32 %v415, %v417
  %v419 = vrot.slane %v402, %v418
  %v421 = vunpack.c.l.s4 1966171168
  %v422 = vunpack.c.0.s8 %v421
  %v423 = vlaneseq
  %v424 = vshrl.u32 %v423, 7
  %v425 = vsub.s32 %v422, %v424
  %v426 = vrot.slane %v412, %v425
  %v427 = vcombine.high %v419, %v419
  %v428 = vcombine.high %v426, %v426
  %v430 = vunpack.c.l.s4 1966171168
  %v431 = vunpack.c.0.s8 %v430
  %v432 = vlaneseq
  %v433 = vshrl.u32 %v432, 7
  %v434 = vsub.s32 %v431, %v433
  %v435 = vrot.slane %v419, %v434
  %v437 = vunpack.c.l.s4 1966171168
  %v438 = vunpack.c.0.s8 %v437
  %v439 = vlaneseq
  %v440 = vshrl.u32 %v439, 7
  %v441 = vsub.s32 %v438, %v440
  %v442 = vrot.slane %v426, %v441
  %v444 = vunpack.c.l.s4 1966171168
  %v445 = vunpack.c.0.s8 %v444
  %v446 = vlaneseq
  %v447 = vshrl.u32 %v446, 7
  %v448 = vsub.s32 %v445, %v447
  %v449 = vrot.slane %v427, %v448
  %v451 = vunpack.c.l.s4 1966171168
  %v452 = vunpack.c.0.s8 %v451
  %v453 = vlaneseq
  %v454 = vshrl.u32 %v453, 7
  %v455 = vsub.s32 %v452, %v454
  %v456 = vrot.slane %v428, %v455
  %v457 = vcombine.high %v435, %v435
  %v458 = vcombine.high %v442, %v442
  %v459 = vcombine.high %v449, %v449
  %v460 = vcombine.high %v456, %v456
  %v461 = vlaneseq
  %v462 = vshrl.u32 %v461, 7
  %v463 = vsub.s32 0, %v462
  %v464 = vrot.slane %v435, %v463
  %v465 = vlaneseq
  %v466 = vshrl.u32 %v465, 7
  %v467 = vsub.s32 0, %v466
  %v468 = vrot.slane %v449, %v467
  %v469 = vlaneseq
  %v470 = vshrl.u32 %v469, 7
  %v471 = vsub.s32 0, %v470
  %v472 = vrot.slane %v457, %v471
  %v473 = vlaneseq
  %v474 = vshrl.u32 %v473, 7
  %v475 = vsub.s32 0, %v474
  %v476 = vrot.slane %v459, %v475
  %v477 = vlaneseq
  %v478 = vshrl.u32 %v477, 7
  %v479 = vsub.s32 0, %v478
  %v480 = vrot.slane %v442, %v479
  %v481 = vlaneseq
  %v482 = vshrl.u32 %v481, 7
  %v483 = vsub.s32 0, %v482
  %v484 = vrot.slane %v456, %v483
  %v485 = vlaneseq
  %v486 = vshrl.u32 %v485, 7
  %v487 = vsub.s32 0, %v486
  %v488 = vrot.slane %v458, %v487
  %v489 = vlaneseq
  %v490 = vshrl.u32 %v489, 7
  %v491 = vsub.s32 0, %v490
  %v492 = vrot.slane %v460, %v491
  %v501 = vadd.f32 %v174, %v464
  %v502 = vadd.f32 %v175, %v468
  %v503 = vadd.f32 %v176, %v472
  %v504 = vadd.f32 %v177, %v476
  %v505 = vadd.f32 %v178, %v480
  %v506 = vadd.f32 %v179, %v484
  %v507 = vadd.f32 %v180, %v488
  %v508 = vadd.f32 %v181, %v492
  %v509 = vtanh.pop %v501
  %v510 = vtanh.pop %v502
  %v511 = vtanh.pop %v503
  %v512 = vtanh.pop %v504
  %v513 = vtanh.pop %v505
  %v514 = vtanh.pop %v506
  %v515 = vtanh.pop %v507
  %v516 = vtanh.pop %v508
  %v517 = vmul.f32 %v509, %v340
  %v518 = vmul.f32 %v510, %v340
  %v519 = vmul.f32 %v511, %v340
  %v520 = vmul.f32 %v512, %v340
  %v521 = vmul.f32 %v513, %v340
  %v522 = vmul.f32 %v514, %v340
  %v523 = vmul.f32 %v515, %v340
  %v524 = vmul.f32 %v516, %v340
  %v525 = vsel %vm89, %v517, 0.0
  %526 = vadd.xlane.f32.xlu0 %v525
  %v527 = vpop.xlane.xlu0 %526
  %v528 = vsel %vm89, %v518, 0.0
  %529 = vadd.xlane.f32.xlu0 %v528
  %v530 = vpop.xlane.xlu0 %529
  %v531 = vsel %vm89, %v519, 0.0
  %532 = vadd.xlane.f32.xlu0 %v531
  %v533 = vpop.xlane.xlu0 %532
  %v534 = vsel %vm89, %v520, 0.0
  %535 = vadd.xlane.f32.xlu0 %v534
  %v536 = vpop.xlane.xlu0 %535
  %v537 = vsel %vm89, %v521, 0.0
  %538 = vadd.xlane.f32.xlu0 %v537
  %v539 = vpop.xlane.xlu0 %538
  %v540 = vsel %vm89, %v522, 0.0
  %541 = vadd.xlane.f32.xlu0 %v540
  %v542 = vpop.xlane.xlu0 %541
  %v543 = vsel %vm89, %v523, 0.0
  %544 = vadd.xlane.f32.xlu0 %v543
  %v545 = vpop.xlane.xlu0 %544
  %v546 = vsel %vm89, %v524, 0.0
  %547 = vadd.xlane.f32.xlu0 %v546
  %v548 = vpop.xlane.xlu0 %547
  %v557 = vlaneseq
  %v558 = vand.u32 %v557, 127
  %v559 = vlaneseq
  %v560 = vshrl.u32 %v559, 7
  %v561 = vsub.s32 %v558, %v560
  %v562 = vrot.slane %v527, %v561
  %v563 = vlaneseq
  %v564 = vshrl.u32 %v563, 7
  %v565 = vsub.s32 %v558, %v564
  %v566 = vrot.slane %v530, %v565
  %v567 = vlaneseq
  %v568 = vshrl.u32 %v567, 7
  %v569 = vsub.s32 %v558, %v568
  %v570 = vrot.slane %v533, %v569
  %v571 = vlaneseq
  %v572 = vshrl.u32 %v571, 7
  %v573 = vsub.s32 %v558, %v572
  %v574 = vrot.slane %v536, %v573
  %v575 = vlaneseq
  %v576 = vshrl.u32 %v575, 7
  %v577 = vsub.s32 %v558, %v576
  %v578 = vrot.slane %v539, %v577
  %v579 = vlaneseq
  %v580 = vshrl.u32 %v579, 7
  %v581 = vsub.s32 %v558, %v580
  %v582 = vrot.slane %v542, %v581
  %v583 = vlaneseq
  %v584 = vshrl.u32 %v583, 7
  %v585 = vsub.s32 %v558, %v584
  %v586 = vrot.slane %v545, %v585
  %v587 = vlaneseq
  %v588 = vshrl.u32 %v587, 7
  %v589 = vsub.s32 %v558, %v588
  %v590 = vrot.slane %v548, %v589
  %vm591 = vcmask 1041409
  %v592 = vsel %vm591, %v566, %v562
  %vm593 = vcmask 1042434
  %v594 = vsel %vm593, %v570, %v592
  %vm595 = vcmask 1043459
  %v596 = vsel %vm595, %v574, %v594
  %vm597 = vcmask 1044484
  %v598 = vsel %vm597, %v578, %v596
  %vm599 = vcmask 1045509
  %v600 = vsel %vm599, %v582, %v598
  %vm601 = vcmask 1046534
  %v602 = vsel %vm601, %v586, %v600
  %vm603 = vcmask 1047559
  %v604 = vsel %vm603, %v590, %v602
  %vm606 = vcmask 64512
  %v607 = vsel %vm606, %v604, -inf
  %608 = vmax.xlane.f32.xlu0 %v607
  %v609 = vpop.xlane.xlu0 %608
  %v611 = vlaneseq
  %v612 = vshrl.u32 %v611, 7
  %v613 = vsub.s32 0, %v612
  %v614 = vrot.slane %v609, %v613
  %v615 = vlaneseq
  %v616 = vshrl.u32 %v615, 7
  %v617 = vsub.s32 1, %v616
  %v618 = vrot.slane %v609, %v617
  %v619 = vlaneseq
  %v620 = vshrl.u32 %v619, 7
  %v621 = vsub.s32 2, %v620
  %v622 = vrot.slane %v609, %v621
  %v623 = vlaneseq
  %v624 = vshrl.u32 %v623, 7
  %v625 = vsub.s32 3, %v624
  %v626 = vrot.slane %v609, %v625
  %v627 = vlaneseq
  %v628 = vshrl.u32 %v627, 7
  %v629 = vsub.s32 4, %v628
  %v630 = vrot.slane %v609, %v629
  %v631 = vlaneseq
  %v632 = vshrl.u32 %v631, 7
  %v633 = vsub.s32 5, %v632
  %v634 = vrot.slane %v609, %v633
  %v635 = vlaneseq
  %v636 = vshrl.u32 %v635, 7
  %v637 = vsub.s32 6, %v636
  %v638 = vrot.slane %v609, %v637
  %v639 = vlaneseq
  %v640 = vshrl.u32 %v639, 7
  %v641 = vsub.s32 7, %v640
  %v642 = vrot.slane %v609, %v641
  %v651 = vsub.f32 %v527, %v614
  %v652 = vsub.f32 %v530, %v618
  %v653 = vsub.f32 %v533, %v622
  %v654 = vsub.f32 %v536, %v626
  %v655 = vsub.f32 %v539, %v630
  %v656 = vsub.f32 %v542, %v634
  %v657 = vsub.f32 %v545, %v638
  %v658 = vsub.f32 %v548, %v642
  %v659 = vmul.f32 %v651, 1.442695
  %v660 = vpow.pop %v659
  %v661 = vmul.f32 %v652, 1.442695
  %v662 = vpow.pop %v661
  %v663 = vmul.f32 %v653, 1.442695
  %v664 = vpow.pop %v663
  %v665 = vmul.f32 %v654, 1.442695
  %v666 = vpow.pop %v665
  %v667 = vmul.f32 %v655, 1.442695
  %v668 = vpow.pop %v667
  %v669 = vmul.f32 %v656, 1.442695
  %v670 = vpow.pop %v669
  %v671 = vmul.f32 %v657, 1.442695
  %v672 = vpow.pop %v671
  %v673 = vmul.f32 %v658, 1.442695
  %v674 = vpow.pop %v673
  %683 = vset.pattern.permute.xlu0 0
  %684 = vperm.xlu0 %683, %v660
  %v685 = vpop.permute.xlu0 %684
  %686 = vset.pattern.permute.xlu0 0
  %687 = vperm.xlu0 %686, %v662
  %v688 = vpop.permute.xlu0 %687
  %689 = vset.pattern.permute.xlu0 0
  %690 = vperm.xlu0 %689, %v664
  %v691 = vpop.permute.xlu0 %690
  %692 = vset.pattern.permute.xlu0 0
  %693 = vperm.xlu0 %692, %v666
  %v694 = vpop.permute.xlu0 %693
  %695 = vset.pattern.permute.xlu0 0
  %696 = vperm.xlu0 %695, %v668
  %v697 = vpop.permute.xlu0 %696
  %698 = vset.pattern.permute.xlu0 0
  %699 = vperm.xlu0 %698, %v670
  %v700 = vpop.permute.xlu0 %699
  %701 = vset.pattern.permute.xlu0 0
  %702 = vperm.xlu0 %701, %v672
  %v703 = vpop.permute.xlu0 %702
  %704 = vset.pattern.permute.xlu0 0
  %705 = vperm.xlu0 %704, %v674
  %v706 = vpop.permute.xlu0 %705
  %v707 = vlaneseq
  %v708 = vshrl.u32 %v707, 7
  %v709 = vsub.s32 %v558, %v708
  %v710 = vrot.slane %v685, %v709
  %v711 = vlaneseq
  %v712 = vshrl.u32 %v711, 7
  %v713 = vsub.s32 %v558, %v712
  %v714 = vrot.slane %v688, %v713
  %v715 = vlaneseq
  %v716 = vshrl.u32 %v715, 7
  %v717 = vsub.s32 %v558, %v716
  %v718 = vrot.slane %v691, %v717
  %v719 = vlaneseq
  %v720 = vshrl.u32 %v719, 7
  %v721 = vsub.s32 %v558, %v720
  %v722 = vrot.slane %v694, %v721
  %v723 = vlaneseq
  %v724 = vshrl.u32 %v723, 7
  %v725 = vsub.s32 %v558, %v724
  %v726 = vrot.slane %v697, %v725
  %v727 = vlaneseq
  %v728 = vshrl.u32 %v727, 7
  %v729 = vsub.s32 %v558, %v728
  %v730 = vrot.slane %v700, %v729
  %v731 = vlaneseq
  %v732 = vshrl.u32 %v731, 7
  %v733 = vsub.s32 %v558, %v732
  %v734 = vrot.slane %v703, %v733
  %v735 = vlaneseq
  %v736 = vshrl.u32 %v735, 7
  %v737 = vsub.s32 %v558, %v736
  %v738 = vrot.slane %v706, %v737
  %v739 = vsel %vm591, %v714, %v710
  %v740 = vsel %vm593, %v718, %v739
  %v741 = vsel %vm595, %v722, %v740
  %v742 = vsel %vm597, %v726, %v741
  %v743 = vsel %vm599, %v730, %v742
  %v744 = vsel %vm601, %v734, %v743
  %v745 = vsel %vm603, %v738, %v744
  %v747 = vsel %vm606, %v745, 0.0
  %748 = vadd.xlane.f32.xlu0 %v747
  %v749 = vpop.xlane.xlu0 %748
  %v750 = vrcp.pop %v749
  %v759 = vmul.f32 %v685, %v342
  %v760 = vmul.f32 %v688, %v343
  %v761 = vmul.f32 %v691, %v344
  %v762 = vmul.f32 %v694, %v345
  %v763 = vmul.f32 %v697, %v346
  %v764 = vmul.f32 %v700, %v347
  %v765 = vmul.f32 %v703, %v348
  %v766 = vmul.f32 %v706, %v349
  %v767 = vsel %vm89, %v759, 0.0
  %v768 = vrot.slane %v767, 4
  %v769 = vadd.f32 %v767, %v768
  %v770 = vrot.slane %v769, 2
  %v771 = vadd.f32 %v769, %v770
  %v772 = vrot.slane %v771, 1
  %v773 = vadd.f32 %v771, %v772
  %v774 = vsel %vm89, %v760, 0.0
  %v775 = vrot.slane %v774, 4
  %v776 = vadd.f32 %v774, %v775
  %v777 = vrot.slane %v776, 2
  %v778 = vadd.f32 %v776, %v777
  %v779 = vrot.slane %v778, 1
  %v780 = vadd.f32 %v778, %v779
  %v781 = vsel %vm89, %v761, 0.0
  %v782 = vrot.slane %v781, 4
  %v783 = vadd.f32 %v781, %v782
  %v784 = vrot.slane %v783, 2
  %v785 = vadd.f32 %v783, %v784
  %v786 = vrot.slane %v785, 1
  %v787 = vadd.f32 %v785, %v786
  %v788 = vsel %vm89, %v762, 0.0
  %v789 = vrot.slane %v788, 4
  %v790 = vadd.f32 %v788, %v789
  %v791 = vrot.slane %v790, 2
  %v792 = vadd.f32 %v790, %v791
  %v793 = vrot.slane %v792, 1
  %v794 = vadd.f32 %v792, %v793
  %v795 = vsel %vm89, %v763, 0.0
  %v796 = vrot.slane %v795, 4
  %v797 = vadd.f32 %v795, %v796
  %v798 = vrot.slane %v797, 2
  %v799 = vadd.f32 %v797, %v798
  %v800 = vrot.slane %v799, 1
  %v801 = vadd.f32 %v799, %v800
  %v802 = vsel %vm89, %v764, 0.0
  %v803 = vrot.slane %v802, 4
  %v804 = vadd.f32 %v802, %v803
  %v805 = vrot.slane %v804, 2
  %v806 = vadd.f32 %v804, %v805
  %v807 = vrot.slane %v806, 1
  %v808 = vadd.f32 %v806, %v807
  %v809 = vsel %vm89, %v765, 0.0
  %v810 = vrot.slane %v809, 4
  %v811 = vadd.f32 %v809, %v810
  %v812 = vrot.slane %v811, 2
  %v813 = vadd.f32 %v811, %v812
  %v814 = vrot.slane %v813, 1
  %v815 = vadd.f32 %v813, %v814
  %v816 = vsel %vm89, %v766, 0.0
  %v817 = vrot.slane %v816, 4
  %v818 = vadd.f32 %v816, %v817
  %v819 = vrot.slane %v818, 2
  %v820 = vadd.f32 %v818, %v819
  %v821 = vrot.slane %v820, 1
  %v822 = vadd.f32 %v820, %v821
  %v824 = vrot.slane %v750, 1
  %v825 = vrot.slane %v750, 2
  %v826 = vrot.slane %v750, 3
  %v827 = vrot.slane %v750, 4
  %v828 = vrot.slane %v750, 5
  %v829 = vrot.slane %v750, 6
  %v830 = vrot.slane %v750, 7
  %v839 = vmul.f32 %v773, %v750
  %v840 = vmul.f32 %v780, %v824
  %v841 = vmul.f32 %v787, %v825
  %v842 = vmul.f32 %v794, %v826
  %v843 = vmul.f32 %v801, %v827
  %v844 = vmul.f32 %v808, %v828
  %v845 = vmul.f32 %v815, %v829
  %v846 = vmul.f32 %v822, %v830
  %v847 = vld [vmem:[#allocation3] sm:$0xff]
  %v848 = vpack.c.bf16 %v839, %v839
  %v849 = vpack.c.bf16 %v840, %v840
  %v850 = vpack.c.bf16 %v841, %v841
  %v851 = vpack.c.bf16 %v842, %v842
  %v852 = vpack.c.bf16 %v843, %v843
  %v853 = vpack.c.bf16 %v844, %v844
  %v854 = vpack.c.bf16 %v845, %v845
  %v855 = vpack.c.bf16 %v846, %v846
  %v864 = vunpack.c.l.b16 %v848
  %v865 = vunpack.c.l.b16 %v849
  %v866 = vunpack.c.l.b16 %v850
  %v867 = vunpack.c.l.b16 %v851
  %v868 = vunpack.c.l.b16 %v852
  %v869 = vunpack.c.l.b16 %v853
  %v870 = vunpack.c.l.b16 %v854
  %v871 = vunpack.c.l.b16 %v855
  %v872 = vrot.slane %v865, 7
  %v873 = vsel %vm591, %v872, %v864
  %v874 = vrot.slane %v866, 6
  %v875 = vsel %vm593, %v874, %v873
  %v876 = vrot.slane %v867, 5
  %v877 = vsel %vm595, %v876, %v875
  %v878 = vrot.slane %v868, 4
  %v879 = vsel %vm597, %v878, %v877
  %v880 = vrot.slane %v869, 3
  %v881 = vsel %vm599, %v880, %v879
  %v882 = vrot.slane %v870, 2
  %v883 = vsel %vm601, %v882, %v881
  %v884 = vrot.slane %v871, 1
  %v885 = vsel %vm603, %v884, %v883
  %v886 = vpack.c.b16 %v885, %v885
  %v891 = vunpack.c.l.b16 %v325
  %v892 = vunpack.c.l.b16 %v326
  %v893 = vunpack.c.l.b16 %v327
  %v894 = vunpack.c.l.b16 %v328
  %v895 = vpack.c.b16 %v892, %v891
  %v896 = vpack.c.b16 %v894, %v893
  %v900 = vsel %vm89, %v886, 0
  %902 = vmatprep.subr.bf16.mxu0 0
  %903 = vmatpush1.bf16.msra.mxu0 %v895
  %904 = vmatprep.subr.bf16.mxu0 0
  %905 = vmatpush1.bf16.msra.mxu0 %v896
  %906 = vmatprep.subr.bf16.mxu0 0
  %907 = vmatpush1.bf16.msra.mxu0 0
  %908 = vmatprep.subr.bf16.mxu0 0
  %909 = vmatpush1.bf16.msra.mxu0 0
  %910 = vmatprep.subr.bf16.mxu0 0
  %911 = vmatpush1.bf16.msra.mxu0 0
  %912 = vmatprep.subr.bf16.mxu0 0
  %913 = vmatpush1.bf16.msra.mxu0 0
  %914 = vmatprep.subr.bf16.mxu0 0
  %915 = vmatpush1.bf16.msra.mxu0 0
  %916 = vmatprep.subr.bf16.mxu0 0
  %917 = vmatpush1.bf16.msra.mxu0 0
  %918 = vmatprep.subr.bf16.mxu0 0
  %919 = vmatpush1.bf16.msra.mxu0 0
  %920 = vmatprep.subr.bf16.mxu0 0
  %921 = vmatpush1.bf16.msra.mxu0 0
  %922 = vmatprep.subr.bf16.mxu0 0
  %923 = vmatpush1.bf16.msra.mxu0 0
  %924 = vmatprep.subr.bf16.mxu0 0
  %925 = vmatpush1.bf16.msra.mxu0 0
  %926 = vmatprep.subr.bf16.mxu0 0
  %927 = vmatpush1.bf16.msra.mxu0 0
  %928 = vmatprep.subr.bf16.mxu0 0
  %929 = vmatpush1.bf16.msra.mxu0 0
  %930 = vmatprep.subr.bf16.mxu0 0
  %931 = vmatpush1.bf16.msra.mxu0 0
  %932 = vmatprep.subr.bf16.mxu0 0
  %933 = vmatpush1.bf16.msra.mxu0 0
  %934 = vmatprep.mubr.bf16.mxu0 0
  %935 = vmatmul.mubr.bf16.gmra.mrb[0].mxu0 %v900
  %v936 = vpop.f32.mrb[0].mxu0
  %v937 = vadd.f32 0.0, %v936
  %v938 = vpop.f32.mrb[0].mxu0
  %v939 = vpop.f32.mrb[0].mxu0
  %v940 = vpop.f32.mrb[0].mxu0
  %941 = vdwg.mxu0
  %v942 = vadd.f32 %v847, %v937
  %944 = vrot.lane.b32.xlu0 %v410, 96
  %v945 = vpop.permute.xlu0 %944
  %v947 = vadd.f32 %v942, %v945
  %v948 = vxor.u32 %v947, 2147483648
  %v949 = vmul.f32 %v948, 1.442695
  %v950 = vpow.pop %v949
  %v951 = vadd.f32 %v950, 1.0
  %v952 = vrcp.pop %v951
  %v953 = vmul.f32 1.0, %v952
  %954 = vrot.lane.b32.xlu0 %v410, 32
  %v955 = vpop.permute.xlu0 %954
  %v957 = vmul.f32 %v953, %v955
  %959 = vrot.lane.b32.xlu0 %v957, 64
  %v960 = vpop.permute.xlu0 %959
  %v962 = vadd.f32 %v942, %v960
  %v963 = vtanh.pop %v962
  %v964 = vsub.f32 1.0, %v953
  %966 = vrot.lane.b32.xlu0 %v963, 96
  %v967 = vpop.permute.xlu0 %966
  %v969 = vmul.f32 %v964, %v967
  %971 = vrot.lane.b32.xlu0 %v350, 32
  %v972 = vpop.permute.xlu0 %971
  %v974 = vmul.f32 %v953, %v972
  %v975 = vadd.f32 %v969, %v974
  %977 = vrot.lane.b32.xlu0 %v975, 96
  %v978 = vpop.permute.xlu0 %977
  %980 = vst.msk [vmem:[#allocation2] sm:$0xff] %vm89, %v978
  %v981 = vpack.c.bf16 %v975, %v975
  %983 = vrot.lane.b32.xlu0 %v981, 96
  %v984 = vpop.permute.xlu0 %983
  %v986 = vsel %vm89, %v984, 0
  %988 = vmatprep.subr.bf16.mxu0 0
  %989 = vmatpush1.bf16.msra.mxu0 %v360
  %990 = vmatprep.subr.bf16.mxu0 0
  %991 = vmatpush1.bf16.msra.mxu0 %v361
  %992 = vmatprep.subr.bf16.mxu0 0
  %993 = vmatpush1.bf16.msra.mxu0 0
  %994 = vmatprep.subr.bf16.mxu0 0
  %995 = vmatpush1.bf16.msra.mxu0 0
  %996 = vmatprep.subr.bf16.mxu0 0
  %997 = vmatpush1.bf16.msra.mxu0 0
  %998 = vmatprep.subr.bf16.mxu0 0
  %999 = vmatpush1.bf16.msra.mxu0 0
  %1000 = vmatprep.subr.bf16.mxu0 0
  %1001 = vmatpush1.bf16.msra.mxu0 0
  %1002 = vmatprep.subr.bf16.mxu0 0
  %1003 = vmatpush1.bf16.msra.mxu0 0
  %1004 = vmatprep.subr.bf16.mxu0 0
  %1005 = vmatpush1.bf16.msra.mxu0 0
  %1006 = vmatprep.subr.bf16.mxu0 0
  %1007 = vmatpush1.bf16.msra.mxu0 0
  %1008 = vmatprep.subr.bf16.mxu0 0
  %1009 = vmatpush1.bf16.msra.mxu0 0
  %1010 = vmatprep.subr.bf16.mxu0 0
  %1011 = vmatpush1.bf16.msra.mxu0 0
  %1012 = vmatprep.subr.bf16.mxu0 0
  %1013 = vmatpush1.bf16.msra.mxu0 0
  %1014 = vmatprep.subr.bf16.mxu0 0
  %1015 = vmatpush1.bf16.msra.mxu0 0
  %1016 = vmatprep.subr.bf16.mxu0 0
  %1017 = vmatpush1.bf16.msra.mxu0 0
  %1018 = vmatprep.subr.bf16.mxu0 0
  %1019 = vmatpush1.bf16.msra.mxu0 0
  %1020 = vmatprep.mubr.bf16.mxu0 0
  %1021 = vmatmul.mubr.bf16.gmra.mrb[0].mxu0 %v986
  %v1022 = vpop.f32.mrb[0].mxu0
  %v1023 = vadd.f32 0.0, %v1022
  %v1024 = vpop.f32.mrb[0].mxu0
  %v1025 = vpop.f32.mrb[0].mxu0
  %v1026 = vpop.f32.mrb[0].mxu0
  %1027 = vdwg.mxu0
  %v1028 = vadd.f32 %v1023, %v408
  %v1030 = vcombine.high %v1023, %v1023
  %v1032 = vunpack.c.l.s4 1966171168
  %v1033 = vunpack.c.0.s8 %v1032
  %v1034 = vlaneseq
  %v1035 = vshrl.u32 %v1034, 7
  %v1036 = vsub.s32 %v1033, %v1035
  %v1037 = vrot.slane %v1023, %v1036
  %v1039 = vunpack.c.l.s4 1966171168
  %v1040 = vunpack.c.0.s8 %v1039
  %v1041 = vlaneseq
  %v1042 = vshrl.u32 %v1041, 7
  %v1043 = vsub.s32 %v1040, %v1042
  %v1044 = vrot.slane %v1030, %v1043
  %v1045 = vcombine.high %v1037, %v1037
  %v1046 = vcombine.high %v1044, %v1044
  %v1048 = vunpack.c.l.s4 1966171168
  %v1049 = vunpack.c.0.s8 %v1048
  %v1050 = vlaneseq
  %v1051 = vshrl.u32 %v1050, 7
  %v1052 = vsub.s32 %v1049, %v1051
  %v1053 = vrot.slane %v1037, %v1052
  %v1055 = vunpack.c.l.s4 1966171168
  %v1056 = vunpack.c.0.s8 %v1055
  %v1057 = vlaneseq
  %v1058 = vshrl.u32 %v1057, 7
  %v1059 = vsub.s32 %v1056, %v1058
  %v1060 = vrot.slane %v1044, %v1059
  %v1062 = vunpack.c.l.s4 1966171168
  %v1063 = vunpack.c.0.s8 %v1062
  %v1064 = vlaneseq
  %v1065 = vshrl.u32 %v1064, 7
  %v1066 = vsub.s32 %v1063, %v1065
  %v1067 = vrot.slane %v1045, %v1066
  %v1069 = vunpack.c.l.s4 1966171168
  %v1070 = vunpack.c.0.s8 %v1069
  %v1071 = vlaneseq
  %v1072 = vshrl.u32 %v1071, 7
  %v1073 = vsub.s32 %v1070, %v1072
  %v1074 = vrot.slane %v1046, %v1073
  %v1075 = vcombine.high %v1053, %v1053
  %v1076 = vcombine.high %v1060, %v1060
  %v1077 = vcombine.high %v1067, %v1067
  %v1078 = vcombine.high %v1074, %v1074
  %v1079 = vlaneseq
  %v1080 = vshrl.u32 %v1079, 7
  %v1081 = vsub.s32 0, %v1080
  %v1082 = vrot.slane %v1053, %v1081
  %v1083 = vlaneseq
  %v1084 = vshrl.u32 %v1083, 7
  %v1085 = vsub.s32 0, %v1084
  %v1086 = vrot.slane %v1067, %v1085
  %v1087 = vlaneseq
  %v1088 = vshrl.u32 %v1087, 7
  %v1089 = vsub.s32 0, %v1088
  %v1090 = vrot.slane %v1075, %v1089
  %v1091 = vlaneseq
  %v1092 = vshrl.u32 %v1091, 7
  %v1093 = vsub.s32 0, %v1092
  %v1094 = vrot.slane %v1077, %v1093
  %v1095 = vlaneseq
  %v1096 = vshrl.u32 %v1095, 7
  %v1097 = vsub.s32 0, %v1096
  %v1098 = vrot.slane %v1060, %v1097
  %v1099 = vlaneseq
  %v1100 = vshrl.u32 %v1099, 7
  %v1101 = vsub.s32 0, %v1100
  %v1102 = vrot.slane %v1074, %v1101
  %v1103 = vlaneseq
  %v1104 = vshrl.u32 %v1103, 7
  %v1105 = vsub.s32 0, %v1104
  %v1106 = vrot.slane %v1076, %v1105
  %v1107 = vlaneseq
  %v1108 = vshrl.u32 %v1107, 7
  %v1109 = vsub.s32 0, %v1108
  %v1110 = vrot.slane %v1078, %v1109
  %v1119 = vadd.f32 %v174, %v1082
  %v1120 = vadd.f32 %v175, %v1086
  %v1121 = vadd.f32 %v176, %v1090
  %v1122 = vadd.f32 %v177, %v1094
  %v1123 = vadd.f32 %v178, %v1098
  %v1124 = vadd.f32 %v179, %v1102
  %v1125 = vadd.f32 %v180, %v1106
  %v1126 = vadd.f32 %v181, %v1110
  %v1127 = vtanh.pop %v1119
  %v1128 = vtanh.pop %v1120
  %v1129 = vtanh.pop %v1121
  %v1130 = vtanh.pop %v1122
  %v1131 = vtanh.pop %v1123
  %v1132 = vtanh.pop %v1124
  %v1133 = vtanh.pop %v1125
  %v1134 = vtanh.pop %v1126
  %v1135 = vmul.f32 %v1127, %v340
  %v1136 = vmul.f32 %v1128, %v340
  %v1137 = vmul.f32 %v1129, %v340
  %v1138 = vmul.f32 %v1130, %v340
  %v1139 = vmul.f32 %v1131, %v340
  %v1140 = vmul.f32 %v1132, %v340
  %v1141 = vmul.f32 %v1133, %v340
  %v1142 = vmul.f32 %v1134, %v340
  %v1143 = vsel %vm89, %v1135, 0.0
  %1144 = vadd.xlane.f32.xlu0 %v1143
  %v1145 = vpop.xlane.xlu0 %1144
  %v1146 = vsel %vm89, %v1136, 0.0
  %1147 = vadd.xlane.f32.xlu0 %v1146
  %v1148 = vpop.xlane.xlu0 %1147
  %v1149 = vsel %vm89, %v1137, 0.0
  %1150 = vadd.xlane.f32.xlu0 %v1149
  %v1151 = vpop.xlane.xlu0 %1150
  %v1152 = vsel %vm89, %v1138, 0.0
  %1153 = vadd.xlane.f32.xlu0 %v1152
  %v1154 = vpop.xlane.xlu0 %1153
  %v1155 = vsel %vm89, %v1139, 0.0
  %1156 = vadd.xlane.f32.xlu0 %v1155
  %v1157 = vpop.xlane.xlu0 %1156
  %v1158 = vsel %vm89, %v1140, 0.0
  %1159 = vadd.xlane.f32.xlu0 %v1158
  %v1160 = vpop.xlane.xlu0 %1159
  %v1161 = vsel %vm89, %v1141, 0.0
  %1162 = vadd.xlane.f32.xlu0 %v1161
  %v1163 = vpop.xlane.xlu0 %1162
  %v1164 = vsel %vm89, %v1142, 0.0
  %1165 = vadd.xlane.f32.xlu0 %v1164
  %v1166 = vpop.xlane.xlu0 %1165
  %v1175 = vlaneseq
  %v1176 = vshrl.u32 %v1175, 7
  %v1177 = vsub.s32 %v558, %v1176
  %v1178 = vrot.slane %v1145, %v1177
  %v1179 = vlaneseq
  %v1180 = vshrl.u32 %v1179, 7
  %v1181 = vsub.s32 %v558, %v1180
  %v1182 = vrot.slane %v1148, %v1181
  %v1183 = vlaneseq
  %v1184 = vshrl.u32 %v1183, 7
  %v1185 = vsub.s32 %v558, %v1184
  %v1186 = vrot.slane %v1151, %v1185
  %v1187 = vlaneseq
  %v1188 = vshrl.u32 %v1187, 7
  %v1189 = vsub.s32 %v558, %v1188
  %v1190 = vrot.slane %v1154, %v1189
  %v1191 = vlaneseq
  %v1192 = vshrl.u32 %v1191, 7
  %v1193 = vsub.s32 %v558, %v1192
  %v1194 = vrot.slane %v1157, %v1193
  %v1195 = vlaneseq
  %v1196 = vshrl.u32 %v1195, 7
  %v1197 = vsub.s32 %v558, %v1196
  %v1198 = vrot.slane %v1160, %v1197
  %v1199 = vlaneseq
  %v1200 = vshrl.u32 %v1199, 7
  %v1201 = vsub.s32 %v558, %v1200
  %v1202 = vrot.slane %v1163, %v1201
  %v1203 = vlaneseq
  %v1204 = vshrl.u32 %v1203, 7
  %v1205 = vsub.s32 %v558, %v1204
  %v1206 = vrot.slane %v1166, %v1205
  %v1207 = vsel %vm591, %v1182, %v1178
  %v1208 = vsel %vm593, %v1186, %v1207
  %v1209 = vsel %vm595, %v1190, %v1208
  %v1210 = vsel %vm597, %v1194, %v1209
  %v1211 = vsel %vm599, %v1198, %v1210
  %v1212 = vsel %vm601, %v1202, %v1211
  %v1213 = vsel %vm603, %v1206, %v1212
  %v1215 = vsel %vm606, %v1213, -inf
  %1216 = vmax.xlane.f32.xlu0 %v1215
  %v1217 = vpop.xlane.xlu0 %1216
  %v1219 = vlaneseq
  %v1220 = vshrl.u32 %v1219, 7
  %v1221 = vsub.s32 0, %v1220
  %v1222 = vrot.slane %v1217, %v1221
  %v1223 = vlaneseq
  %v1224 = vshrl.u32 %v1223, 7
  %v1225 = vsub.s32 1, %v1224
  %v1226 = vrot.slane %v1217, %v1225
  %v1227 = vlaneseq
  %v1228 = vshrl.u32 %v1227, 7
  %v1229 = vsub.s32 2, %v1228
  %v1230 = vrot.slane %v1217, %v1229
  %v1231 = vlaneseq
  %v1232 = vshrl.u32 %v1231, 7
  %v1233 = vsub.s32 3, %v1232
  %v1234 = vrot.slane %v1217, %v1233
  %v1235 = vlaneseq
  %v1236 = vshrl.u32 %v1235, 7
  %v1237 = vsub.s32 4, %v1236
  %v1238 = vrot.slane %v1217, %v1237
  %v1239 = vlaneseq
  %v1240 = vshrl.u32 %v1239, 7
  %v1241 = vsub.s32 5, %v1240
  %v1242 = vrot.slane %v1217, %v1241
  %v1243 = vlaneseq
  %v1244 = vshrl.u32 %v1243, 7
  %v1245 = vsub.s32 6, %v1244
  %v1246 = vrot.slane %v1217, %v1245
  %v1247 = vlaneseq
  %v1248 = vshrl.u32 %v1247, 7
  %v1249 = vsub.s32 7, %v1248
  %v1250 = vrot.slane %v1217, %v1249
  %v1259 = vsub.f32 %v1145, %v1222
  %v1260 = vsub.f32 %v1148, %v1226
  %v1261 = vsub.f32 %v1151, %v1230
  %v1262 = vsub.f32 %v1154, %v1234
  %v1263 = vsub.f32 %v1157, %v1238
  %v1264 = vsub.f32 %v1160, %v1242
  %v1265 = vsub.f32 %v1163, %v1246
  %v1266 = vsub.f32 %v1166, %v1250
  %v1267 = vmul.f32 %v1259, 1.442695
  %v1268 = vpow.pop %v1267
  %v1269 = vmul.f32 %v1260, 1.442695
  %v1270 = vpow.pop %v1269
  %v1271 = vmul.f32 %v1261, 1.442695
  %v1272 = vpow.pop %v1271
  %v1273 = vmul.f32 %v1262, 1.442695
  %v1274 = vpow.pop %v1273
  %v1275 = vmul.f32 %v1263, 1.442695
  %v1276 = vpow.pop %v1275
  %v1277 = vmul.f32 %v1264, 1.442695
  %v1278 = vpow.pop %v1277
  %v1279 = vmul.f32 %v1265, 1.442695
  %v1280 = vpow.pop %v1279
  %v1281 = vmul.f32 %v1266, 1.442695
  %v1282 = vpow.pop %v1281
  %1291 = vset.pattern.permute.xlu0 0
  %1292 = vperm.xlu0 %1291, %v1268
  %v1293 = vpop.permute.xlu0 %1292
  %1294 = vset.pattern.permute.xlu0 0
  %1295 = vperm.xlu0 %1294, %v1270
  %v1296 = vpop.permute.xlu0 %1295
  %1297 = vset.pattern.permute.xlu0 0
  %1298 = vperm.xlu0 %1297, %v1272
  %v1299 = vpop.permute.xlu0 %1298
  %1300 = vset.pattern.permute.xlu0 0
  %1301 = vperm.xlu0 %1300, %v1274
  %v1302 = vpop.permute.xlu0 %1301
  %1303 = vset.pattern.permute.xlu0 0
  %1304 = vperm.xlu0 %1303, %v1276
  %v1305 = vpop.permute.xlu0 %1304
  %1306 = vset.pattern.permute.xlu0 0
  %1307 = vperm.xlu0 %1306, %v1278
  %v1308 = vpop.permute.xlu0 %1307
  %1309 = vset.pattern.permute.xlu0 0
  %1310 = vperm.xlu0 %1309, %v1280
  %v1311 = vpop.permute.xlu0 %1310
  %1312 = vset.pattern.permute.xlu0 0
  %1313 = vperm.xlu0 %1312, %v1282
  %v1314 = vpop.permute.xlu0 %1313
  %v1315 = vlaneseq
  %v1316 = vshrl.u32 %v1315, 7
  %v1317 = vsub.s32 %v558, %v1316
  %v1318 = vrot.slane %v1293, %v1317
  %v1319 = vlaneseq
  %v1320 = vshrl.u32 %v1319, 7
  %v1321 = vsub.s32 %v558, %v1320
  %v1322 = vrot.slane %v1296, %v1321
  %v1323 = vlaneseq
  %v1324 = vshrl.u32 %v1323, 7
  %v1325 = vsub.s32 %v558, %v1324
  %v1326 = vrot.slane %v1299, %v1325
  %v1327 = vlaneseq
  %v1328 = vshrl.u32 %v1327, 7
  %v1329 = vsub.s32 %v558, %v1328
  %v1330 = vrot.slane %v1302, %v1329
  %v1331 = vlaneseq
  %v1332 = vshrl.u32 %v1331, 7
  %v1333 = vsub.s32 %v558, %v1332
  %v1334 = vrot.slane %v1305, %v1333
  %v1335 = vlaneseq
  %v1336 = vshrl.u32 %v1335, 7
  %v1337 = vsub.s32 %v558, %v1336
  %v1338 = vrot.slane %v1308, %v1337
  %v1339 = vlaneseq
  %v1340 = vshrl.u32 %v1339, 7
  %v1341 = vsub.s32 %v558, %v1340
  %v1342 = vrot.slane %v1311, %v1341
  %v1343 = vlaneseq
  %v1344 = vshrl.u32 %v1343, 7
  %v1345 = vsub.s32 %v558, %v1344
  %v1346 = vrot.slane %v1314, %v1345
  %v1347 = vsel %vm591, %v1322, %v1318
  %v1348 = vsel %vm593, %v1326, %v1347
  %v1349 = vsel %vm595, %v1330, %v1348
  %v1350 = vsel %vm597, %v1334, %v1349
  %v1351 = vsel %vm599, %v1338, %v1350
  %v1352 = vsel %vm601, %v1342, %v1351
  %v1353 = vsel %vm603, %v1346, %v1352
  %v1355 = vsel %vm606, %v1353, 0.0
  %1356 = vadd.xlane.f32.xlu0 %v1355
  %v1357 = vpop.xlane.xlu0 %1356
  %v1358 = vrcp.pop %v1357
  %v1367 = vmul.f32 %v1293, %v342
  %v1368 = vmul.f32 %v1296, %v343
  %v1369 = vmul.f32 %v1299, %v344
  %v1370 = vmul.f32 %v1302, %v345
  %v1371 = vmul.f32 %v1305, %v346
  %v1372 = vmul.f32 %v1308, %v347
  %v1373 = vmul.f32 %v1311, %v348
  %v1374 = vmul.f32 %v1314, %v349
  %v1375 = vsel %vm89, %v1367, 0.0
  %v1376 = vrot.slane %v1375, 4
  %v1377 = vadd.f32 %v1375, %v1376
  %v1378 = vrot.slane %v1377, 2
  %v1379 = vadd.f32 %v1377, %v1378
  %v1380 = vrot.slane %v1379, 1
  %v1381 = vadd.f32 %v1379, %v1380
  %v1382 = vsel %vm89, %v1368, 0.0
  %v1383 = vrot.slane %v1382, 4
  %v1384 = vadd.f32 %v1382, %v1383
  %v1385 = vrot.slane %v1384, 2
  %v1386 = vadd.f32 %v1384, %v1385
  %v1387 = vrot.slane %v1386, 1
  %v1388 = vadd.f32 %v1386, %v1387
  %v1389 = vsel %vm89, %v1369, 0.0
  %v1390 = vrot.slane %v1389, 4
  %v1391 = vadd.f32 %v1389, %v1390
  %v1392 = vrot.slane %v1391, 2
  %v1393 = vadd.f32 %v1391, %v1392
  %v1394 = vrot.slane %v1393, 1
  %v1395 = vadd.f32 %v1393, %v1394
  %v1396 = vsel %vm89, %v1370, 0.0
  %v1397 = vrot.slane %v1396, 4
  %v1398 = vadd.f32 %v1396, %v1397
  %v1399 = vrot.slane %v1398, 2
  %v1400 = vadd.f32 %v1398, %v1399
  %v1401 = vrot.slane %v1400, 1
  %v1402 = vadd.f32 %v1400, %v1401
  %v1403 = vsel %vm89, %v1371, 0.0
  %v1404 = vrot.slane %v1403, 4
  %v1405 = vadd.f32 %v1403, %v1404
  %v1406 = vrot.slane %v1405, 2
  %v1407 = vadd.f32 %v1405, %v1406
  %v1408 = vrot.slane %v1407, 1
  %v1409 = vadd.f32 %v1407, %v1408
  %v1410 = vsel %vm89, %v1372, 0.0
  %v1411 = vrot.slane %v1410, 4
  %v1412 = vadd.f32 %v1410, %v1411
  %v1413 = vrot.slane %v1412, 2
  %v1414 = vadd.f32 %v1412, %v1413
  %v1415 = vrot.slane %v1414, 1
  %v1416 = vadd.f32 %v1414, %v1415
  %v1417 = vsel %vm89, %v1373, 0.0
  %v1418 = vrot.slane %v1417, 4
  %v1419 = vadd.f32 %v1417, %v1418
  %v1420 = vrot.slane %v1419, 2
  %v1421 = vadd.f32 %v1419, %v1420
  %v1422 = vrot.slane %v1421, 1
  %v1423 = vadd.f32 %v1421, %v1422
  %v1424 = vsel %vm89, %v1374, 0.0
  %v1425 = vrot.slane %v1424, 4
  %v1426 = vadd.f32 %v1424, %v1425
  %v1427 = vrot.slane %v1426, 2
  %v1428 = vadd.f32 %v1426, %v1427
  %v1429 = vrot.slane %v1428, 1
  %v1430 = vadd.f32 %v1428, %v1429
  %v1432 = vrot.slane %v1358, 1
  %v1433 = vrot.slane %v1358, 2
  %v1434 = vrot.slane %v1358, 3
  %v1435 = vrot.slane %v1358, 4
  %v1436 = vrot.slane %v1358, 5
  %v1437 = vrot.slane %v1358, 6
  %v1438 = vrot.slane %v1358, 7
  %v1447 = vmul.f32 %v1381, %v1358
  %v1448 = vmul.f32 %v1388, %v1432
  %v1449 = vmul.f32 %v1395, %v1433
  %v1450 = vmul.f32 %v1402, %v1434
  %v1451 = vmul.f32 %v1409, %v1435
  %v1452 = vmul.f32 %v1416, %v1436
  %v1453 = vmul.f32 %v1423, %v1437
  %v1454 = vmul.f32 %v1430, %v1438
  %s1455 = scalar_lea.vmem [#allocation3], 8
  %v1456 = vld [vmem:[%s1455] sm:$0xff]
  %v1457 = vpack.c.bf16 %v1447, %v1447
  %v1458 = vpack.c.bf16 %v1448, %v1448
  %v1459 = vpack.c.bf16 %v1449, %v1449
  %v1460 = vpack.c.bf16 %v1450, %v1450
  %v1461 = vpack.c.bf16 %v1451, %v1451
  %v1462 = vpack.c.bf16 %v1452, %v1452
  %v1463 = vpack.c.bf16 %v1453, %v1453
  %v1464 = vpack.c.bf16 %v1454, %v1454
  %v1473 = vunpack.c.l.b16 %v1457
  %v1474 = vunpack.c.l.b16 %v1458
  %v1475 = vunpack.c.l.b16 %v1459
  %v1476 = vunpack.c.l.b16 %v1460
  %v1477 = vunpack.c.l.b16 %v1461
  %v1478 = vunpack.c.l.b16 %v1462
  %v1479 = vunpack.c.l.b16 %v1463
  %v1480 = vunpack.c.l.b16 %v1464
  %v1481 = vrot.slane %v1474, 7
  %v1482 = vsel %vm591, %v1481, %v1473
  %v1483 = vrot.slane %v1475, 6
  %v1484 = vsel %vm593, %v1483, %v1482
  %v1485 = vrot.slane %v1476, 5
  %v1486 = vsel %vm595, %v1485, %v1484
  %v1487 = vrot.slane %v1477, 4
  %v1488 = vsel %vm597, %v1487, %v1486
  %v1489 = vrot.slane %v1478, 3
  %v1490 = vsel %vm599, %v1489, %v1488
  %v1491 = vrot.slane %v1479, 2
  %v1492 = vsel %vm601, %v1491, %v1490
  %v1493 = vrot.slane %v1480, 1
  %v1494 = vsel %vm603, %v1493, %v1492
  %v1495 = vpack.c.b16 %v1494, %v1494
  %v1497 = vsel %vm89, %v1495, 0
  %1499 = vmatprep.subr.bf16.mxu0 0
  %1500 = vmatpush1.bf16.msra.mxu0 %v895
  %1501 = vmatprep.subr.bf16.mxu0 0
  %1502 = vmatpush1.bf16.msra.mxu0 %v896
  %1503 = vmatprep.subr.bf16.mxu0 0
  %1504 = vmatpush1.bf16.msra.mxu0 0
  %1505 = vmatprep.subr.bf16.mxu0 0
  %1506 = vmatpush1.bf16.msra.mxu0 0
  %1507 = vmatprep.subr.bf16.mxu0 0
  %1508 = vmatpush1.bf16.msra.mxu0 0
  %1509 = vmatprep.subr.bf16.mxu0 0
  %1510 = vmatpush1.bf16.msra.mxu0 0
  %1511 = vmatprep.subr.bf16.mxu0 0
  %1512 = vmatpush1.bf16.msra.mxu0 0
  %1513 = vmatprep.subr.bf16.mxu0 0
  %1514 = vmatpush1.bf16.msra.mxu0 0
  %1515 = vmatprep.subr.bf16.mxu0 0
  %1516 = vmatpush1.bf16.msra.mxu0 0
  %1517 = vmatprep.subr.bf16.mxu0 0
  %1518 = vmatpush1.bf16.msra.mxu0 0
  %1519 = vmatprep.subr.bf16.mxu0 0
  %1520 = vmatpush1.bf16.msra.mxu0 0
  %1521 = vmatprep.subr.bf16.mxu0 0
  %1522 = vmatpush1.bf16.msra.mxu0 0
  %1523 = vmatprep.subr.bf16.mxu0 0
  %1524 = vmatpush1.bf16.msra.mxu0 0
  %1525 = vmatprep.subr.bf16.mxu0 0
  %1526 = vmatpush1.bf16.msra.mxu0 0
  %1527 = vmatprep.subr.bf16.mxu0 0
  %1528 = vmatpush1.bf16.msra.mxu0 0
  %1529 = vmatprep.subr.bf16.mxu0 0
  %1530 = vmatpush1.bf16.msra.mxu0 0
  %1531 = vmatprep.mubr.bf16.mxu0 0
  %1532 = vmatmul.mubr.bf16.gmra.mrb[0].mxu0 %v1497
  %v1533 = vpop.f32.mrb[0].mxu0
  %v1534 = vadd.f32 0.0, %v1533
  %v1535 = vpop.f32.mrb[0].mxu0
  %v1536 = vpop.f32.mrb[0].mxu0
  %v1537 = vpop.f32.mrb[0].mxu0
  %1538 = vdwg.mxu0
  %v1539 = vadd.f32 %v1456, %v1534
  %1541 = vrot.lane.b32.xlu0 %v1028, 96
  %v1542 = vpop.permute.xlu0 %1541
  %v1544 = vadd.f32 %v1539, %v1542
  %v1545 = vxor.u32 %v1544, 2147483648
  %v1546 = vmul.f32 %v1545, 1.442695
  %v1547 = vpow.pop %v1546
  %v1548 = vadd.f32 %v1547, 1.0
  %v1549 = vrcp.pop %v1548
  %v1550 = vmul.f32 1.0, %v1549
  %1551 = vrot.lane.b32.xlu0 %v1028, 32
  %v1552 = vpop.permute.xlu0 %1551
  %v1554 = vmul.f32 %v1550, %v1552
  %1556 = vrot.lane.b32.xlu0 %v1554, 64
  %v1557 = vpop.permute.xlu0 %1556
  %v1559 = vadd.f32 %v1539, %v1557
  %v1560 = vtanh.pop %v1559
  %v1561 = vsub.f32 1.0, %v1550
  %1563 = vrot.lane.b32.xlu0 %v1560, 96
  %v1564 = vpop.permute.xlu0 %1563
  %v1566 = vmul.f32 %v1561, %v1564
  %v1567 = vmul.f32 %v1550, %v975
  %v1568 = vadd.f32 %v1566, %v1567
  %1570 = vrot.lane.b32.xlu0 %v1568, 96
  %v1571 = vpop.permute.xlu0 %1570
  %s1573 = scalar_lea.vmem [#allocation2], 8
  %1574 = vst.msk [vmem:[%s1573] sm:$0xff] %vm89, %v1571
  %v1575 = vpack.c.bf16 %v1568, %v1568
  %1577 = vrot.lane.b32.xlu0 %v1575, 96
  %v1578 = vpop.permute.xlu0 %1577
  %v1580 = vsel %vm89, %v1578, 0
  %1582 = vmatprep.subr.bf16.mxu0 0
  %1583 = vmatpush1.bf16.msra.mxu0 %v360
  %1584 = vmatprep.subr.bf16.mxu0 0
  %1585 = vmatpush1.bf16.msra.mxu0 %v361
  %1586 = vmatprep.subr.bf16.mxu0 0
  %1587 = vmatpush1.bf16.msra.mxu0 0
  %1588 = vmatprep.subr.bf16.mxu0 0
  %1589 = vmatpush1.bf16.msra.mxu0 0
  %1590 = vmatprep.subr.bf16.mxu0 0
  %1591 = vmatpush1.bf16.msra.mxu0 0
  %1592 = vmatprep.subr.bf16.mxu0 0
  %1593 = vmatpush1.bf16.msra.mxu0 0
  %1594 = vmatprep.subr.bf16.mxu0 0
  %1595 = vmatpush1.bf16.msra.mxu0 0
  %1596 = vmatprep.subr.bf16.mxu0 0
  %1597 = vmatpush1.bf16.msra.mxu0 0
  %1598 = vmatprep.subr.bf16.mxu0 0
  %1599 = vmatpush1.bf16.msra.mxu0 0
  %1600 = vmatprep.subr.bf16.mxu0 0
  %1601 = vmatpush1.bf16.msra.mxu0 0
  %1602 = vmatprep.subr.bf16.mxu0 0
  %1603 = vmatpush1.bf16.msra.mxu0 0
  %1604 = vmatprep.subr.bf16.mxu0 0
  %1605 = vmatpush1.bf16.msra.mxu0 0
  %1606 = vmatprep.subr.bf16.mxu0 0
  %1607 = vmatpush1.bf16.msra.mxu0 0
  %1608 = vmatprep.subr.bf16.mxu0 0
  %1609 = vmatpush1.bf16.msra.mxu0 0
  %1610 = vmatprep.subr.bf16.mxu0 0
  %1611 = vmatpush1.bf16.msra.mxu0 0
  %1612 = vmatprep.subr.bf16.mxu0 0
  %1613 = vmatpush1.bf16.msra.mxu0 0
  %1614 = vmatprep.mubr.bf16.mxu0 0
  %1615 = vmatmul.mubr.bf16.gmra.mrb[0].mxu0 %v1580
  %v1616 = vpop.f32.mrb[0].mxu0
  %v1617 = vadd.f32 0.0, %v1616
  %v1618 = vpop.f32.mrb[0].mxu0
  %v1619 = vpop.f32.mrb[0].mxu0
  %v1620 = vpop.f32.mrb[0].mxu0
  %1621 = vdwg.mxu0
  %v1622 = vadd.f32 %v1617, %v408
  %v1624 = vcombine.high %v1617, %v1617
  %v1626 = vunpack.c.l.s4 1966171168
  %v1627 = vunpack.c.0.s8 %v1626
  %v1628 = vlaneseq
  %v1629 = vshrl.u32 %v1628, 7
  %v1630 = vsub.s32 %v1627, %v1629
  %v1631 = vrot.slane %v1617, %v1630
  %v1633 = vunpack.c.l.s4 1966171168
  %v1634 = vunpack.c.0.s8 %v1633
  %v1635 = vlaneseq
  %v1636 = vshrl.u32 %v1635, 7
  %v1637 = vsub.s32 %v1634, %v1636
  %v1638 = vrot.slane %v1624, %v1637
  %v1639 = vcombine.high %v1631, %v1631
  %v1640 = vcombine.high %v1638, %v1638
  %v1642 = vunpack.c.l.s4 1966171168
  %v1643 = vunpack.c.0.s8 %v1642
  %v1644 = vlaneseq
  %v1645 = vshrl.u32 %v1644, 7
  %v1646 = vsub.s32 %v1643, %v1645
  %v1647 = vrot.slane %v1631, %v1646
  %v1649 = vunpack.c.l.s4 1966171168
  %v1650 = vunpack.c.0.s8 %v1649
  %v1651 = vlaneseq
  %v1652 = vshrl.u32 %v1651, 7
  %v1653 = vsub.s32 %v1650, %v1652
  %v1654 = vrot.slane %v1638, %v1653
  %v1656 = vunpack.c.l.s4 1966171168
  %v1657 = vunpack.c.0.s8 %v1656
  %v1658 = vlaneseq
  %v1659 = vshrl.u32 %v1658, 7
  %v1660 = vsub.s32 %v1657, %v1659
  %v1661 = vrot.slane %v1639, %v1660
  %v1663 = vunpack.c.l.s4 1966171168
  %v1664 = vunpack.c.0.s8 %v1663
  %v1665 = vlaneseq
  %v1666 = vshrl.u32 %v1665, 7
  %v1667 = vsub.s32 %v1664, %v1666
  %v1668 = vrot.slane %v1640, %v1667
  %v1669 = vcombine.high %v1647, %v1647
  %v1670 = vcombine.high %v1654, %v1654
  %v1671 = vcombine.high %v1661, %v1661
  %v1672 = vcombine.high %v1668, %v1668
  %v1673 = vlaneseq
  %v1674 = vshrl.u32 %v1673, 7
  %v1675 = vsub.s32 0, %v1674
  %v1676 = vrot.slane %v1647, %v1675
  %v1677 = vlaneseq
  %v1678 = vshrl.u32 %v1677, 7
  %v1679 = vsub.s32 0, %v1678
  %v1680 = vrot.slane %v1661, %v1679
  %v1681 = vlaneseq
  %v1682 = vshrl.u32 %v1681, 7
  %v1683 = vsub.s32 0, %v1682
  %v1684 = vrot.slane %v1669, %v1683
  %v1685 = vlaneseq
  %v1686 = vshrl.u32 %v1685, 7
  %v1687 = vsub.s32 0, %v1686
  %v1688 = vrot.slane %v1671, %v1687
  %v1689 = vlaneseq
  %v1690 = vshrl.u32 %v1689, 7
  %v1691 = vsub.s32 0, %v1690
  %v1692 = vrot.slane %v1654, %v1691
  %v1693 = vlaneseq
  %v1694 = vshrl.u32 %v1693, 7
  %v1695 = vsub.s32 0, %v1694
  %v1696 = vrot.slane %v1668, %v1695
  %v1697 = vlaneseq
  %v1698 = vshrl.u32 %v1697, 7
  %v1699 = vsub.s32 0, %v1698
  %v1700 = vrot.slane %v1670, %v1699
  %v1701 = vlaneseq
  %v1702 = vshrl.u32 %v1701, 7
  %v1703 = vsub.s32 0, %v1702
  %v1704 = vrot.slane %v1672, %v1703
  %v1713 = vadd.f32 %v174, %v1676
  %v1714 = vadd.f32 %v175, %v1680
  %v1715 = vadd.f32 %v176, %v1684
  %v1716 = vadd.f32 %v177, %v1688
  %v1717 = vadd.f32 %v178, %v1692
  %v1718 = vadd.f32 %v179, %v1696
  %v1719 = vadd.f32 %v180, %v1700
  %v1720 = vadd.f32 %v181, %v1704
  %v1721 = vtanh.pop %v1713
  %v1722 = vtanh.pop %v1714
  %v1723 = vtanh.pop %v1715
  %v1724 = vtanh.pop %v1716
  %v1725 = vtanh.pop %v1717
  %v1726 = vtanh.pop %v1718
  %v1727 = vtanh.pop %v1719
  %v1728 = vtanh.pop %v1720
  %v1729 = vmul.f32 %v1721, %v340
  %v1730 = vmul.f32 %v1722, %v340
  %v1731 = vmul.f32 %v1723, %v340
  %v1732 = vmul.f32 %v1724, %v340
  %v1733 = vmul.f32 %v1725, %v340
  %v1734 = vmul.f32 %v1726, %v340
  %v1735 = vmul.f32 %v1727, %v340
  %v1736 = vmul.f32 %v1728, %v340
  %v1737 = vsel %vm89, %v1729, 0.0
  %1738 = vadd.xlane.f32.xlu0 %v1737
  %v1739 = vpop.xlane.xlu0 %1738
  %v1740 = vsel %vm89, %v1730, 0.0
  %1741 = vadd.xlane.f32.xlu0 %v1740
  %v1742 = vpop.xlane.xlu0 %1741
  %v1743 = vsel %vm89, %v1731, 0.0
  %1744 = vadd.xlane.f32.xlu0 %v1743
  %v1745 = vpop.xlane.xlu0 %1744
  %v1746 = vsel %vm89, %v1732, 0.0
  %1747 = vadd.xlane.f32.xlu0 %v1746
  %v1748 = vpop.xlane.xlu0 %1747
  %v1749 = vsel %vm89, %v1733, 0.0
  %1750 = vadd.xlane.f32.xlu0 %v1749
  %v1751 = vpop.xlane.xlu0 %1750
  %v1752 = vsel %vm89, %v1734, 0.0
  %1753 = vadd.xlane.f32.xlu0 %v1752
  %v1754 = vpop.xlane.xlu0 %1753
  %v1755 = vsel %vm89, %v1735, 0.0
  %1756 = vadd.xlane.f32.xlu0 %v1755
  %v1757 = vpop.xlane.xlu0 %1756
  %v1758 = vsel %vm89, %v1736, 0.0
  %1759 = vadd.xlane.f32.xlu0 %v1758
  %v1760 = vpop.xlane.xlu0 %1759
  %v1769 = vlaneseq
  %v1770 = vshrl.u32 %v1769, 7
  %v1771 = vsub.s32 %v558, %v1770
  %v1772 = vrot.slane %v1739, %v1771
  %v1773 = vlaneseq
  %v1774 = vshrl.u32 %v1773, 7
  %v1775 = vsub.s32 %v558, %v1774
  %v1776 = vrot.slane %v1742, %v1775
  %v1777 = vlaneseq
  %v1778 = vshrl.u32 %v1777, 7
  %v1779 = vsub.s32 %v558, %v1778
  %v1780 = vrot.slane %v1745, %v1779
  %v1781 = vlaneseq
  %v1782 = vshrl.u32 %v1781, 7
  %v1783 = vsub.s32 %v558, %v1782
  %v1784 = vrot.slane %v1748, %v1783
  %v1785 = vlaneseq
  %v1786 = vshrl.u32 %v1785, 7
  %v1787 = vsub.s32 %v558, %v1786
  %v1788 = vrot.slane %v1751, %v1787
  %v1789 = vlaneseq
  %v1790 = vshrl.u32 %v1789, 7
  %v1791 = vsub.s32 %v558, %v1790
  %v1792 = vrot.slane %v1754, %v1791
  %v1793 = vlaneseq
  %v1794 = vshrl.u32 %v1793, 7
  %v1795 = vsub.s32 %v558, %v1794
  %v1796 = vrot.slane %v1757, %v1795
  %v1797 = vlaneseq
  %v1798 = vshrl.u32 %v1797, 7
  %v1799 = vsub.s32 %v558, %v1798
  %v1800 = vrot.slane %v1760, %v1799
  %v1801 = vsel %vm591, %v1776, %v1772
  %v1802 = vsel %vm593, %v1780, %v1801
  %v1803 = vsel %vm595, %v1784, %v1802
  %v1804 = vsel %vm597, %v1788, %v1803
  %v1805 = vsel %vm599, %v1792, %v1804
  %v1806 = vsel %vm601, %v1796, %v1805
  %v1807 = vsel %vm603, %v1800, %v1806
  %v1809 = vsel %vm606, %v1807, -inf
  %1810 = vmax.xlane.f32.xlu0 %v1809
  %v1811 = vpop.xlane.xlu0 %1810
  %v1813 = vlaneseq
  %v1814 = vshrl.u32 %v1813, 7
  %v1815 = vsub.s32 0, %v1814
  %v1816 = vrot.slane %v1811, %v1815
  %v1817 = vlaneseq
  %v1818 = vshrl.u32 %v1817, 7
  %v1819 = vsub.s32 1, %v1818
  %v1820 = vrot.slane %v1811, %v1819
  %v1821 = vlaneseq
  %v1822 = vshrl.u32 %v1821, 7
  %v1823 = vsub.s32 2, %v1822
  %v1824 = vrot.slane %v1811, %v1823
  %v1825 = vlaneseq
  %v1826 = vshrl.u32 %v1825, 7
  %v1827 = vsub.s32 3, %v1826
  %v1828 = vrot.slane %v1811, %v1827
  %v1829 = vlaneseq
  %v1830 = vshrl.u32 %v1829, 7
  %v1831 = vsub.s32 4, %v1830
  %v1832 = vrot.slane %v1811, %v1831
  %v1833 = vlaneseq
  %v1834 = vshrl.u32 %v1833, 7
  %v1835 = vsub.s32 5, %v1834
  %v1836 = vrot.slane %v1811, %v1835
  %v1837 = vlaneseq
  %v1838 = vshrl.u32 %v1837, 7
  %v1839 = vsub.s32 6, %v1838
  %v1840 = vrot.slane %v1811, %v1839
  %v1841 = vlaneseq
  %v1842 = vshrl.u32 %v1841, 7
  %v1843 = vsub.s32 7, %v1842
  %v1844 = vrot.slane %v1811, %v1843
  %v1853 = vsub.f32 %v1739, %v1816
  %v1854 = vsub.f32 %v1742, %v1820
  %v1855 = vsub.f32 %v1745, %v1824
  %v1856 = vsub.f32 %v1748, %v1828
  %v1857 = vsub.f32 %v1751, %v1832
  %v1858 = vsub.f32 %v1754, %v1836
  %v1859 = vsub.f32 %v1757, %v1840
  %v1860 = vsub.f32 %v1760, %v1844
  %v1861 = vmul.f32 %v1853, 1.442695
  %v1862 = vpow.pop %v1861
  %v1863 = vmul.f32 %v1854, 1.442695
  %v1864 = vpow.pop %v1863
  %v1865 = vmul.f32 %v1855, 1.442695
  %v1866 = vpow.pop %v1865
  %v1867 = vmul.f32 %v1856, 1.442695
  %v1868 = vpow.pop %v1867
  %v1869 = vmul.f32 %v1857, 1.442695
  %v1870 = vpow.pop %v1869
  %v1871 = vmul.f32 %v1858, 1.442695
  %v1872 = vpow.pop %v1871
  %v1873 = vmul.f32 %v1859, 1.442695
  %v1874 = vpow.pop %v1873
  %v1875 = vmul.f32 %v1860, 1.442695
  %v1876 = vpow.pop %v1875
  %1885 = vset.pattern.permute.xlu0 0
  %1886 = vperm.xlu0 %1885, %v1862
  %v1887 = vpop.permute.xlu0 %1886
  %1888 = vset.pattern.permute.xlu0 0
  %1889 = vperm.xlu0 %1888, %v1864
  %v1890 = vpop.permute.xlu0 %1889
  %1891 = vset.pattern.permute.xlu0 0
  %1892 = vperm.xlu0 %1891, %v1866
  %v1893 = vpop.permute.xlu0 %1892
  %1894 = vset.pattern.permute.xlu0 0
  %1895 = vperm.xlu0 %1894, %v1868
  %v1896 = vpop.permute.xlu0 %1895
  %1897 = vset.pattern.permute.xlu0 0
  %1898 = vperm.xlu0 %1897, %v1870
  %v1899 = vpop.permute.xlu0 %1898
  %1900 = vset.pattern.permute.xlu0 0
  %1901 = vperm.xlu0 %1900, %v1872
  %v1902 = vpop.permute.xlu0 %1901
  %1903 = vset.pattern.permute.xlu0 0
  %1904 = vperm.xlu0 %1903, %v1874
  %v1905 = vpop.permute.xlu0 %1904
  %1906 = vset.pattern.permute.xlu0 0
  %1907 = vperm.xlu0 %1906, %v1876
  %v1908 = vpop.permute.xlu0 %1907
  %v1909 = vlaneseq
  %v1910 = vshrl.u32 %v1909, 7
  %v1911 = vsub.s32 %v558, %v1910
  %v1912 = vrot.slane %v1887, %v1911
  %v1913 = vlaneseq
  %v1914 = vshrl.u32 %v1913, 7
  %v1915 = vsub.s32 %v558, %v1914
  %v1916 = vrot.slane %v1890, %v1915
  %v1917 = vlaneseq
  %v1918 = vshrl.u32 %v1917, 7
  %v1919 = vsub.s32 %v558, %v1918
  %v1920 = vrot.slane %v1893, %v1919
  %v1921 = vlaneseq
  %v1922 = vshrl.u32 %v1921, 7
  %v1923 = vsub.s32 %v558, %v1922
  %v1924 = vrot.slane %v1896, %v1923
  %v1925 = vlaneseq
  %v1926 = vshrl.u32 %v1925, 7
  %v1927 = vsub.s32 %v558, %v1926
  %v1928 = vrot.slane %v1899, %v1927
  %v1929 = vlaneseq
  %v1930 = vshrl.u32 %v1929, 7
  %v1931 = vsub.s32 %v558, %v1930
  %v1932 = vrot.slane %v1902, %v1931
  %v1933 = vlaneseq
  %v1934 = vshrl.u32 %v1933, 7
  %v1935 = vsub.s32 %v558, %v1934
  %v1936 = vrot.slane %v1905, %v1935
  %v1937 = vlaneseq
  %v1938 = vshrl.u32 %v1937, 7
  %v1939 = vsub.s32 %v558, %v1938
  %v1940 = vrot.slane %v1908, %v1939
  %v1941 = vsel %vm591, %v1916, %v1912
  %v1942 = vsel %vm593, %v1920, %v1941
  %v1943 = vsel %vm595, %v1924, %v1942
  %v1944 = vsel %vm597, %v1928, %v1943
  %v1945 = vsel %vm599, %v1932, %v1944
  %v1946 = vsel %vm601, %v1936, %v1945
  %v1947 = vsel %vm603, %v1940, %v1946
  %v1949 = vsel %vm606, %v1947, 0.0
  %1950 = vadd.xlane.f32.xlu0 %v1949
  %v1951 = vpop.xlane.xlu0 %1950
  %v1952 = vrcp.pop %v1951
  %v1961 = vmul.f32 %v1887, %v342
  %v1962 = vmul.f32 %v1890, %v343
  %v1963 = vmul.f32 %v1893, %v344
  %v1964 = vmul.f32 %v1896, %v345
  %v1965 = vmul.f32 %v1899, %v346
  %v1966 = vmul.f32 %v1902, %v347
  %v1967 = vmul.f32 %v1905, %v348
  %v1968 = vmul.f32 %v1908, %v349
  %v1969 = vsel %vm89, %v1961, 0.0
  %v1970 = vrot.slane %v1969, 4
  %v1971 = vadd.f32 %v1969, %v1970
  %v1972 = vrot.slane %v1971, 2
  %v1973 = vadd.f32 %v1971, %v1972
  %v1974 = vrot.slane %v1973, 1
  %v1975 = vadd.f32 %v1973, %v1974
  %v1976 = vsel %vm89, %v1962, 0.0
  %v1977 = vrot.slane %v1976, 4
  %v1978 = vadd.f32 %v1976, %v1977
  %v1979 = vrot.slane %v1978, 2
  %v1980 = vadd.f32 %v1978, %v1979
  %v1981 = vrot.slane %v1980, 1
  %v1982 = vadd.f32 %v1980, %v1981
  %v1983 = vsel %vm89, %v1963, 0.0
  %v1984 = vrot.slane %v1983, 4
  %v1985 = vadd.f32 %v1983, %v1984
  %v1986 = vrot.slane %v1985, 2
  %v1987 = vadd.f32 %v1985, %v1986
  %v1988 = vrot.slane %v1987, 1
  %v1989 = vadd.f32 %v1987, %v1988
  %v1990 = vsel %vm89, %v1964, 0.0
  %v1991 = vrot.slane %v1990, 4
  %v1992 = vadd.f32 %v1990, %v1991
  %v1993 = vrot.slane %v1992, 2
  %v1994 = vadd.f32 %v1992, %v1993
  %v1995 = vrot.slane %v1994, 1
  %v1996 = vadd.f32 %v1994, %v1995
  %v1997 = vsel %vm89, %v1965, 0.0
  %v1998 = vrot.slane %v1997, 4
  %v1999 = vadd.f32 %v1997, %v1998
  %v2000 = vrot.slane %v1999, 2
  %v2001 = vadd.f32 %v1999, %v2000
  %v2002 = vrot.slane %v2001, 1
  %v2003 = vadd.f32 %v2001, %v2002
  %v2004 = vsel %vm89, %v1966, 0.0
  %v2005 = vrot.slane %v2004, 4
  %v2006 = vadd.f32 %v2004, %v2005
  %v2007 = vrot.slane %v2006, 2
  %v2008 = vadd.f32 %v2006, %v2007
  %v2009 = vrot.slane %v2008, 1
  %v2010 = vadd.f32 %v2008, %v2009
  %v2011 = vsel %vm89, %v1967, 0.0
  %v2012 = vrot.slane %v2011, 4
  %v2013 = vadd.f32 %v2011, %v2012
  %v2014 = vrot.slane %v2013, 2
  %v2015 = vadd.f32 %v2013, %v2014
  %v2016 = vrot.slane %v2015, 1
  %v2017 = vadd.f32 %v2015, %v2016
  %v2018 = vsel %vm89, %v1968, 0.0
  %v2019 = vrot.slane %v2018, 4
  %v2020 = vadd.f32 %v2018, %v2019
  %v2021 = vrot.slane %v2020, 2
  %v2022 = vadd.f32 %v2020, %v2021
  %v2023 = vrot.slane %v2022, 1
  %v2024 = vadd.f32 %v2022, %v2023
  %v2026 = vrot.slane %v1952, 1
  %v2027 = vrot.slane %v1952, 2
  %v2028 = vrot.slane %v1952, 3
  %v2029 = vrot.slane %v1952, 4
  %v2030 = vrot.slane %v1952, 5
  %v2031 = vrot.slane %v1952, 6
  %v2032 = vrot.slane %v1952, 7
  %v2041 = vmul.f32 %v1975, %v1952
  %v2042 = vmul.f32 %v1982, %v2026
  %v2043 = vmul.f32 %v1989, %v2027
  %v2044 = vmul.f32 %v1996, %v2028
  %v2045 = vmul.f32 %v2003, %v2029
  %v2046 = vmul.f32 %v2010, %v2030
  %v2047 = vmul.f32 %v2017, %v2031
  %v2048 = vmul.f32 %v2024, %v2032
  %s2049 = scalar_lea.vmem [#allocation3], 16
  %v2050 = vld [vmem:[%s2049] sm:$0xff]
  %v2051 = vpack.c.bf16 %v2041, %v2041
  %v2052 = vpack.c.bf16 %v2042, %v2042
  %v2053 = vpack.c.bf16 %v2043, %v2043
  %v2054 = vpack.c.bf16 %v2044, %v2044
  %v2055 = vpack.c.bf16 %v2045, %v2045
  %v2056 = vpack.c.bf16 %v2046, %v2046
  %v2057 = vpack.c.bf16 %v2047, %v2047
  %v2058 = vpack.c.bf16 %v2048, %v2048
  %v2067 = vunpack.c.l.b16 %v2051
  %v2068 = vunpack.c.l.b16 %v2052
  %v2069 = vunpack.c.l.b16 %v2053
  %v2070 = vunpack.c.l.b16 %v2054
  %v2071 = vunpack.c.l.b16 %v2055
  %v2072 = vunpack.c.l.b16 %v2056
  %v2073 = vunpack.c.l.b16 %v2057
  %v2074 = vunpack.c.l.b16 %v2058
  %v2075 = vrot.slane %v2068, 7
  %v2076 = vsel %vm591, %v2075, %v2067
  %v2077 = vrot.slane %v2069, 6
  %v2078 = vsel %vm593, %v2077, %v2076
  %v2079 = vrot.slane %v2070, 5
  %v2080 = vsel %vm595, %v2079, %v2078
  %v2081 = vrot.slane %v2071, 4
  %v2082 = vsel %vm597, %v2081, %v2080
  %v2083 = vrot.slane %v2072, 3
  %v2084 = vsel %vm599, %v2083, %v2082
  %v2085 = vrot.slane %v2073, 2
  %v2086 = vsel %vm601, %v2085, %v2084
  %v2087 = vrot.slane %v2074, 1
  %v2088 = vsel %vm603, %v2087, %v2086
  %v2089 = vpack.c.b16 %v2088, %v2088
  %v2091 = vsel %vm89, %v2089, 0
  %2093 = vmatprep.subr.bf16.mxu0 0
  %2094 = vmatpush1.bf16.msra.mxu0 %v895
  %2095 = vmatprep.subr.bf16.mxu0 0
  %2096 = vmatpush1.bf16.msra.mxu0 %v896
  %2097 = vmatprep.subr.bf16.mxu0 0
  %2098 = vmatpush1.bf16.msra.mxu0 0
  %2099 = vmatprep.subr.bf16.mxu0 0
  %2100 = vmatpush1.bf16.msra.mxu0 0
  %2101 = vmatprep.subr.bf16.mxu0 0
  %2102 = vmatpush1.bf16.msra.mxu0 0
  %2103 = vmatprep.subr.bf16.mxu0 0
  %2104 = vmatpush1.bf16.msra.mxu0 0
  %2105 = vmatprep.subr.bf16.mxu0 0
  %2106 = vmatpush1.bf16.msra.mxu0 0
  %2107 = vmatprep.subr.bf16.mxu0 0
  %2108 = vmatpush1.bf16.msra.mxu0 0
  %2109 = vmatprep.subr.bf16.mxu0 0
  %2110 = vmatpush1.bf16.msra.mxu0 0
  %2111 = vmatprep.subr.bf16.mxu0 0
  %2112 = vmatpush1.bf16.msra.mxu0 0
  %2113 = vmatprep.subr.bf16.mxu0 0
  %2114 = vmatpush1.bf16.msra.mxu0 0
  %2115 = vmatprep.subr.bf16.mxu0 0
  %2116 = vmatpush1.bf16.msra.mxu0 0
  %2117 = vmatprep.subr.bf16.mxu0 0
  %2118 = vmatpush1.bf16.msra.mxu0 0
  %2119 = vmatprep.subr.bf16.mxu0 0
  %2120 = vmatpush1.bf16.msra.mxu0 0
  %2121 = vmatprep.subr.bf16.mxu0 0
  %2122 = vmatpush1.bf16.msra.mxu0 0
  %2123 = vmatprep.subr.bf16.mxu0 0
  %2124 = vmatpush1.bf16.msra.mxu0 0
  %2125 = vmatprep.mubr.bf16.mxu0 0
  %2126 = vmatmul.mubr.bf16.gmra.mrb[0].mxu0 %v2091
  %v2127 = vpop.f32.mrb[0].mxu0
  %v2128 = vadd.f32 0.0, %v2127
  %v2129 = vpop.f32.mrb[0].mxu0
  %v2130 = vpop.f32.mrb[0].mxu0
  %v2131 = vpop.f32.mrb[0].mxu0
  %2132 = vdwg.mxu0
  %v2133 = vadd.f32 %v2050, %v2128
  %2135 = vrot.lane.b32.xlu0 %v1622, 96
  %v2136 = vpop.permute.xlu0 %2135
  %v2138 = vadd.f32 %v2133, %v2136
  %v2139 = vxor.u32 %v2138, 2147483648
  %v2140 = vmul.f32 %v2139, 1.442695
  %v2141 = vpow.pop %v2140
  %v2142 = vadd.f32 %v2141, 1.0
  %v2143 = vrcp.pop %v2142
  %v2144 = vmul.f32 1.0, %v2143
  %2145 = vrot.lane.b32.xlu0 %v1622, 32
  %v2146 = vpop.permute.xlu0 %2145
  %v2148 = vmul.f32 %v2144, %v2146
  %2150 = vrot.lane.b32.xlu0 %v2148, 64
  %v2151 = vpop.permute.xlu0 %2150
  %v2153 = vadd.f32 %v2133, %v2151
  %v2154 = vtanh.pop %v2153
  %v2155 = vsub.f32 1.0, %v2144
  %2157 = vrot.lane.b32.xlu0 %v2154, 96
  %v2158 = vpop.permute.xlu0 %2157
  %v2160 = vmul.f32 %v2155, %v2158
  %v2161 = vmul.f32 %v2144, %v1568
  %v2162 = vadd.f32 %v2160, %v2161
  %2164 = vrot.lane.b32.xlu0 %v2162, 96
  %v2165 = vpop.permute.xlu0 %2164
  %s2167 = scalar_lea.vmem [#allocation2], 16
  %2168 = vst.msk [vmem:[%s2167] sm:$0xff] %vm89, %v2165
  %v2169 = vpack.c.bf16 %v2162, %v2162
  %2171 = vrot.lane.b32.xlu0 %v2169, 96
  %v2172 = vpop.permute.xlu0 %2171
  %v2174 = vsel %vm89, %v2172, 0
  %2176 = vmatprep.subr.bf16.mxu0 0
  %2177 = vmatpush1.bf16.msra.mxu0 %v360
  %2178 = vmatprep.subr.bf16.mxu0 0
  %2179 = vmatpush1.bf16.msra.mxu0 %v361
  %2180 = vmatprep.subr.bf16.mxu0 0
  %2181 = vmatpush1.bf16.msra.mxu0 0
  %2182 = vmatprep.subr.bf16.mxu0 0
  %2183 = vmatpush1.bf16.msra.mxu0 0
  %2184 = vmatprep.subr.bf16.mxu0 0
  %2185 = vmatpush1.bf16.msra.mxu0 0
  %2186 = vmatprep.subr.bf16.mxu0 0
  %2187 = vmatpush1.bf16.msra.mxu0 0
  %2188 = vmatprep.subr.bf16.mxu0 0
  %2189 = vmatpush1.bf16.msra.mxu0 0
  %2190 = vmatprep.subr.bf16.mxu0 0
  %2191 = vmatpush1.bf16.msra.mxu0 0
  %2192 = vmatprep.subr.bf16.mxu0 0
  %2193 = vmatpush1.bf16.msra.mxu0 0
  %2194 = vmatprep.subr.bf16.mxu0 0
  %2195 = vmatpush1.bf16.msra.mxu0 0
  %2196 = vmatprep.subr.bf16.mxu0 0
  %2197 = vmatpush1.bf16.msra.mxu0 0
  %2198 = vmatprep.subr.bf16.mxu0 0
  %2199 = vmatpush1.bf16.msra.mxu0 0
  %2200 = vmatprep.subr.bf16.mxu0 0
  %2201 = vmatpush1.bf16.msra.mxu0 0
  %2202 = vmatprep.subr.bf16.mxu0 0
  %2203 = vmatpush1.bf16.msra.mxu0 0
  %2204 = vmatprep.subr.bf16.mxu0 0
  %2205 = vmatpush1.bf16.msra.mxu0 0
  %2206 = vmatprep.subr.bf16.mxu0 0
  %2207 = vmatpush1.bf16.msra.mxu0 0
  %2208 = vmatprep.mubr.bf16.mxu0 0
  %2209 = vmatmul.mubr.bf16.gmra.mrb[0].mxu0 %v2174
  %v2210 = vpop.f32.mrb[0].mxu0
  %v2211 = vadd.f32 0.0, %v2210
  %v2212 = vpop.f32.mrb[0].mxu0
  %v2213 = vpop.f32.mrb[0].mxu0
  %v2214 = vpop.f32.mrb[0].mxu0
  %2215 = vdwg.mxu0
  %v2216 = vadd.f32 %v2211, %v408
  %v2218 = vcombine.high %v2211, %v2211
  %v2220 = vunpack.c.l.s4 1966171168
  %v2221 = vunpack.c.0.s8 %v2220
  %v2222 = vlaneseq
  %v2223 = vshrl.u32 %v2222, 7
  %v2224 = vsub.s32 %v2221, %v2223
  %v2225 = vrot.slane %v2211, %v2224
  %v2227 = vunpack.c.l.s4 1966171168
  %v2228 = vunpack.c.0.s8 %v2227
  %v2229 = vlaneseq
  %v2230 = vshrl.u32 %v2229, 7
  %v2231 = vsub.s32 %v2228, %v2230
  %v2232 = vrot.slane %v2218, %v2231
  %v2233 = vcombine.high %v2225, %v2225
  %v2234 = vcombine.high %v2232, %v2232
  %v2236 = vunpack.c.l.s4 1966171168
  %v2237 = vunpack.c.0.s8 %v2236
  %v2238 = vlaneseq
  %v2239 = vshrl.u32 %v2238, 7
  %v2240 = vsub.s32 %v2237, %v2239
  %v2241 = vrot.slane %v2225, %v2240
  %v2243 = vunpack.c.l.s4 1966171168
  %v2244 = vunpack.c.0.s8 %v2243
  %v2245 = vlaneseq
  %v2246 = vshrl.u32 %v2245, 7
  %v2247 = vsub.s32 %v2244, %v2246
  %v2248 = vrot.slane %v2232, %v2247
  %v2250 = vunpack.c.l.s4 1966171168
  %v2251 = vunpack.c.0.s8 %v2250
  %v2252 = vlaneseq
  %v2253 = vshrl.u32 %v2252, 7
  %v2254 = vsub.s32 %v2251, %v2253
  %v2255 = vrot.slane %v2233, %v2254
  %v2257 = vunpack.c.l.s4 1966171168
  %v2258 = vunpack.c.0.s8 %v2257
  %v2259 = vlaneseq
  %v2260 = vshrl.u32 %v2259, 7
  %v2261 = vsub.s32 %v2258, %v2260
  %v2262 = vrot.slane %v2234, %v2261
  %v2263 = vcombine.high %v2241, %v2241
  %v2264 = vcombine.high %v2248, %v2248
  %v2265 = vcombine.high %v2255, %v2255
  %v2266 = vcombine.high %v2262, %v2262
  %v2267 = vlaneseq
  %v2268 = vshrl.u32 %v2267, 7
  %v2269 = vsub.s32 0, %v2268
  %v2270 = vrot.slane %v2241, %v2269
  %v2271 = vlaneseq
  %v2272 = vshrl.u32 %v2271, 7
  %v2273 = vsub.s32 0, %v2272
  %v2274 = vrot.slane %v2255, %v2273
  %v2275 = vlaneseq
  %v2276 = vshrl.u32 %v2275, 7
  %v2277 = vsub.s32 0, %v2276
  %v2278 = vrot.slane %v2263, %v2277
  %v2279 = vlaneseq
  %v2280 = vshrl.u32 %v2279, 7
  %v2281 = vsub.s32 0, %v2280
  %v2282 = vrot.slane %v2265, %v2281
  %v2283 = vlaneseq
  %v2284 = vshrl.u32 %v2283, 7
  %v2285 = vsub.s32 0, %v2284
  %v2286 = vrot.slane %v2248, %v2285
  %v2287 = vlaneseq
  %v2288 = vshrl.u32 %v2287, 7
  %v2289 = vsub.s32 0, %v2288
  %v2290 = vrot.slane %v2262, %v2289
  %v2291 = vlaneseq
  %v2292 = vshrl.u32 %v2291, 7
  %v2293 = vsub.s32 0, %v2292
  %v2294 = vrot.slane %v2264, %v2293
  %v2295 = vlaneseq
  %v2296 = vshrl.u32 %v2295, 7
  %v2297 = vsub.s32 0, %v2296
  %v2298 = vrot.slane %v2266, %v2297
  %v2307 = vadd.f32 %v174, %v2270
  %v2308 = vadd.f32 %v175, %v2274
  %v2309 = vadd.f32 %v176, %v2278
  %v2310 = vadd.f32 %v177, %v2282
  %v2311 = vadd.f32 %v178, %v2286
  %v2312 = vadd.f32 %v179, %v2290
  %v2313 = vadd.f32 %v180, %v2294
  %v2314 = vadd.f32 %v181, %v2298
  %v2315 = vtanh.pop %v2307
  %v2316 = vtanh.pop %v2308
  %v2317 = vtanh.pop %v2309
  %v2318 = vtanh.pop %v2310
  %v2319 = vtanh.pop %v2311
  %v2320 = vtanh.pop %v2312
  %v2321 = vtanh.pop %v2313
  %v2322 = vtanh.pop %v2314
  %v2323 = vmul.f32 %v2315, %v340
  %v2324 = vmul.f32 %v2316, %v340
  %v2325 = vmul.f32 %v2317, %v340
  %v2326 = vmul.f32 %v2318, %v340
  %v2327 = vmul.f32 %v2319, %v340
  %v2328 = vmul.f32 %v2320, %v340
  %v2329 = vmul.f32 %v2321, %v340
  %v2330 = vmul.f32 %v2322, %v340
  %v2331 = vsel %vm89, %v2323, 0.0
  %2332 = vadd.xlane.f32.xlu0 %v2331
  %v2333 = vpop.xlane.xlu0 %2332
  %v2334 = vsel %vm89, %v2324, 0.0
  %2335 = vadd.xlane.f32.xlu0 %v2334
  %v2336 = vpop.xlane.xlu0 %2335
  %v2337 = vsel %vm89, %v2325, 0.0
  %2338 = vadd.xlane.f32.xlu0 %v2337
  %v2339 = vpop.xlane.xlu0 %2338
  %v2340 = vsel %vm89, %v2326, 0.0
  %2341 = vadd.xlane.f32.xlu0 %v2340
  %v2342 = vpop.xlane.xlu0 %2341
  %v2343 = vsel %vm89, %v2327, 0.0
  %2344 = vadd.xlane.f32.xlu0 %v2343
  %v2345 = vpop.xlane.xlu0 %2344
  %v2346 = vsel %vm89, %v2328, 0.0
  %2347 = vadd.xlane.f32.xlu0 %v2346
  %v2348 = vpop.xlane.xlu0 %2347
  %v2349 = vsel %vm89, %v2329, 0.0
  %2350 = vadd.xlane.f32.xlu0 %v2349
  %v2351 = vpop.xlane.xlu0 %2350
  %v2352 = vsel %vm89, %v2330, 0.0
  %2353 = vadd.xlane.f32.xlu0 %v2352
  %v2354 = vpop.xlane.xlu0 %2353
  %v2363 = vlaneseq
  %v2364 = vshrl.u32 %v2363, 7
  %v2365 = vsub.s32 %v558, %v2364
  %v2366 = vrot.slane %v2333, %v2365
  %v2367 = vlaneseq
  %v2368 = vshrl.u32 %v2367, 7
  %v2369 = vsub.s32 %v558, %v2368
  %v2370 = vrot.slane %v2336, %v2369
  %v2371 = vlaneseq
  %v2372 = vshrl.u32 %v2371, 7
  %v2373 = vsub.s32 %v558, %v2372
  %v2374 = vrot.slane %v2339, %v2373
  %v2375 = vlaneseq
  %v2376 = vshrl.u32 %v2375, 7
  %v2377 = vsub.s32 %v558, %v2376
  %v2378 = vrot.slane %v2342, %v2377
  %v2379 = vlaneseq
  %v2380 = vshrl.u32 %v2379, 7
  %v2381 = vsub.s32 %v558, %v2380
  %v2382 = vrot.slane %v2345, %v2381
  %v2383 = vlaneseq
  %v2384 = vshrl.u32 %v2383, 7
  %v2385 = vsub.s32 %v558, %v2384
  %v2386 = vrot.slane %v2348, %v2385
  %v2387 = vlaneseq
  %v2388 = vshrl.u32 %v2387, 7
  %v2389 = vsub.s32 %v558, %v2388
  %v2390 = vrot.slane %v2351, %v2389
  %v2391 = vlaneseq
  %v2392 = vshrl.u32 %v2391, 7
  %v2393 = vsub.s32 %v558, %v2392
  %v2394 = vrot.slane %v2354, %v2393
  %v2395 = vsel %vm591, %v2370, %v2366
  %v2396 = vsel %vm593, %v2374, %v2395
  %v2397 = vsel %vm595, %v2378, %v2396
  %v2398 = vsel %vm597, %v2382, %v2397
  %v2399 = vsel %vm599, %v2386, %v2398
  %v2400 = vsel %vm601, %v2390, %v2399
  %v2401 = vsel %vm603, %v2394, %v2400
  %v2403 = vsel %vm606, %v2401, -inf
  %2404 = vmax.xlane.f32.xlu0 %v2403
  %v2405 = vpop.xlane.xlu0 %2404
  %v2407 = vlaneseq
  %v2408 = vshrl.u32 %v2407, 7
  %v2409 = vsub.s32 0, %v2408
  %v2410 = vrot.slane %v2405, %v2409
  %v2411 = vlaneseq
  %v2412 = vshrl.u32 %v2411, 7
  %v2413 = vsub.s32 1, %v2412
  %v2414 = vrot.slane %v2405, %v2413
  %v2415 = vlaneseq
  %v2416 = vshrl.u32 %v2415, 7
  %v2417 = vsub.s32 2, %v2416
  %v2418 = vrot.slane %v2405, %v2417
  %v2419 = vlaneseq
  %v2420 = vshrl.u32 %v2419, 7
  %v2421 = vsub.s32 3, %v2420
  %v2422 = vrot.slane %v2405, %v2421
  %v2423 = vlaneseq
  %v2424 = vshrl.u32 %v2423, 7
  %v2425 = vsub.s32 4, %v2424
  %v2426 = vrot.slane %v2405, %v2425
  %v2427 = vlaneseq
  %v2428 = vshrl.u32 %v2427, 7
  %v2429 = vsub.s32 5, %v2428
  %v2430 = vrot.slane %v2405, %v2429
  %v2431 = vlaneseq
  %v2432 = vshrl.u32 %v2431, 7
  %v2433 = vsub.s32 6, %v2432
  %v2434 = vrot.slane %v2405, %v2433
  %v2435 = vlaneseq
  %v2436 = vshrl.u32 %v2435, 7
  %v2437 = vsub.s32 7, %v2436
  %v2438 = vrot.slane %v2405, %v2437
  %v2447 = vsub.f32 %v2333, %v2410
  %v2448 = vsub.f32 %v2336, %v2414
  %v2449 = vsub.f32 %v2339, %v2418
  %v2450 = vsub.f32 %v2342, %v2422
  %v2451 = vsub.f32 %v2345, %v2426
  %v2452 = vsub.f32 %v2348, %v2430
  %v2453 = vsub.f32 %v2351, %v2434
  %v2454 = vsub.f32 %v2354, %v2438
  %v2455 = vmul.f32 %v2447, 1.442695
  %v2456 = vpow.pop %v2455
  %v2457 = vmul.f32 %v2448, 1.442695
  %v2458 = vpow.pop %v2457
  %v2459 = vmul.f32 %v2449, 1.442695
  %v2460 = vpow.pop %v2459
  %v2461 = vmul.f32 %v2450, 1.442695
  %v2462 = vpow.pop %v2461
  %v2463 = vmul.f32 %v2451, 1.442695
  %v2464 = vpow.pop %v2463
  %v2465 = vmul.f32 %v2452, 1.442695
  %v2466 = vpow.pop %v2465
  %v2467 = vmul.f32 %v2453, 1.442695
  %v2468 = vpow.pop %v2467
  %v2469 = vmul.f32 %v2454, 1.442695
  %v2470 = vpow.pop %v2469
  %2479 = vset.pattern.permute.xlu0 0
  %2480 = vperm.xlu0 %2479, %v2456
  %v2481 = vpop.permute.xlu0 %2480
  %2482 = vset.pattern.permute.xlu0 0
  %2483 = vperm.xlu0 %2482, %v2458
  %v2484 = vpop.permute.xlu0 %2483
  %2485 = vset.pattern.permute.xlu0 0
  %2486 = vperm.xlu0 %2485, %v2460
  %v2487 = vpop.permute.xlu0 %2486
  %2488 = vset.pattern.permute.xlu0 0
  %2489 = vperm.xlu0 %2488, %v2462
  %v2490 = vpop.permute.xlu0 %2489
  %2491 = vset.pattern.permute.xlu0 0
  %2492 = vperm.xlu0 %2491, %v2464
  %v2493 = vpop.permute.xlu0 %2492
  %2494 = vset.pattern.permute.xlu0 0
  %2495 = vperm.xlu0 %2494, %v2466
  %v2496 = vpop.permute.xlu0 %2495
  %2497 = vset.pattern.permute.xlu0 0
  %2498 = vperm.xlu0 %2497, %v2468
  %v2499 = vpop.permute.xlu0 %2498
  %2500 = vset.pattern.permute.xlu0 0
  %2501 = vperm.xlu0 %2500, %v2470
  %v2502 = vpop.permute.xlu0 %2501
  %v2503 = vlaneseq
  %v2504 = vshrl.u32 %v2503, 7
  %v2505 = vsub.s32 %v558, %v2504
  %v2506 = vrot.slane %v2481, %v2505
  %v2507 = vlaneseq
  %v2508 = vshrl.u32 %v2507, 7
  %v2509 = vsub.s32 %v558, %v2508
  %v2510 = vrot.slane %v2484, %v2509
  %v2511 = vlaneseq
  %v2512 = vshrl.u32 %v2511, 7
  %v2513 = vsub.s32 %v558, %v2512
  %v2514 = vrot.slane %v2487, %v2513
  %v2515 = vlaneseq
  %v2516 = vshrl.u32 %v2515, 7
  %v2517 = vsub.s32 %v558, %v2516
  %v2518 = vrot.slane %v2490, %v2517
  %v2519 = vlaneseq
  %v2520 = vshrl.u32 %v2519, 7
  %v2521 = vsub.s32 %v558, %v2520
  %v2522 = vrot.slane %v2493, %v2521
  %v2523 = vlaneseq
  %v2524 = vshrl.u32 %v2523, 7
  %v2525 = vsub.s32 %v558, %v2524
  %v2526 = vrot.slane %v2496, %v2525
  %v2527 = vlaneseq
  %v2528 = vshrl.u32 %v2527, 7
  %v2529 = vsub.s32 %v558, %v2528
  %v2530 = vrot.slane %v2499, %v2529
  %v2531 = vlaneseq
  %v2532 = vshrl.u32 %v2531, 7
  %v2533 = vsub.s32 %v558, %v2532
  %v2534 = vrot.slane %v2502, %v2533
  %v2535 = vsel %vm591, %v2510, %v2506
  %v2536 = vsel %vm593, %v2514, %v2535
  %v2537 = vsel %vm595, %v2518, %v2536
  %v2538 = vsel %vm597, %v2522, %v2537
  %v2539 = vsel %vm599, %v2526, %v2538
  %v2540 = vsel %vm601, %v2530, %v2539
  %v2541 = vsel %vm603, %v2534, %v2540
  %v2543 = vsel %vm606, %v2541, 0.0
  %2544 = vadd.xlane.f32.xlu0 %v2543
  %v2545 = vpop.xlane.xlu0 %2544
  %v2546 = vrcp.pop %v2545
  %v2555 = vmul.f32 %v2481, %v342
  %v2556 = vmul.f32 %v2484, %v343
  %v2557 = vmul.f32 %v2487, %v344
  %v2558 = vmul.f32 %v2490, %v345
  %v2559 = vmul.f32 %v2493, %v346
  %v2560 = vmul.f32 %v2496, %v347
  %v2561 = vmul.f32 %v2499, %v348
  %v2562 = vmul.f32 %v2502, %v349
  %v2563 = vsel %vm89, %v2555, 0.0
  %v2564 = vrot.slane %v2563, 4
  %v2565 = vadd.f32 %v2563, %v2564
  %v2566 = vrot.slane %v2565, 2
  %v2567 = vadd.f32 %v2565, %v2566
  %v2568 = vrot.slane %v2567, 1
  %v2569 = vadd.f32 %v2567, %v2568
  %v2570 = vsel %vm89, %v2556, 0.0
  %v2571 = vrot.slane %v2570, 4
  %v2572 = vadd.f32 %v2570, %v2571
  %v2573 = vrot.slane %v2572, 2
  %v2574 = vadd.f32 %v2572, %v2573
  %v2575 = vrot.slane %v2574, 1
  %v2576 = vadd.f32 %v2574, %v2575
  %v2577 = vsel %vm89, %v2557, 0.0
  %v2578 = vrot.slane %v2577, 4
  %v2579 = vadd.f32 %v2577, %v2578
  %v2580 = vrot.slane %v2579, 2
  %v2581 = vadd.f32 %v2579, %v2580
  %v2582 = vrot.slane %v2581, 1
  %v2583 = vadd.f32 %v2581, %v2582
  %v2584 = vsel %vm89, %v2558, 0.0
  %v2585 = vrot.slane %v2584, 4
  %v2586 = vadd.f32 %v2584, %v2585
  %v2587 = vrot.slane %v2586, 2
  %v2588 = vadd.f32 %v2586, %v2587
  %v2589 = vrot.slane %v2588, 1
  %v2590 = vadd.f32 %v2588, %v2589
  %v2591 = vsel %vm89, %v2559, 0.0
  %v2592 = vrot.slane %v2591, 4
  %v2593 = vadd.f32 %v2591, %v2592
  %v2594 = vrot.slane %v2593, 2
  %v2595 = vadd.f32 %v2593, %v2594
  %v2596 = vrot.slane %v2595, 1
  %v2597 = vadd.f32 %v2595, %v2596
  %v2598 = vsel %vm89, %v2560, 0.0
  %v2599 = vrot.slane %v2598, 4
  %v2600 = vadd.f32 %v2598, %v2599
  %v2601 = vrot.slane %v2600, 2
  %v2602 = vadd.f32 %v2600, %v2601
  %v2603 = vrot.slane %v2602, 1
  %v2604 = vadd.f32 %v2602, %v2603
  %v2605 = vsel %vm89, %v2561, 0.0
  %v2606 = vrot.slane %v2605, 4
  %v2607 = vadd.f32 %v2605, %v2606
  %v2608 = vrot.slane %v2607, 2
  %v2609 = vadd.f32 %v2607, %v2608
  %v2610 = vrot.slane %v2609, 1
  %v2611 = vadd.f32 %v2609, %v2610
  %v2612 = vsel %vm89, %v2562, 0.0
  %v2613 = vrot.slane %v2612, 4
  %v2614 = vadd.f32 %v2612, %v2613
  %v2615 = vrot.slane %v2614, 2
  %v2616 = vadd.f32 %v2614, %v2615
  %v2617 = vrot.slane %v2616, 1
  %v2618 = vadd.f32 %v2616, %v2617
  %v2620 = vrot.slane %v2546, 1
  %v2621 = vrot.slane %v2546, 2
  %v2622 = vrot.slane %v2546, 3
  %v2623 = vrot.slane %v2546, 4
  %v2624 = vrot.slane %v2546, 5
  %v2625 = vrot.slane %v2546, 6
  %v2626 = vrot.slane %v2546, 7
  %v2635 = vmul.f32 %v2569, %v2546
  %v2636 = vmul.f32 %v2576, %v2620
  %v2637 = vmul.f32 %v2583, %v2621
  %v2638 = vmul.f32 %v2590, %v2622
  %v2639 = vmul.f32 %v2597, %v2623
  %v2640 = vmul.f32 %v2604, %v2624
  %v2641 = vmul.f32 %v2611, %v2625
  %v2642 = vmul.f32 %v2618, %v2626
  %s2643 = scalar_lea.vmem [#allocation3], 24
  %v2644 = vld [vmem:[%s2643] sm:$0xff]
  %v2645 = vpack.c.bf16 %v2635, %v2635
  %v2646 = vpack.c.bf16 %v2636, %v2636
  %v2647 = vpack.c.bf16 %v2637, %v2637
  %v2648 = vpack.c.bf16 %v2638, %v2638
  %v2649 = vpack.c.bf16 %v2639, %v2639
  %v2650 = vpack.c.bf16 %v2640, %v2640
  %v2651 = vpack.c.bf16 %v2641, %v2641
  %v2652 = vpack.c.bf16 %v2642, %v2642
  %v2661 = vunpack.c.l.b16 %v2645
  %v2662 = vunpack.c.l.b16 %v2646
  %v2663 = vunpack.c.l.b16 %v2647
  %v2664 = vunpack.c.l.b16 %v2648
  %v2665 = vunpack.c.l.b16 %v2649
  %v2666 = vunpack.c.l.b16 %v2650
  %v2667 = vunpack.c.l.b16 %v2651
  %v2668 = vunpack.c.l.b16 %v2652
  %v2669 = vrot.slane %v2662, 7
  %v2670 = vsel %vm591, %v2669, %v2661
  %v2671 = vrot.slane %v2663, 6
  %v2672 = vsel %vm593, %v2671, %v2670
  %v2673 = vrot.slane %v2664, 5
  %v2674 = vsel %vm595, %v2673, %v2672
  %v2675 = vrot.slane %v2665, 4
  %v2676 = vsel %vm597, %v2675, %v2674
  %v2677 = vrot.slane %v2666, 3
  %v2678 = vsel %vm599, %v2677, %v2676
  %v2679 = vrot.slane %v2667, 2
  %v2680 = vsel %vm601, %v2679, %v2678
  %v2681 = vrot.slane %v2668, 1
  %v2682 = vsel %vm603, %v2681, %v2680
  %v2683 = vpack.c.b16 %v2682, %v2682
  %v2685 = vsel %vm89, %v2683, 0
  %2687 = vmatprep.subr.bf16.mxu0 0
  %2688 = vmatpush1.bf16.msra.mxu0 %v895
  %2689 = vmatprep.subr.bf16.mxu0 0
  %2690 = vmatpush1.bf16.msra.mxu0 %v896
  %2691 = vmatprep.subr.bf16.mxu0 0
  %2692 = vmatpush1.bf16.msra.mxu0 0
  %2693 = vmatprep.subr.bf16.mxu0 0
  %2694 = vmatpush1.bf16.msra.mxu0 0
  %2695 = vmatprep.subr.bf16.mxu0 0
  %2696 = vmatpush1.bf16.msra.mxu0 0
  %2697 = vmatprep.subr.bf16.mxu0 0
  %2698 = vmatpush1.bf16.msra.mxu0 0
  %2699 = vmatprep.subr.bf16.mxu0 0
  %2700 = vmatpush1.bf16.msra.mxu0 0
  %2701 = vmatprep.subr.bf16.mxu0 0
  %2702 = vmatpush1.bf16.msra.mxu0 0
  %2703 = vmatprep.subr.bf16.mxu0 0
  %2704 = vmatpush1.bf16.msra.mxu0 0
  %2705 = vmatprep.subr.bf16.mxu0 0
  %2706 = vmatpush1.bf16.msra.mxu0 0
  %2707 = vmatprep.subr.bf16.mxu0 0
  %2708 = vmatpush1.bf16.msra.mxu0 0
  %2709 = vmatprep.subr.bf16.mxu0 0
  %2710 = vmatpush1.bf16.msra.mxu0 0
  %2711 = vmatprep.subr.bf16.mxu0 0
  %2712 = vmatpush1.bf16.msra.mxu0 0
  %2713 = vmatprep.subr.bf16.mxu0 0
  %2714 = vmatpush1.bf16.msra.mxu0 0
  %2715 = vmatprep.subr.bf16.mxu0 0
  %2716 = vmatpush1.bf16.msra.mxu0 0
  %2717 = vmatprep.subr.bf16.mxu0 0
  %2718 = vmatpush1.bf16.msra.mxu0 0
  %2719 = vmatprep.mubr.bf16.mxu0 0
  %2720 = vmatmul.mubr.bf16.gmra.mrb[0].mxu0 %v2685
  %v2721 = vpop.f32.mrb[0].mxu0
  %v2722 = vadd.f32 0.0, %v2721
  %v2723 = vpop.f32.mrb[0].mxu0
  %v2724 = vpop.f32.mrb[0].mxu0
  %v2725 = vpop.f32.mrb[0].mxu0
  %2726 = vdwg.mxu0
  %v2727 = vadd.f32 %v2644, %v2722
  %2729 = vrot.lane.b32.xlu0 %v2216, 96
  %v2730 = vpop.permute.xlu0 %2729
  %v2732 = vadd.f32 %v2727, %v2730
  %v2733 = vxor.u32 %v2732, 2147483648
  %v2734 = vmul.f32 %v2733, 1.442695
  %v2735 = vpow.pop %v2734
  %v2736 = vadd.f32 %v2735, 1.0
  %v2737 = vrcp.pop %v2736
  %v2738 = vmul.f32 1.0, %v2737
  %2739 = vrot.lane.b32.xlu0 %v2216, 32
  %v2740 = vpop.permute.xlu0 %2739
  %v2742 = vmul.f32 %v2738, %v2740
  %2744 = vrot.lane.b32.xlu0 %v2742, 64
  %v2745 = vpop.permute.xlu0 %2744
  %v2747 = vadd.f32 %v2727, %v2745
  %v2748 = vtanh.pop %v2747
  %v2749 = vsub.f32 1.0, %v2738
  %2751 = vrot.lane.b32.xlu0 %v2748, 96
  %v2752 = vpop.permute.xlu0 %2751
  %v2754 = vmul.f32 %v2749, %v2752
  %v2755 = vmul.f32 %v2738, %v2162
  %v2756 = vadd.f32 %v2754, %v2755
  %2758 = vrot.lane.b32.xlu0 %v2756, 96
  %v2759 = vpop.permute.xlu0 %2758
  %s2761 = scalar_lea.vmem [#allocation2], 24
  %2762 = vst.msk [vmem:[%s2761] sm:$0xff] %vm89, %v2759
  %v2763 = vpack.c.bf16 %v2756, %v2756
  %2765 = vrot.lane.b32.xlu0 %v2763, 96
  %v2766 = vpop.permute.xlu0 %2765
  %v2768 = vsel %vm89, %v2766, 0
  %2770 = vmatprep.subr.bf16.mxu0 0
  %2771 = vmatpush1.bf16.msra.mxu0 %v360
  %2772 = vmatprep.subr.bf16.mxu0 0
  %2773 = vmatpush1.bf16.msra.mxu0 %v361
  %2774 = vmatprep.subr.bf16.mxu0 0
  %2775 = vmatpush1.bf16.msra.mxu0 0
  %2776 = vmatprep.subr.bf16.mxu0 0
  %2777 = vmatpush1.bf16.msra.mxu0 0
  %2778 = vmatprep.subr.bf16.mxu0 0
  %2779 = vmatpush1.bf16.msra.mxu0 0
  %2780 = vmatprep.subr.bf16.mxu0 0
  %2781 = vmatpush1.bf16.msra.mxu0 0
  %2782 = vmatprep.subr.bf16.mxu0 0
  %2783 = vmatpush1.bf16.msra.mxu0 0
  %2784 = vmatprep.subr.bf16.mxu0 0
  %2785 = vmatpush1.bf16.msra.mxu0 0
  %2786 = vmatprep.subr.bf16.mxu0 0
  %2787 = vmatpush1.bf16.msra.mxu0 0
  %2788 = vmatprep.subr.bf16.mxu0 0
  %2789 = vmatpush1.bf16.msra.mxu0 0
  %2790 = vmatprep.subr.bf16.mxu0 0
  %2791 = vmatpush1.bf16.msra.mxu0 0
  %2792 = vmatprep.subr.bf16.mxu0 0
  %2793 = vmatpush1.bf16.msra.mxu0 0
  %2794 = vmatprep.subr.bf16.mxu0 0
  %2795 = vmatpush1.bf16.msra.mxu0 0
  %2796 = vmatprep.subr.bf16.mxu0 0
  %2797 = vmatpush1.bf16.msra.mxu0 0
  %2798 = vmatprep.subr.bf16.mxu0 0
  %2799 = vmatpush1.bf16.msra.mxu0 0
  %2800 = vmatprep.subr.bf16.mxu0 0
  %2801 = vmatpush1.bf16.msra.mxu0 0
  %2802 = vmatprep.mubr.bf16.mxu0 0
  %2803 = vmatmul.mubr.bf16.gmra.mrb[0].mxu0 %v2768
  %v2804 = vpop.f32.mrb[0].mxu0
  %v2805 = vadd.f32 0.0, %v2804
  %v2806 = vpop.f32.mrb[0].mxu0
  %v2807 = vpop.f32.mrb[0].mxu0
  %v2808 = vpop.f32.mrb[0].mxu0
  %2809 = vdwg.mxu0
  %v2810 = vadd.f32 %v2805, %v408
  %v2812 = vcombine.high %v2805, %v2805
  %v2814 = vunpack.c.l.s4 1966171168
  %v2815 = vunpack.c.0.s8 %v2814
  %v2816 = vlaneseq
  %v2817 = vshrl.u32 %v2816, 7
  %v2818 = vsub.s32 %v2815, %v2817
  %v2819 = vrot.slane %v2805, %v2818
  %v2821 = vunpack.c.l.s4 1966171168
  %v2822 = vunpack.c.0.s8 %v2821
  %v2823 = vlaneseq
  %v2824 = vshrl.u32 %v2823, 7
  %v2825 = vsub.s32 %v2822, %v2824
  %v2826 = vrot.slane %v2812, %v2825
  %v2827 = vcombine.high %v2819, %v2819
  %v2828 = vcombine.high %v2826, %v2826
  %v2830 = vunpack.c.l.s4 1966171168
  %v2831 = vunpack.c.0.s8 %v2830
  %v2832 = vlaneseq
  %v2833 = vshrl.u32 %v2832, 7
  %v2834 = vsub.s32 %v2831, %v2833
  %v2835 = vrot.slane %v2819, %v2834
  %v2837 = vunpack.c.l.s4 1966171168
  %v2838 = vunpack.c.0.s8 %v2837
  %v2839 = vlaneseq
  %v2840 = vshrl.u32 %v2839, 7
  %v2841 = vsub.s32 %v2838, %v2840
  %v2842 = vrot.slane %v2826, %v2841
  %v2844 = vunpack.c.l.s4 1966171168
  %v2845 = vunpack.c.0.s8 %v2844
  %v2846 = vlaneseq
  %v2847 = vshrl.u32 %v2846, 7
  %v2848 = vsub.s32 %v2845, %v2847
  %v2849 = vrot.slane %v2827, %v2848
  %v2851 = vunpack.c.l.s4 1966171168
  %v2852 = vunpack.c.0.s8 %v2851
  %v2853 = vlaneseq
  %v2854 = vshrl.u32 %v2853, 7
  %v2855 = vsub.s32 %v2852, %v2854
  %v2856 = vrot.slane %v2828, %v2855
  %v2857 = vcombine.high %v2835, %v2835
  %v2858 = vcombine.high %v2842, %v2842
  %v2859 = vcombine.high %v2849, %v2849
  %v2860 = vcombine.high %v2856, %v2856
  %v2861 = vlaneseq
  %v2862 = vshrl.u32 %v2861, 7
  %v2863 = vsub.s32 0, %v2862
  %v2864 = vrot.slane %v2835, %v2863
  %v2865 = vlaneseq
  %v2866 = vshrl.u32 %v2865, 7
  %v2867 = vsub.s32 0, %v2866
  %v2868 = vrot.slane %v2849, %v2867
  %v2869 = vlaneseq
  %v2870 = vshrl.u32 %v2869, 7
  %v2871 = vsub.s32 0, %v2870
  %v2872 = vrot.slane %v2857, %v2871
  %v2873 = vlaneseq
  %v2874 = vshrl.u32 %v2873, 7
  %v2875 = vsub.s32 0, %v2874
  %v2876 = vrot.slane %v2859, %v2875
  %v2877 = vlaneseq
  %v2878 = vshrl.u32 %v2877, 7
  %v2879 = vsub.s32 0, %v2878
  %v2880 = vrot.slane %v2842, %v2879
  %v2881 = vlaneseq
  %v2882 = vshrl.u32 %v2881, 7
  %v2883 = vsub.s32 0, %v2882
  %v2884 = vrot.slane %v2856, %v2883
  %v2885 = vlaneseq
  %v2886 = vshrl.u32 %v2885, 7
  %v2887 = vsub.s32 0, %v2886
  %v2888 = vrot.slane %v2858, %v2887
  %v2889 = vlaneseq
  %v2890 = vshrl.u32 %v2889, 7
  %v2891 = vsub.s32 0, %v2890
  %v2892 = vrot.slane %v2860, %v2891
  %v2901 = vadd.f32 %v174, %v2864
  %v2902 = vadd.f32 %v175, %v2868
  %v2903 = vadd.f32 %v176, %v2872
  %v2904 = vadd.f32 %v177, %v2876
  %v2905 = vadd.f32 %v178, %v2880
  %v2906 = vadd.f32 %v179, %v2884
  %v2907 = vadd.f32 %v180, %v2888
  %v2908 = vadd.f32 %v181, %v2892
  %v2909 = vtanh.pop %v2901
  %v2910 = vtanh.pop %v2902
  %v2911 = vtanh.pop %v2903
  %v2912 = vtanh.pop %v2904
  %v2913 = vtanh.pop %v2905
  %v2914 = vtanh.pop %v2906
  %v2915 = vtanh.pop %v2907
  %v2916 = vtanh.pop %v2908
  %v2917 = vmul.f32 %v2909, %v340
  %v2918 = vmul.f32 %v2910, %v340
  %v2919 = vmul.f32 %v2911, %v340
  %v2920 = vmul.f32 %v2912, %v340
  %v2921 = vmul.f32 %v2913, %v340
  %v2922 = vmul.f32 %v2914, %v340
  %v2923 = vmul.f32 %v2915, %v340
  %v2924 = vmul.f32 %v2916, %v340
  %v2925 = vsel %vm89, %v2917, 0.0
  %2926 = vadd.xlane.f32.xlu0 %v2925
  %v2927 = vpop.xlane.xlu0 %2926
  %v2928 = vsel %vm89, %v2918, 0.0
  %2929 = vadd.xlane.f32.xlu0 %v2928
  %v2930 = vpop.xlane.xlu0 %2929
  %v2931 = vsel %vm89, %v2919, 0.0
  %2932 = vadd.xlane.f32.xlu0 %v2931
  %v2933 = vpop.xlane.xlu0 %2932
  %v2934 = vsel %vm89, %v2920, 0.0
  %2935 = vadd.xlane.f32.xlu0 %v2934
  %v2936 = vpop.xlane.xlu0 %2935
  %v2937 = vsel %vm89, %v2921, 0.0
  %2938 = vadd.xlane.f32.xlu0 %v2937
  %v2939 = vpop.xlane.xlu0 %2938
  %v2940 = vsel %vm89, %v2922, 0.0
  %2941 = vadd.xlane.f32.xlu0 %v2940
  %v2942 = vpop.xlane.xlu0 %2941
  %v2943 = vsel %vm89, %v2923, 0.0
  %2944 = vadd.xlane.f32.xlu0 %v2943
  %v2945 = vpop.xlane.xlu0 %2944
  %v2946 = vsel %vm89, %v2924, 0.0
  %2947 = vadd.xlane.f32.xlu0 %v2946
  %v2948 = vpop.xlane.xlu0 %2947
  %v2957 = vlaneseq
  %v2958 = vshrl.u32 %v2957, 7
  %v2959 = vsub.s32 %v558, %v2958
  %v2960 = vrot.slane %v2927, %v2959
  %v2961 = vlaneseq
  %v2962 = vshrl.u32 %v2961, 7
  %v2963 = vsub.s32 %v558, %v2962
  %v2964 = vrot.slane %v2930, %v2963
  %v2965 = vlaneseq
  %v2966 = vshrl.u32 %v2965, 7
  %v2967 = vsub.s32 %v558, %v2966
  %v2968 = vrot.slane %v2933, %v2967
  %v2969 = vlaneseq
  %v2970 = vshrl.u32 %v2969, 7
  %v2971 = vsub.s32 %v558, %v2970
  %v2972 = vrot.slane %v2936, %v2971
  %v2973 = vlaneseq
  %v2974 = vshrl.u32 %v2973, 7
  %v2975 = vsub.s32 %v558, %v2974
  %v2976 = vrot.slane %v2939, %v2975
  %v2977 = vlaneseq
  %v2978 = vshrl.u32 %v2977, 7
  %v2979 = vsub.s32 %v558, %v2978
  %v2980 = vrot.slane %v2942, %v2979
  %v2981 = vlaneseq
  %v2982 = vshrl.u32 %v2981, 7
  %v2983 = vsub.s32 %v558, %v2982
  %v2984 = vrot.slane %v2945, %v2983
  %v2985 = vlaneseq
  %v2986 = vshrl.u32 %v2985, 7
  %v2987 = vsub.s32 %v558, %v2986
  %v2988 = vrot.slane %v2948, %v2987
  %v2989 = vsel %vm591, %v2964, %v2960
  %v2990 = vsel %vm593, %v2968, %v2989
  %v2991 = vsel %vm595, %v2972, %v2990
  %v2992 = vsel %vm597, %v2976, %v2991
  %v2993 = vsel %vm599, %v2980, %v2992
  %v2994 = vsel %vm601, %v2984, %v2993
  %v2995 = vsel %vm603, %v2988, %v2994
  %v2997 = vsel %vm606, %v2995, -inf
  %2998 = vmax.xlane.f32.xlu0 %v2997
  %v2999 = vpop.xlane.xlu0 %2998
  %v3001 = vlaneseq
  %v3002 = vshrl.u32 %v3001, 7
  %v3003 = vsub.s32 0, %v3002
  %v3004 = vrot.slane %v2999, %v3003
  %v3005 = vlaneseq
  %v3006 = vshrl.u32 %v3005, 7
  %v3007 = vsub.s32 1, %v3006
  %v3008 = vrot.slane %v2999, %v3007
  %v3009 = vlaneseq
  %v3010 = vshrl.u32 %v3009, 7
  %v3011 = vsub.s32 2, %v3010
  %v3012 = vrot.slane %v2999, %v3011
  %v3013 = vlaneseq
  %v3014 = vshrl.u32 %v3013, 7
  %v3015 = vsub.s32 3, %v3014
  %v3016 = vrot.slane %v2999, %v3015
  %v3017 = vlaneseq
  %v3018 = vshrl.u32 %v3017, 7
  %v3019 = vsub.s32 4, %v3018
  %v3020 = vrot.slane %v2999, %v3019
  %v3021 = vlaneseq
  %v3022 = vshrl.u32 %v3021, 7
  %v3023 = vsub.s32 5, %v3022
  %v3024 = vrot.slane %v2999, %v3023
  %v3025 = vlaneseq
  %v3026 = vshrl.u32 %v3025, 7
  %v3027 = vsub.s32 6, %v3026
  %v3028 = vrot.slane %v2999, %v3027
  %v3029 = vlaneseq
  %v3030 = vshrl.u32 %v3029, 7
  %v3031 = vsub.s32 7, %v3030
  %v3032 = vrot.slane %v2999, %v3031
  %v3041 = vsub.f32 %v2927, %v3004
  %v3042 = vsub.f32 %v2930, %v3008
  %v3043 = vsub.f32 %v2933, %v3012
  %v3044 = vsub.f32 %v2936, %v3016
  %v3045 = vsub.f32 %v2939, %v3020
  %v3046 = vsub.f32 %v2942, %v3024
  %v3047 = vsub.f32 %v2945, %v3028
  %v3048 = vsub.f32 %v2948, %v3032
  %v3049 = vmul.f32 %v3041, 1.442695
  %v3050 = vpow.pop %v3049
  %v3051 = vmul.f32 %v3042, 1.442695
  %v3052 = vpow.pop %v3051
  %v3053 = vmul.f32 %v3043, 1.442695
  %v3054 = vpow.pop %v3053
  %v3055 = vmul.f32 %v3044, 1.442695
  %v3056 = vpow.pop %v3055
  %v3057 = vmul.f32 %v3045, 1.442695
  %v3058 = vpow.pop %v3057
  %v3059 = vmul.f32 %v3046, 1.442695
  %v3060 = vpow.pop %v3059
  %v3061 = vmul.f32 %v3047, 1.442695
  %v3062 = vpow.pop %v3061
  %v3063 = vmul.f32 %v3048, 1.442695
  %v3064 = vpow.pop %v3063
  %3073 = vset.pattern.permute.xlu0 0
  %3074 = vperm.xlu0 %3073, %v3050
  %v3075 = vpop.permute.xlu0 %3074
  %3076 = vset.pattern.permute.xlu0 0
  %3077 = vperm.xlu0 %3076, %v3052
  %v3078 = vpop.permute.xlu0 %3077
  %3079 = vset.pattern.permute.xlu0 0
  %3080 = vperm.xlu0 %3079, %v3054
  %v3081 = vpop.permute.xlu0 %3080
  %3082 = vset.pattern.permute.xlu0 0
  %3083 = vperm.xlu0 %3082, %v3056
  %v3084 = vpop.permute.xlu0 %3083
  %3085 = vset.pattern.permute.xlu0 0
  %3086 = vperm.xlu0 %3085, %v3058
  %v3087 = vpop.permute.xlu0 %3086
  %3088 = vset.pattern.permute.xlu0 0
  %3089 = vperm.xlu0 %3088, %v3060
  %v3090 = vpop.permute.xlu0 %3089
  %3091 = vset.pattern.permute.xlu0 0
  %3092 = vperm.xlu0 %3091, %v3062
  %v3093 = vpop.permute.xlu0 %3092
  %3094 = vset.pattern.permute.xlu0 0
  %3095 = vperm.xlu0 %3094, %v3064
  %v3096 = vpop.permute.xlu0 %3095
  %v3097 = vlaneseq
  %v3098 = vshrl.u32 %v3097, 7
  %v3099 = vsub.s32 %v558, %v3098
  %v3100 = vrot.slane %v3075, %v3099
  %v3101 = vlaneseq
  %v3102 = vshrl.u32 %v3101, 7
  %v3103 = vsub.s32 %v558, %v3102
  %v3104 = vrot.slane %v3078, %v3103
  %v3105 = vlaneseq
  %v3106 = vshrl.u32 %v3105, 7
  %v3107 = vsub.s32 %v558, %v3106
  %v3108 = vrot.slane %v3081, %v3107
  %v3109 = vlaneseq
  %v3110 = vshrl.u32 %v3109, 7
  %v3111 = vsub.s32 %v558, %v3110
  %v3112 = vrot.slane %v3084, %v3111
  %v3113 = vlaneseq
  %v3114 = vshrl.u32 %v3113, 7
  %v3115 = vsub.s32 %v558, %v3114
  %v3116 = vrot.slane %v3087, %v3115
  %v3117 = vlaneseq
  %v3118 = vshrl.u32 %v3117, 7
  %v3119 = vsub.s32 %v558, %v3118
  %v3120 = vrot.slane %v3090, %v3119
  %v3121 = vlaneseq
  %v3122 = vshrl.u32 %v3121, 7
  %v3123 = vsub.s32 %v558, %v3122
  %v3124 = vrot.slane %v3093, %v3123
  %v3125 = vlaneseq
  %v3126 = vshrl.u32 %v3125, 7
  %v3127 = vsub.s32 %v558, %v3126
  %v3128 = vrot.slane %v3096, %v3127
  %v3129 = vsel %vm591, %v3104, %v3100
  %v3130 = vsel %vm593, %v3108, %v3129
  %v3131 = vsel %vm595, %v3112, %v3130
  %v3132 = vsel %vm597, %v3116, %v3131
  %v3133 = vsel %vm599, %v3120, %v3132
  %v3134 = vsel %vm601, %v3124, %v3133
  %v3135 = vsel %vm603, %v3128, %v3134
  %v3137 = vsel %vm606, %v3135, 0.0
  %3138 = vadd.xlane.f32.xlu0 %v3137
  %v3139 = vpop.xlane.xlu0 %3138
  %v3140 = vrcp.pop %v3139
  %v3149 = vmul.f32 %v3075, %v342
  %v3150 = vmul.f32 %v3078, %v343
  %v3151 = vmul.f32 %v3081, %v344
  %v3152 = vmul.f32 %v3084, %v345
  %v3153 = vmul.f32 %v3087, %v346
  %v3154 = vmul.f32 %v3090, %v347
  %v3155 = vmul.f32 %v3093, %v348
  %v3156 = vmul.f32 %v3096, %v349
  %v3157 = vsel %vm89, %v3149, 0.0
  %v3158 = vrot.slane %v3157, 4
  %v3159 = vadd.f32 %v3157, %v3158
  %v3160 = vrot.slane %v3159, 2
  %v3161 = vadd.f32 %v3159, %v3160
  %v3162 = vrot.slane %v3161, 1
  %v3163 = vadd.f32 %v3161, %v3162
  %v3164 = vsel %vm89, %v3150, 0.0
  %v3165 = vrot.slane %v3164, 4
  %v3166 = vadd.f32 %v3164, %v3165
  %v3167 = vrot.slane %v3166, 2
  %v3168 = vadd.f32 %v3166, %v3167
  %v3169 = vrot.slane %v3168, 1
  %v3170 = vadd.f32 %v3168, %v3169
  %v3171 = vsel %vm89, %v3151, 0.0
  %v3172 = vrot.slane %v3171, 4
  %v3173 = vadd.f32 %v3171, %v3172
  %v3174 = vrot.slane %v3173, 2
  %v3175 = vadd.f32 %v3173, %v3174
  %v3176 = vrot.slane %v3175, 1
  %v3177 = vadd.f32 %v3175, %v3176
  %v3178 = vsel %vm89, %v3152, 0.0
  %v3179 = vrot.slane %v3178, 4
  %v3180 = vadd.f32 %v3178, %v3179
  %v3181 = vrot.slane %v3180, 2
  %v3182 = vadd.f32 %v3180, %v3181
  %v3183 = vrot.slane %v3182, 1
  %v3184 = vadd.f32 %v3182, %v3183
  %v3185 = vsel %vm89, %v3153, 0.0
  %v3186 = vrot.slane %v3185, 4
  %v3187 = vadd.f32 %v3185, %v3186
  %v3188 = vrot.slane %v3187, 2
  %v3189 = vadd.f32 %v3187, %v3188
  %v3190 = vrot.slane %v3189, 1
  %v3191 = vadd.f32 %v3189, %v3190
  %v3192 = vsel %vm89, %v3154, 0.0
  %v3193 = vrot.slane %v3192, 4
  %v3194 = vadd.f32 %v3192, %v3193
  %v3195 = vrot.slane %v3194, 2
  %v3196 = vadd.f32 %v3194, %v3195
  %v3197 = vrot.slane %v3196, 1
  %v3198 = vadd.f32 %v3196, %v3197
  %v3199 = vsel %vm89, %v3155, 0.0
  %v3200 = vrot.slane %v3199, 4
  %v3201 = vadd.f32 %v3199, %v3200
  %v3202 = vrot.slane %v3201, 2
  %v3203 = vadd.f32 %v3201, %v3202
  %v3204 = vrot.slane %v3203, 1
  %v3205 = vadd.f32 %v3203, %v3204
  %v3206 = vsel %vm89, %v3156, 0.0
  %v3207 = vrot.slane %v3206, 4
  %v3208 = vadd.f32 %v3206, %v3207
  %v3209 = vrot.slane %v3208, 2
  %v3210 = vadd.f32 %v3208, %v3209
  %v3211 = vrot.slane %v3210, 1
  %v3212 = vadd.f32 %v3210, %v3211
  %v3214 = vrot.slane %v3140, 1
  %v3215 = vrot.slane %v3140, 2
  %v3216 = vrot.slane %v3140, 3
  %v3217 = vrot.slane %v3140, 4
  %v3218 = vrot.slane %v3140, 5
  %v3219 = vrot.slane %v3140, 6
  %v3220 = vrot.slane %v3140, 7
  %v3229 = vmul.f32 %v3163, %v3140
  %v3230 = vmul.f32 %v3170, %v3214
  %v3231 = vmul.f32 %v3177, %v3215
  %v3232 = vmul.f32 %v3184, %v3216
  %v3233 = vmul.f32 %v3191, %v3217
  %v3234 = vmul.f32 %v3198, %v3218
  %v3235 = vmul.f32 %v3205, %v3219
  %v3236 = vmul.f32 %v3212, %v3220
  %s3237 = scalar_lea.vmem [#allocation3], 32
  %v3238 = vld [vmem:[%s3237] sm:$0xff]
  %v3239 = vpack.c.bf16 %v3229, %v3229
  %v3240 = vpack.c.bf16 %v3230, %v3230
  %v3241 = vpack.c.bf16 %v3231, %v3231
  %v3242 = vpack.c.bf16 %v3232, %v3232
  %v3243 = vpack.c.bf16 %v3233, %v3233
  %v3244 = vpack.c.bf16 %v3234, %v3234
  %v3245 = vpack.c.bf16 %v3235, %v3235
  %v3246 = vpack.c.bf16 %v3236, %v3236
  %v3255 = vunpack.c.l.b16 %v3239
  %v3256 = vunpack.c.l.b16 %v3240
  %v3257 = vunpack.c.l.b16 %v3241
  %v3258 = vunpack.c.l.b16 %v3242
  %v3259 = vunpack.c.l.b16 %v3243
  %v3260 = vunpack.c.l.b16 %v3244
  %v3261 = vunpack.c.l.b16 %v3245
  %v3262 = vunpack.c.l.b16 %v3246
  %v3263 = vrot.slane %v3256, 7
  %v3264 = vsel %vm591, %v3263, %v3255
  %v3265 = vrot.slane %v3257, 6
  %v3266 = vsel %vm593, %v3265, %v3264
  %v3267 = vrot.slane %v3258, 5
  %v3268 = vsel %vm595, %v3267, %v3266
  %v3269 = vrot.slane %v3259, 4
  %v3270 = vsel %vm597, %v3269, %v3268
  %v3271 = vrot.slane %v3260, 3
  %v3272 = vsel %vm599, %v3271, %v3270
  %v3273 = vrot.slane %v3261, 2
  %v3274 = vsel %vm601, %v3273, %v3272
  %v3275 = vrot.slane %v3262, 1
  %v3276 = vsel %vm603, %v3275, %v3274
  %v3277 = vpack.c.b16 %v3276, %v3276
  %v3279 = vsel %vm89, %v3277, 0
  %3281 = vmatprep.subr.bf16.mxu0 0
  %3282 = vmatpush1.bf16.msra.mxu0 %v895
  %3283 = vmatprep.subr.bf16.mxu0 0
  %3284 = vmatpush1.bf16.msra.mxu0 %v896
  %3285 = vmatprep.subr.bf16.mxu0 0
  %3286 = vmatpush1.bf16.msra.mxu0 0
  %3287 = vmatprep.subr.bf16.mxu0 0
  %3288 = vmatpush1.bf16.msra.mxu0 0
  %3289 = vmatprep.subr.bf16.mxu0 0
  %3290 = vmatpush1.bf16.msra.mxu0 0
  %3291 = vmatprep.subr.bf16.mxu0 0
  %3292 = vmatpush1.bf16.msra.mxu0 0
  %3293 = vmatprep.subr.bf16.mxu0 0
  %3294 = vmatpush1.bf16.msra.mxu0 0
  %3295 = vmatprep.subr.bf16.mxu0 0
  %3296 = vmatpush1.bf16.msra.mxu0 0
  %3297 = vmatprep.subr.bf16.mxu0 0
  %3298 = vmatpush1.bf16.msra.mxu0 0
  %3299 = vmatprep.subr.bf16.mxu0 0
  %3300 = vmatpush1.bf16.msra.mxu0 0
  %3301 = vmatprep.subr.bf16.mxu0 0
  %3302 = vmatpush1.bf16.msra.mxu0 0
  %3303 = vmatprep.subr.bf16.mxu0 0
  %3304 = vmatpush1.bf16.msra.mxu0 0
  %3305 = vmatprep.subr.bf16.mxu0 0
  %3306 = vmatpush1.bf16.msra.mxu0 0
  %3307 = vmatprep.subr.bf16.mxu0 0
  %3308 = vmatpush1.bf16.msra.mxu0 0
  %3309 = vmatprep.subr.bf16.mxu0 0
  %3310 = vmatpush1.bf16.msra.mxu0 0
  %3311 = vmatprep.subr.bf16.mxu0 0
  %3312 = vmatpush1.bf16.msra.mxu0 0
  %3313 = vmatprep.mubr.bf16.mxu0 0
  %3314 = vmatmul.mubr.bf16.gmra.mrb[0].mxu0 %v3279
  %v3315 = vpop.f32.mrb[0].mxu0
  %v3316 = vadd.f32 0.0, %v3315
  %v3317 = vpop.f32.mrb[0].mxu0
  %v3318 = vpop.f32.mrb[0].mxu0
  %v3319 = vpop.f32.mrb[0].mxu0
  %3320 = vdwg.mxu0
  %v3321 = vadd.f32 %v3238, %v3316
  %3323 = vrot.lane.b32.xlu0 %v2810, 96
  %v3324 = vpop.permute.xlu0 %3323
  %v3326 = vadd.f32 %v3321, %v3324
  %v3327 = vxor.u32 %v3326, 2147483648
  %v3328 = vmul.f32 %v3327, 1.442695
  %v3329 = vpow.pop %v3328
  %v3330 = vadd.f32 %v3329, 1.0
  %v3331 = vrcp.pop %v3330
  %v3332 = vmul.f32 1.0, %v3331
  %3333 = vrot.lane.b32.xlu0 %v2810, 32
  %v3334 = vpop.permute.xlu0 %3333
  %v3336 = vmul.f32 %v3332, %v3334
  %3338 = vrot.lane.b32.xlu0 %v3336, 64
  %v3339 = vpop.permute.xlu0 %3338
  %v3341 = vadd.f32 %v3321, %v3339
  %v3342 = vtanh.pop %v3341
  %v3343 = vsub.f32 1.0, %v3332
  %3345 = vrot.lane.b32.xlu0 %v3342, 96
  %v3346 = vpop.permute.xlu0 %3345
  %v3348 = vmul.f32 %v3343, %v3346
  %v3349 = vmul.f32 %v3332, %v2756
  %v3350 = vadd.f32 %v3348, %v3349
  %3352 = vrot.lane.b32.xlu0 %v3350, 96
  %v3353 = vpop.permute.xlu0 %3352
  %s3355 = scalar_lea.vmem [#allocation2], 32
  %3356 = vst.msk [vmem:[%s3355] sm:$0xff] %vm89, %v3353
  %v3357 = vpack.c.bf16 %v3350, %v3350
  %3359 = vrot.lane.b32.xlu0 %v3357, 96
  %v3360 = vpop.permute.xlu0 %3359
  %v3362 = vsel %vm89, %v3360, 0
  %3364 = vmatprep.subr.bf16.mxu0 0
  %3365 = vmatpush1.bf16.msra.mxu0 %v360
  %3366 = vmatprep.subr.bf16.mxu0 0
  %3367 = vmatpush1.bf16.msra.mxu0 %v361
  %3368 = vmatprep.subr.bf16.mxu0 0
  %3369 = vmatpush1.bf16.msra.mxu0 0
  %3370 = vmatprep.subr.bf16.mxu0 0
  %3371 = vmatpush1.bf16.msra.mxu0 0
  %3372 = vmatprep.subr.bf16.mxu0 0
  %3373 = vmatpush1.bf16.msra.mxu0 0
  %3374 = vmatprep.subr.bf16.mxu0 0
  %3375 = vmatpush1.bf16.msra.mxu0 0
  %3376 = vmatprep.subr.bf16.mxu0 0
  %3377 = vmatpush1.bf16.msra.mxu0 0
  %3378 = vmatprep.subr.bf16.mxu0 0
  %3379 = vmatpush1.bf16.msra.mxu0 0
  %3380 = vmatprep.subr.bf16.mxu0 0
  %3381 = vmatpush1.bf16.msra.mxu0 0
  %3382 = vmatprep.subr.bf16.mxu0 0
  %3383 = vmatpush1.bf16.msra.mxu0 0
  %3384 = vmatprep.subr.bf16.mxu0 0
  %3385 = vmatpush1.bf16.msra.mxu0 0
  %3386 = vmatprep.subr.bf16.mxu0 0
  %3387 = vmatpush1.bf16.msra.mxu0 0
  %3388 = vmatprep.subr.bf16.mxu0 0
  %3389 = vmatpush1.bf16.msra.mxu0 0
  %3390 = vmatprep.subr.bf16.mxu0 0
  %3391 = vmatpush1.bf16.msra.mxu0 0
  %3392 = vmatprep.subr.bf16.mxu0 0
  %3393 = vmatpush1.bf16.msra.mxu0 0
  %3394 = vmatprep.subr.bf16.mxu0 0
  %3395 = vmatpush1.bf16.msra.mxu0 0
  %3396 = vmatprep.mubr.bf16.mxu0 0
  %3397 = vmatmul.mubr.bf16.gmra.mrb[0].mxu0 %v3362
  %v3398 = vpop.f32.mrb[0].mxu0
  %v3399 = vadd.f32 0.0, %v3398
  %v3400 = vpop.f32.mrb[0].mxu0
  %v3401 = vpop.f32.mrb[0].mxu0
  %v3402 = vpop.f32.mrb[0].mxu0
  %3403 = vdwg.mxu0
  %v3404 = vadd.f32 %v3399, %v408
  %v3406 = vcombine.high %v3399, %v3399
  %v3408 = vunpack.c.l.s4 1966171168
  %v3409 = vunpack.c.0.s8 %v3408
  %v3410 = vlaneseq
  %v3411 = vshrl.u32 %v3410, 7
  %v3412 = vsub.s32 %v3409, %v3411
  %v3413 = vrot.slane %v3399, %v3412
  %v3415 = vunpack.c.l.s4 1966171168
  %v3416 = vunpack.c.0.s8 %v3415
  %v3417 = vlaneseq
  %v3418 = vshrl.u32 %v3417, 7
  %v3419 = vsub.s32 %v3416, %v3418
  %v3420 = vrot.slane %v3406, %v3419
  %v3421 = vcombine.high %v3413, %v3413
  %v3422 = vcombine.high %v3420, %v3420
  %v3424 = vunpack.c.l.s4 1966171168
  %v3425 = vunpack.c.0.s8 %v3424
  %v3426 = vlaneseq
  %v3427 = vshrl.u32 %v3426, 7
  %v3428 = vsub.s32 %v3425, %v3427
  %v3429 = vrot.slane %v3413, %v3428
  %v3431 = vunpack.c.l.s4 1966171168
  %v3432 = vunpack.c.0.s8 %v3431
  %v3433 = vlaneseq
  %v3434 = vshrl.u32 %v3433, 7
  %v3435 = vsub.s32 %v3432, %v3434
  %v3436 = vrot.slane %v3420, %v3435
  %v3438 = vunpack.c.l.s4 1966171168
  %v3439 = vunpack.c.0.s8 %v3438
  %v3440 = vlaneseq
  %v3441 = vshrl.u32 %v3440, 7
  %v3442 = vsub.s32 %v3439, %v3441
  %v3443 = vrot.slane %v3421, %v3442
  %v3445 = vunpack.c.l.s4 1966171168
  %v3446 = vunpack.c.0.s8 %v3445
  %v3447 = vlaneseq
  %v3448 = vshrl.u32 %v3447, 7
  %v3449 = vsub.s32 %v3446, %v3448
  %v3450 = vrot.slane %v3422, %v3449
  %v3451 = vcombine.high %v3429, %v3429
  %v3452 = vcombine.high %v3436, %v3436
  %v3453 = vcombine.high %v3443, %v3443
  %v3454 = vcombine.high %v3450, %v3450
  %v3455 = vlaneseq
  %v3456 = vshrl.u32 %v3455, 7
  %v3457 = vsub.s32 0, %v3456
  %v3458 = vrot.slane %v3429, %v3457
  %v3459 = vlaneseq
  %v3460 = vshrl.u32 %v3459, 7
  %v3461 = vsub.s32 0, %v3460
  %v3462 = vrot.slane %v3443, %v3461
  %v3463 = vlaneseq
  %v3464 = vshrl.u32 %v3463, 7
  %v3465 = vsub.s32 0, %v3464
  %v3466 = vrot.slane %v3451, %v3465
  %v3467 = vlaneseq
  %v3468 = vshrl.u32 %v3467, 7
  %v3469 = vsub.s32 0, %v3468
  %v3470 = vrot.slane %v3453, %v3469
  %v3471 = vlaneseq
  %v3472 = vshrl.u32 %v3471, 7
  %v3473 = vsub.s32 0, %v3472
  %v3474 = vrot.slane %v3436, %v3473
  %v3475 = vlaneseq
  %v3476 = vshrl.u32 %v3475, 7
  %v3477 = vsub.s32 0, %v3476
  %v3478 = vrot.slane %v3450, %v3477
  %v3479 = vlaneseq
  %v3480 = vshrl.u32 %v3479, 7
  %v3481 = vsub.s32 0, %v3480
  %v3482 = vrot.slane %v3452, %v3481
  %v3483 = vlaneseq
  %v3484 = vshrl.u32 %v3483, 7
  %v3485 = vsub.s32 0, %v3484
  %v3486 = vrot.slane %v3454, %v3485
  %v3495 = vadd.f32 %v174, %v3458
  %v3496 = vadd.f32 %v175, %v3462
  %v3497 = vadd.f32 %v176, %v3466
  %v3498 = vadd.f32 %v177, %v3470
  %v3499 = vadd.f32 %v178, %v3474
  %v3500 = vadd.f32 %v179, %v3478
  %v3501 = vadd.f32 %v180, %v3482
  %v3502 = vadd.f32 %v181, %v3486
  %v3503 = vtanh.pop %v3495
  %v3504 = vtanh.pop %v3496
  %v3505 = vtanh.pop %v3497
  %v3506 = vtanh.pop %v3498
  %v3507 = vtanh.pop %v3499
  %v3508 = vtanh.pop %v3500
  %v3509 = vtanh.pop %v3501
  %v3510 = vtanh.pop %v3502
  %v3511 = vmul.f32 %v3503, %v340
  %v3512 = vmul.f32 %v3504, %v340
  %v3513 = vmul.f32 %v3505, %v340
  %v3514 = vmul.f32 %v3506, %v340
  %v3515 = vmul.f32 %v3507, %v340
  %v3516 = vmul.f32 %v3508, %v340
  %v3517 = vmul.f32 %v3509, %v340
  %v3518 = vmul.f32 %v3510, %v340
  %v3519 = vsel %vm89, %v3511, 0.0
  %3520 = vadd.xlane.f32.xlu0 %v3519
  %v3521 = vpop.xlane.xlu0 %3520
  %v3522 = vsel %vm89, %v3512, 0.0
  %3523 = vadd.xlane.f32.xlu0 %v3522
  %v3524 = vpop.xlane.xlu0 %3523
  %v3525 = vsel %vm89, %v3513, 0.0
  %3526 = vadd.xlane.f32.xlu0 %v3525
  %v3527 = vpop.xlane.xlu0 %3526
  %v3528 = vsel %vm89, %v3514, 0.0
  %3529 = vadd.xlane.f32.xlu0 %v3528
  %v3530 = vpop.xlane.xlu0 %3529
  %v3531 = vsel %vm89, %v3515, 0.0
  %3532 = vadd.xlane.f32.xlu0 %v3531
  %v3533 = vpop.xlane.xlu0 %3532
  %v3534 = vsel %vm89, %v3516, 0.0
  %3535 = vadd.xlane.f32.xlu0 %v3534
  %v3536 = vpop.xlane.xlu0 %3535
  %v3537 = vsel %vm89, %v3517, 0.0
  %3538 = vadd.xlane.f32.xlu0 %v3537
  %v3539 = vpop.xlane.xlu0 %3538
  %v3540 = vsel %vm89, %v3518, 0.0
  %3541 = vadd.xlane.f32.xlu0 %v3540
  %v3542 = vpop.xlane.xlu0 %3541
  %v3551 = vlaneseq
  %v3552 = vshrl.u32 %v3551, 7
  %v3553 = vsub.s32 %v558, %v3552
  %v3554 = vrot.slane %v3521, %v3553
  %v3555 = vlaneseq
  %v3556 = vshrl.u32 %v3555, 7
  %v3557 = vsub.s32 %v558, %v3556
  %v3558 = vrot.slane %v3524, %v3557
  %v3559 = vlaneseq
  %v3560 = vshrl.u32 %v3559, 7
  %v3561 = vsub.s32 %v558, %v3560
  %v3562 = vrot.slane %v3527, %v3561
  %v3563 = vlaneseq
  %v3564 = vshrl.u32 %v3563, 7
  %v3565 = vsub.s32 %v558, %v3564
  %v3566 = vrot.slane %v3530, %v3565
  %v3567 = vlaneseq
  %v3568 = vshrl.u32 %v3567, 7
  %v3569 = vsub.s32 %v558, %v3568
  %v3570 = vrot.slane %v3533, %v3569
  %v3571 = vlaneseq
  %v3572 = vshrl.u32 %v3571, 7
  %v3573 = vsub.s32 %v558, %v3572
  %v3574 = vrot.slane %v3536, %v3573
  %v3575 = vlaneseq
  %v3576 = vshrl.u32 %v3575, 7
  %v3577 = vsub.s32 %v558, %v3576
  %v3578 = vrot.slane %v3539, %v3577
  %v3579 = vlaneseq
  %v3580 = vshrl.u32 %v3579, 7
  %v3581 = vsub.s32 %v558, %v3580
  %v3582 = vrot.slane %v3542, %v3581
  %v3583 = vsel %vm591, %v3558, %v3554
  %v3584 = vsel %vm593, %v3562, %v3583
  %v3585 = vsel %vm595, %v3566, %v3584
  %v3586 = vsel %vm597, %v3570, %v3585
  %v3587 = vsel %vm599, %v3574, %v3586
  %v3588 = vsel %vm601, %v3578, %v3587
  %v3589 = vsel %vm603, %v3582, %v3588
  %v3591 = vsel %vm606, %v3589, -inf
  %3592 = vmax.xlane.f32.xlu0 %v3591
  %v3593 = vpop.xlane.xlu0 %3592
  %v3595 = vlaneseq
  %v3596 = vshrl.u32 %v3595, 7
  %v3597 = vsub.s32 0, %v3596
  %v3598 = vrot.slane %v3593, %v3597
  %v3599 = vlaneseq
  %v3600 = vshrl.u32 %v3599, 7
  %v3601 = vsub.s32 1, %v3600
  %v3602 = vrot.slane %v3593, %v3601
  %v3603 = vlaneseq
  %v3604 = vshrl.u32 %v3603, 7
  %v3605 = vsub.s32 2, %v3604
  %v3606 = vrot.slane %v3593, %v3605
  %v3607 = vlaneseq
  %v3608 = vshrl.u32 %v3607, 7
  %v3609 = vsub.s32 3, %v3608
  %v3610 = vrot.slane %v3593, %v3609
  %v3611 = vlaneseq
  %v3612 = vshrl.u32 %v3611, 7
  %v3613 = vsub.s32 4, %v3612
  %v3614 = vrot.slane %v3593, %v3613
  %v3615 = vlaneseq
  %v3616 = vshrl.u32 %v3615, 7
  %v3617 = vsub.s32 5, %v3616
  %v3618 = vrot.slane %v3593, %v3617
  %v3619 = vlaneseq
  %v3620 = vshrl.u32 %v3619, 7
  %v3621 = vsub.s32 6, %v3620
  %v3622 = vrot.slane %v3593, %v3621
  %v3623 = vlaneseq
  %v3624 = vshrl.u32 %v3623, 7
  %v3625 = vsub.s32 7, %v3624
  %v3626 = vrot.slane %v3593, %v3625
  %v3635 = vsub.f32 %v3521, %v3598
  %v3636 = vsub.f32 %v3524, %v3602
  %v3637 = vsub.f32 %v3527, %v3606
  %v3638 = vsub.f32 %v3530, %v3610
  %v3639 = vsub.f32 %v3533, %v3614
  %v3640 = vsub.f32 %v3536, %v3618
  %v3641 = vsub.f32 %v3539, %v3622
  %v3642 = vsub.f32 %v3542, %v3626
  %v3643 = vmul.f32 %v3635, 1.442695
  %v3644 = vpow.pop %v3643
  %v3645 = vmul.f32 %v3636, 1.442695
  %v3646 = vpow.pop %v3645
  %v3647 = vmul.f32 %v3637, 1.442695
  %v3648 = vpow.pop %v3647
  %v3649 = vmul.f32 %v3638, 1.442695
  %v3650 = vpow.pop %v3649
  %v3651 = vmul.f32 %v3639, 1.442695
  %v3652 = vpow.pop %v3651
  %v3653 = vmul.f32 %v3640, 1.442695
  %v3654 = vpow.pop %v3653
  %v3655 = vmul.f32 %v3641, 1.442695
  %v3656 = vpow.pop %v3655
  %v3657 = vmul.f32 %v3642, 1.442695
  %v3658 = vpow.pop %v3657
  %3667 = vset.pattern.permute.xlu0 0
  %3668 = vperm.xlu0 %3667, %v3644
  %v3669 = vpop.permute.xlu0 %3668
  %3670 = vset.pattern.permute.xlu0 0
  %3671 = vperm.xlu0 %3670, %v3646
  %v3672 = vpop.permute.xlu0 %3671
  %3673 = vset.pattern.permute.xlu0 0
  %3674 = vperm.xlu0 %3673, %v3648
  %v3675 = vpop.permute.xlu0 %3674
  %3676 = vset.pattern.permute.xlu0 0
  %3677 = vperm.xlu0 %3676, %v3650
  %v3678 = vpop.permute.xlu0 %3677
  %3679 = vset.pattern.permute.xlu0 0
  %3680 = vperm.xlu0 %3679, %v3652
  %v3681 = vpop.permute.xlu0 %3680
  %3682 = vset.pattern.permute.xlu0 0
  %3683 = vperm.xlu0 %3682, %v3654
  %v3684 = vpop.permute.xlu0 %3683
  %3685 = vset.pattern.permute.xlu0 0
  %3686 = vperm.xlu0 %3685, %v3656
  %v3687 = vpop.permute.xlu0 %3686
  %3688 = vset.pattern.permute.xlu0 0
  %3689 = vperm.xlu0 %3688, %v3658
  %v3690 = vpop.permute.xlu0 %3689
  %v3691 = vlaneseq
  %v3692 = vshrl.u32 %v3691, 7
  %v3693 = vsub.s32 %v558, %v3692
  %v3694 = vrot.slane %v3669, %v3693
  %v3695 = vlaneseq
  %v3696 = vshrl.u32 %v3695, 7
  %v3697 = vsub.s32 %v558, %v3696
  %v3698 = vrot.slane %v3672, %v3697
  %v3699 = vlaneseq
  %v3700 = vshrl.u32 %v3699, 7
  %v3701 = vsub.s32 %v558, %v3700
  %v3702 = vrot.slane %v3675, %v3701
  %v3703 = vlaneseq
  %v3704 = vshrl.u32 %v3703, 7
  %v3705 = vsub.s32 %v558, %v3704
  %v3706 = vrot.slane %v3678, %v3705
  %v3707 = vlaneseq
  %v3708 = vshrl.u32 %v3707, 7
  %v3709 = vsub.s32 %v558, %v3708
  %v3710 = vrot.slane %v3681, %v3709
  %v3711 = vlaneseq
  %v3712 = vshrl.u32 %v3711, 7
  %v3713 = vsub.s32 %v558, %v3712
  %v3714 = vrot.slane %v3684, %v3713
  %v3715 = vlaneseq
  %v3716 = vshrl.u32 %v3715, 7
  %v3717 = vsub.s32 %v558, %v3716
  %v3718 = vrot.slane %v3687, %v3717
  %v3719 = vlaneseq
  %v3720 = vshrl.u32 %v3719, 7
  %v3721 = vsub.s32 %v558, %v3720
  %v3722 = vrot.slane %v3690, %v3721
  %v3723 = vsel %vm591, %v3698, %v3694
  %v3724 = vsel %vm593, %v3702, %v3723
  %v3725 = vsel %vm595, %v3706, %v3724
  %v3726 = vsel %vm597, %v3710, %v3725
  %v3727 = vsel %vm599, %v3714, %v3726
  %v3728 = vsel %vm601, %v3718, %v3727
  %v3729 = vsel %vm603, %v3722, %v3728
  %v3731 = vsel %vm606, %v3729, 0.0
  %3732 = vadd.xlane.f32.xlu0 %v3731
  %v3733 = vpop.xlane.xlu0 %3732
  %v3734 = vrcp.pop %v3733
  %v3743 = vmul.f32 %v3669, %v342
  %v3744 = vmul.f32 %v3672, %v343
  %v3745 = vmul.f32 %v3675, %v344
  %v3746 = vmul.f32 %v3678, %v345
  %v3747 = vmul.f32 %v3681, %v346
  %v3748 = vmul.f32 %v3684, %v347
  %v3749 = vmul.f32 %v3687, %v348
  %v3750 = vmul.f32 %v3690, %v349
  %v3751 = vsel %vm89, %v3743, 0.0
  %v3752 = vrot.slane %v3751, 4
  %v3753 = vadd.f32 %v3751, %v3752
  %v3754 = vrot.slane %v3753, 2
  %v3755 = vadd.f32 %v3753, %v3754
  %v3756 = vrot.slane %v3755, 1
  %v3757 = vadd.f32 %v3755, %v3756
  %v3758 = vsel %vm89, %v3744, 0.0
  %v3759 = vrot.slane %v3758, 4
  %v3760 = vadd.f32 %v3758, %v3759
  %v3761 = vrot.slane %v3760, 2
  %v3762 = vadd.f32 %v3760, %v3761
  %v3763 = vrot.slane %v3762, 1
  %v3764 = vadd.f32 %v3762, %v3763
  %v3765 = vsel %vm89, %v3745, 0.0
  %v3766 = vrot.slane %v3765, 4
  %v3767 = vadd.f32 %v3765, %v3766
  %v3768 = vrot.slane %v3767, 2
  %v3769 = vadd.f32 %v3767, %v3768
  %v3770 = vrot.slane %v3769, 1
  %v3771 = vadd.f32 %v3769, %v3770
  %v3772 = vsel %vm89, %v3746, 0.0
  %v3773 = vrot.slane %v3772, 4
  %v3774 = vadd.f32 %v3772, %v3773
  %v3775 = vrot.slane %v3774, 2
  %v3776 = vadd.f32 %v3774, %v3775
  %v3777 = vrot.slane %v3776, 1
  %v3778 = vadd.f32 %v3776, %v3777
  %v3779 = vsel %vm89, %v3747, 0.0
  %v3780 = vrot.slane %v3779, 4
  %v3781 = vadd.f32 %v3779, %v3780
  %v3782 = vrot.slane %v3781, 2
  %v3783 = vadd.f32 %v3781, %v3782
  %v3784 = vrot.slane %v3783, 1
  %v3785 = vadd.f32 %v3783, %v3784
  %v3786 = vsel %vm89, %v3748, 0.0
  %v3787 = vrot.slane %v3786, 4
  %v3788 = vadd.f32 %v3786, %v3787
  %v3789 = vrot.slane %v3788, 2
  %v3790 = vadd.f32 %v3788, %v3789
  %v3791 = vrot.slane %v3790, 1
  %v3792 = vadd.f32 %v3790, %v3791
  %v3793 = vsel %vm89, %v3749, 0.0
  %v3794 = vrot.slane %v3793, 4
  %v3795 = vadd.f32 %v3793, %v3794
  %v3796 = vrot.slane %v3795, 2
  %v3797 = vadd.f32 %v3795, %v3796
  %v3798 = vrot.slane %v3797, 1
  %v3799 = vadd.f32 %v3797, %v3798
  %v3800 = vsel %vm89, %v3750, 0.0
  %v3801 = vrot.slane %v3800, 4
  %v3802 = vadd.f32 %v3800, %v3801
  %v3803 = vrot.slane %v3802, 2
  %v3804 = vadd.f32 %v3802, %v3803
  %v3805 = vrot.slane %v3804, 1
  %v3806 = vadd.f32 %v3804, %v3805
  %v3808 = vrot.slane %v3734, 1
  %v3809 = vrot.slane %v3734, 2
  %v3810 = vrot.slane %v3734, 3
  %v3811 = vrot.slane %v3734, 4
  %v3812 = vrot.slane %v3734, 5
  %v3813 = vrot.slane %v3734, 6
  %v3814 = vrot.slane %v3734, 7
  %v3823 = vmul.f32 %v3757, %v3734
  %v3824 = vmul.f32 %v3764, %v3808
  %v3825 = vmul.f32 %v3771, %v3809
  %v3826 = vmul.f32 %v3778, %v3810
  %v3827 = vmul.f32 %v3785, %v3811
  %v3828 = vmul.f32 %v3792, %v3812
  %v3829 = vmul.f32 %v3799, %v3813
  %v3830 = vmul.f32 %v3806, %v3814
  %s3831 = scalar_lea.vmem [#allocation3], 40
  %v3832 = vld [vmem:[%s3831] sm:$0xff]
  %v3833 = vpack.c.bf16 %v3823, %v3823
  %v3834 = vpack.c.bf16 %v3824, %v3824
  %v3835 = vpack.c.bf16 %v3825, %v3825
  %v3836 = vpack.c.bf16 %v3826, %v3826
  %v3837 = vpack.c.bf16 %v3827, %v3827
  %v3838 = vpack.c.bf16 %v3828, %v3828
  %v3839 = vpack.c.bf16 %v3829, %v3829
  %v3840 = vpack.c.bf16 %v3830, %v3830
  %v3849 = vunpack.c.l.b16 %v3833
  %v3850 = vunpack.c.l.b16 %v3834
  %v3851 = vunpack.c.l.b16 %v3835
  %v3852 = vunpack.c.l.b16 %v3836
  %v3853 = vunpack.c.l.b16 %v3837
  %v3854 = vunpack.c.l.b16 %v3838
  %v3855 = vunpack.c.l.b16 %v3839
  %v3856 = vunpack.c.l.b16 %v3840
  %v3857 = vrot.slane %v3850, 7
  %v3858 = vsel %vm591, %v3857, %v3849
  %v3859 = vrot.slane %v3851, 6
  %v3860 = vsel %vm593, %v3859, %v3858
  %v3861 = vrot.slane %v3852, 5
  %v3862 = vsel %vm595, %v3861, %v3860
  %v3863 = vrot.slane %v3853, 4
  %v3864 = vsel %vm597, %v3863, %v3862
  %v3865 = vrot.slane %v3854, 3
  %v3866 = vsel %vm599, %v3865, %v3864
  %v3867 = vrot.slane %v3855, 2
  %v3868 = vsel %vm601, %v3867, %v3866
  %v3869 = vrot.slane %v3856, 1
  %v3870 = vsel %vm603, %v3869, %v3868
  %v3871 = vpack.c.b16 %v3870, %v3870
  %v3873 = vsel %vm89, %v3871, 0
  %3875 = vmatprep.subr.bf16.mxu0 0
  %3876 = vmatpush1.bf16.msra.mxu0 %v895
  %3877 = vmatprep.subr.bf16.mxu0 0
  %3878 = vmatpush1.bf16.msra.mxu0 %v896
  %3879 = vmatprep.subr.bf16.mxu0 0
  %3880 = vmatpush1.bf16.msra.mxu0 0
  %3881 = vmatprep.subr.bf16.mxu0 0
  %3882 = vmatpush1.bf16.msra.mxu0 0
  %3883 = vmatprep.subr.bf16.mxu0 0
  %3884 = vmatpush1.bf16.msra.mxu0 0
  %3885 = vmatprep.subr.bf16.mxu0 0
  %3886 = vmatpush1.bf16.msra.mxu0 0
  %3887 = vmatprep.subr.bf16.mxu0 0
  %3888 = vmatpush1.bf16.msra.mxu0 0
  %3889 = vmatprep.subr.bf16.mxu0 0
  %3890 = vmatpush1.bf16.msra.mxu0 0
  %3891 = vmatprep.subr.bf16.mxu0 0
  %3892 = vmatpush1.bf16.msra.mxu0 0
  %3893 = vmatprep.subr.bf16.mxu0 0
  %3894 = vmatpush1.bf16.msra.mxu0 0
  %3895 = vmatprep.subr.bf16.mxu0 0
  %3896 = vmatpush1.bf16.msra.mxu0 0
  %3897 = vmatprep.subr.bf16.mxu0 0
  %3898 = vmatpush1.bf16.msra.mxu0 0
  %3899 = vmatprep.subr.bf16.mxu0 0
  %3900 = vmatpush1.bf16.msra.mxu0 0
  %3901 = vmatprep.subr.bf16.mxu0 0
  %3902 = vmatpush1.bf16.msra.mxu0 0
  %3903 = vmatprep.subr.bf16.mxu0 0
  %3904 = vmatpush1.bf16.msra.mxu0 0
  %3905 = vmatprep.subr.bf16.mxu0 0
  %3906 = vmatpush1.bf16.msra.mxu0 0
  %3907 = vmatprep.mubr.bf16.mxu0 0
  %3908 = vmatmul.mubr.bf16.gmra.mrb[0].mxu0 %v3873
  %v3909 = vpop.f32.mrb[0].mxu0
  %v3910 = vadd.f32 0.0, %v3909
  %v3911 = vpop.f32.mrb[0].mxu0
  %v3912 = vpop.f32.mrb[0].mxu0
  %v3913 = vpop.f32.mrb[0].mxu0
  %3914 = vdwg.mxu0
  %v3915 = vadd.f32 %v3832, %v3910
  %3917 = vrot.lane.b32.xlu0 %v3404, 96
  %v3918 = vpop.permute.xlu0 %3917
  %v3920 = vadd.f32 %v3915, %v3918
  %v3921 = vxor.u32 %v3920, 2147483648
  %v3922 = vmul.f32 %v3921, 1.442695
  %v3923 = vpow.pop %v3922
  %v3924 = vadd.f32 %v3923, 1.0
  %v3925 = vrcp.pop %v3924
  %v3926 = vmul.f32 1.0, %v3925
  %3927 = vrot.lane.b32.xlu0 %v3404, 32
  %v3928 = vpop.permute.xlu0 %3927
  %v3930 = vmul.f32 %v3926, %v3928
  %3932 = vrot.lane.b32.xlu0 %v3930, 64
  %v3933 = vpop.permute.xlu0 %3932
  %v3935 = vadd.f32 %v3915, %v3933
  %v3936 = vtanh.pop %v3935
  %v3937 = vsub.f32 1.0, %v3926
  %3939 = vrot.lane.b32.xlu0 %v3936, 96
  %v3940 = vpop.permute.xlu0 %3939
  %v3942 = vmul.f32 %v3937, %v3940
  %v3943 = vmul.f32 %v3926, %v3350
  %v3944 = vadd.f32 %v3942, %v3943
  %3946 = vrot.lane.b32.xlu0 %v3944, 96
  %v3947 = vpop.permute.xlu0 %3946
  %s3949 = scalar_lea.vmem [#allocation2], 40
  %3950 = vst.msk [vmem:[%s3949] sm:$0xff] %vm89, %v3947
  %v3951 = vpack.c.bf16 %v3944, %v3944
  %3953 = vrot.lane.b32.xlu0 %v3951, 96
  %v3954 = vpop.permute.xlu0 %3953
  %v3956 = vsel %vm89, %v3954, 0
  %3958 = vmatprep.subr.bf16.mxu0 0
  %3959 = vmatpush1.bf16.msra.mxu0 %v360
  %3960 = vmatprep.subr.bf16.mxu0 0
  %3961 = vmatpush1.bf16.msra.mxu0 %v361
  %3962 = vmatprep.subr.bf16.mxu0 0
  %3963 = vmatpush1.bf16.msra.mxu0 0
  %3964 = vmatprep.subr.bf16.mxu0 0
  %3965 = vmatpush1.bf16.msra.mxu0 0
  %3966 = vmatprep.subr.bf16.mxu0 0
  %3967 = vmatpush1.bf16.msra.mxu0 0
  %3968 = vmatprep.subr.bf16.mxu0 0
  %3969 = vmatpush1.bf16.msra.mxu0 0
  %3970 = vmatprep.subr.bf16.mxu0 0
  %3971 = vmatpush1.bf16.msra.mxu0 0
  %3972 = vmatprep.subr.bf16.mxu0 0
  %3973 = vmatpush1.bf16.msra.mxu0 0
  %3974 = vmatprep.subr.bf16.mxu0 0
  %3975 = vmatpush1.bf16.msra.mxu0 0
  %3976 = vmatprep.subr.bf16.mxu0 0
  %3977 = vmatpush1.bf16.msra.mxu0 0
  %3978 = vmatprep.subr.bf16.mxu0 0
  %3979 = vmatpush1.bf16.msra.mxu0 0
  %3980 = vmatprep.subr.bf16.mxu0 0
  %3981 = vmatpush1.bf16.msra.mxu0 0
  %3982 = vmatprep.subr.bf16.mxu0 0
  %3983 = vmatpush1.bf16.msra.mxu0 0
  %3984 = vmatprep.subr.bf16.mxu0 0
  %3985 = vmatpush1.bf16.msra.mxu0 0
  %3986 = vmatprep.subr.bf16.mxu0 0
  %3987 = vmatpush1.bf16.msra.mxu0 0
  %3988 = vmatprep.subr.bf16.mxu0 0
  %3989 = vmatpush1.bf16.msra.mxu0 0
  %3990 = vmatprep.mubr.bf16.mxu0 0
  %3991 = vmatmul.mubr.bf16.gmra.mrb[0].mxu0 %v3956
  %v3992 = vpop.f32.mrb[0].mxu0
  %v3993 = vadd.f32 0.0, %v3992
  %v3994 = vpop.f32.mrb[0].mxu0
  %v3995 = vpop.f32.mrb[0].mxu0
  %v3996 = vpop.f32.mrb[0].mxu0
  %3997 = vdwg.mxu0
  %v3998 = vadd.f32 %v3993, %v408
  %v4000 = vcombine.high %v3993, %v3993
  %v4002 = vunpack.c.l.s4 1966171168
  %v4003 = vunpack.c.0.s8 %v4002
  %v4004 = vlaneseq
  %v4005 = vshrl.u32 %v4004, 7
  %v4006 = vsub.s32 %v4003, %v4005
  %v4007 = vrot.slane %v3993, %v4006
  %v4009 = vunpack.c.l.s4 1966171168
  %v4010 = vunpack.c.0.s8 %v4009
  %v4011 = vlaneseq
  %v4012 = vshrl.u32 %v4011, 7
  %v4013 = vsub.s32 %v4010, %v4012
  %v4014 = vrot.slane %v4000, %v4013
  %v4015 = vcombine.high %v4007, %v4007
  %v4016 = vcombine.high %v4014, %v4014
  %v4018 = vunpack.c.l.s4 1966171168
  %v4019 = vunpack.c.0.s8 %v4018
  %v4020 = vlaneseq
  %v4021 = vshrl.u32 %v4020, 7
  %v4022 = vsub.s32 %v4019, %v4021
  %v4023 = vrot.slane %v4007, %v4022
  %v4025 = vunpack.c.l.s4 1966171168
  %v4026 = vunpack.c.0.s8 %v4025
  %v4027 = vlaneseq
  %v4028 = vshrl.u32 %v4027, 7
  %v4029 = vsub.s32 %v4026, %v4028
  %v4030 = vrot.slane %v4014, %v4029
  %v4032 = vunpack.c.l.s4 1966171168
  %v4033 = vunpack.c.0.s8 %v4032
  %v4034 = vlaneseq
  %v4035 = vshrl.u32 %v4034, 7
  %v4036 = vsub.s32 %v4033, %v4035
  %v4037 = vrot.slane %v4015, %v4036
  %v4039 = vunpack.c.l.s4 1966171168
  %v4040 = vunpack.c.0.s8 %v4039
  %v4041 = vlaneseq
  %v4042 = vshrl.u32 %v4041, 7
  %v4043 = vsub.s32 %v4040, %v4042
  %v4044 = vrot.slane %v4016, %v4043
  %v4045 = vcombine.high %v4023, %v4023
  %v4046 = vcombine.high %v4030, %v4030
  %v4047 = vcombine.high %v4037, %v4037
  %v4048 = vcombine.high %v4044, %v4044
  %v4049 = vlaneseq
  %v4050 = vshrl.u32 %v4049, 7
  %v4051 = vsub.s32 0, %v4050
  %v4052 = vrot.slane %v4023, %v4051
  %v4053 = vlaneseq
  %v4054 = vshrl.u32 %v4053, 7
  %v4055 = vsub.s32 0, %v4054
  %v4056 = vrot.slane %v4037, %v4055
  %v4057 = vlaneseq
  %v4058 = vshrl.u32 %v4057, 7
  %v4059 = vsub.s32 0, %v4058
  %v4060 = vrot.slane %v4045, %v4059
  %v4061 = vlaneseq
  %v4062 = vshrl.u32 %v4061, 7
  %v4063 = vsub.s32 0, %v4062
  %v4064 = vrot.slane %v4047, %v4063
  %v4065 = vlaneseq
  %v4066 = vshrl.u32 %v4065, 7
  %v4067 = vsub.s32 0, %v4066
  %v4068 = vrot.slane %v4030, %v4067
  %v4069 = vlaneseq
  %v4070 = vshrl.u32 %v4069, 7
  %v4071 = vsub.s32 0, %v4070
  %v4072 = vrot.slane %v4044, %v4071
  %v4073 = vlaneseq
  %v4074 = vshrl.u32 %v4073, 7
  %v4075 = vsub.s32 0, %v4074
  %v4076 = vrot.slane %v4046, %v4075
  %v4077 = vlaneseq
  %v4078 = vshrl.u32 %v4077, 7
  %v4079 = vsub.s32 0, %v4078
  %v4080 = vrot.slane %v4048, %v4079
  %v4089 = vadd.f32 %v174, %v4052
  %v4090 = vadd.f32 %v175, %v4056
  %v4091 = vadd.f32 %v176, %v4060
  %v4092 = vadd.f32 %v177, %v4064
  %v4093 = vadd.f32 %v178, %v4068
  %v4094 = vadd.f32 %v179, %v4072
  %v4095 = vadd.f32 %v180, %v4076
  %v4096 = vadd.f32 %v181, %v4080
  %v4097 = vtanh.pop %v4089
  %v4098 = vtanh.pop %v4090
  %v4099 = vtanh.pop %v4091
  %v4100 = vtanh.pop %v4092
  %v4101 = vtanh.pop %v4093
  %v4102 = vtanh.pop %v4094
  %v4103 = vtanh.pop %v4095
  %v4104 = vtanh.pop %v4096
  %v4105 = vmul.f32 %v4097, %v340
  %v4106 = vmul.f32 %v4098, %v340
  %v4107 = vmul.f32 %v4099, %v340
  %v4108 = vmul.f32 %v4100, %v340
  %v4109 = vmul.f32 %v4101, %v340
  %v4110 = vmul.f32 %v4102, %v340
  %v4111 = vmul.f32 %v4103, %v340
  %v4112 = vmul.f32 %v4104, %v340
  %v4113 = vsel %vm89, %v4105, 0.0
  %4114 = vadd.xlane.f32.xlu0 %v4113
  %v4115 = vpop.xlane.xlu0 %4114
  %v4116 = vsel %vm89, %v4106, 0.0
  %4117 = vadd.xlane.f32.xlu0 %v4116
  %v4118 = vpop.xlane.xlu0 %4117
  %v4119 = vsel %vm89, %v4107, 0.0
  %4120 = vadd.xlane.f32.xlu0 %v4119
  %v4121 = vpop.xlane.xlu0 %4120
  %v4122 = vsel %vm89, %v4108, 0.0
  %4123 = vadd.xlane.f32.xlu0 %v4122
  %v4124 = vpop.xlane.xlu0 %4123
  %v4125 = vsel %vm89, %v4109, 0.0
  %4126 = vadd.xlane.f32.xlu0 %v4125
  %v4127 = vpop.xlane.xlu0 %4126
  %v4128 = vsel %vm89, %v4110, 0.0
  %4129 = vadd.xlane.f32.xlu0 %v4128
  %v4130 = vpop.xlane.xlu0 %4129
  %v4131 = vsel %vm89, %v4111, 0.0
  %4132 = vadd.xlane.f32.xlu0 %v4131
  %v4133 = vpop.xlane.xlu0 %4132
  %v4134 = vsel %vm89, %v4112, 0.0
  %4135 = vadd.xlane.f32.xlu0 %v4134
  %v4136 = vpop.xlane.xlu0 %4135
  %v4145 = vlaneseq
  %v4146 = vshrl.u32 %v4145, 7
  %v4147 = vsub.s32 %v558, %v4146
  %v4148 = vrot.slane %v4115, %v4147
  %v4149 = vlaneseq
  %v4150 = vshrl.u32 %v4149, 7
  %v4151 = vsub.s32 %v558, %v4150
  %v4152 = vrot.slane %v4118, %v4151
  %v4153 = vlaneseq
  %v4154 = vshrl.u32 %v4153, 7
  %v4155 = vsub.s32 %v558, %v4154
  %v4156 = vrot.slane %v4121, %v4155
  %v4157 = vlaneseq
  %v4158 = vshrl.u32 %v4157, 7
  %v4159 = vsub.s32 %v558, %v4158
  %v4160 = vrot.slane %v4124, %v4159
  %v4161 = vlaneseq
  %v4162 = vshrl.u32 %v4161, 7
  %v4163 = vsub.s32 %v558, %v4162
  %v4164 = vrot.slane %v4127, %v4163
  %v4165 = vlaneseq
  %v4166 = vshrl.u32 %v4165, 7
  %v4167 = vsub.s32 %v558, %v4166
  %v4168 = vrot.slane %v4130, %v4167
  %v4169 = vlaneseq
  %v4170 = vshrl.u32 %v4169, 7
  %v4171 = vsub.s32 %v558, %v4170
  %v4172 = vrot.slane %v4133, %v4171
  %v4173 = vlaneseq
  %v4174 = vshrl.u32 %v4173, 7
  %v4175 = vsub.s32 %v558, %v4174
  %v4176 = vrot.slane %v4136, %v4175
  %v4177 = vsel %vm591, %v4152, %v4148
  %v4178 = vsel %vm593, %v4156, %v4177
  %v4179 = vsel %vm595, %v4160, %v4178
  %v4180 = vsel %vm597, %v4164, %v4179
  %v4181 = vsel %vm599, %v4168, %v4180
  %v4182 = vsel %vm601, %v4172, %v4181
  %v4183 = vsel %vm603, %v4176, %v4182
  %v4185 = vsel %vm606, %v4183, -inf
  %4186 = vmax.xlane.f32.xlu0 %v4185
  %v4187 = vpop.xlane.xlu0 %4186
  %v4189 = vlaneseq
  %v4190 = vshrl.u32 %v4189, 7
  %v4191 = vsub.s32 0, %v4190
  %v4192 = vrot.slane %v4187, %v4191
  %v4193 = vlaneseq
  %v4194 = vshrl.u32 %v4193, 7
  %v4195 = vsub.s32 1, %v4194
  %v4196 = vrot.slane %v4187, %v4195
  %v4197 = vlaneseq
  %v4198 = vshrl.u32 %v4197, 7
  %v4199 = vsub.s32 2, %v4198
  %v4200 = vrot.slane %v4187, %v4199
  %v4201 = vlaneseq
  %v4202 = vshrl.u32 %v4201, 7
  %v4203 = vsub.s32 3, %v4202
  %v4204 = vrot.slane %v4187, %v4203
  %v4205 = vlaneseq
  %v4206 = vshrl.u32 %v4205, 7
  %v4207 = vsub.s32 4, %v4206
  %v4208 = vrot.slane %v4187, %v4207
  %v4209 = vlaneseq
  %v4210 = vshrl.u32 %v4209, 7
  %v4211 = vsub.s32 5, %v4210
  %v4212 = vrot.slane %v4187, %v4211
  %v4213 = vlaneseq
  %v4214 = vshrl.u32 %v4213, 7
  %v4215 = vsub.s32 6, %v4214
  %v4216 = vrot.slane %v4187, %v4215
  %v4217 = vlaneseq
  %v4218 = vshrl.u32 %v4217, 7
  %v4219 = vsub.s32 7, %v4218
  %v4220 = vrot.slane %v4187, %v4219
  %v4229 = vsub.f32 %v4115, %v4192
  %v4230 = vsub.f32 %v4118, %v4196
  %v4231 = vsub.f32 %v4121, %v4200
  %v4232 = vsub.f32 %v4124, %v4204
  %v4233 = vsub.f32 %v4127, %v4208
  %v4234 = vsub.f32 %v4130, %v4212
  %v4235 = vsub.f32 %v4133, %v4216
  %v4236 = vsub.f32 %v4136, %v4220
  %v4237 = vmul.f32 %v4229, 1.442695
  %v4238 = vpow.pop %v4237
  %v4239 = vmul.f32 %v4230, 1.442695
  %v4240 = vpow.pop %v4239
  %v4241 = vmul.f32 %v4231, 1.442695
  %v4242 = vpow.pop %v4241
  %v4243 = vmul.f32 %v4232, 1.442695
  %v4244 = vpow.pop %v4243
  %v4245 = vmul.f32 %v4233, 1.442695
  %v4246 = vpow.pop %v4245
  %v4247 = vmul.f32 %v4234, 1.442695
  %v4248 = vpow.pop %v4247
  %v4249 = vmul.f32 %v4235, 1.442695
  %v4250 = vpow.pop %v4249
  %v4251 = vmul.f32 %v4236, 1.442695
  %v4252 = vpow.pop %v4251
  %4261 = vset.pattern.permute.xlu0 0
  %4262 = vperm.xlu0 %4261, %v4238
  %v4263 = vpop.permute.xlu0 %4262
  %4264 = vset.pattern.permute.xlu0 0
  %4265 = vperm.xlu0 %4264, %v4240
  %v4266 = vpop.permute.xlu0 %4265
  %4267 = vset.pattern.permute.xlu0 0
  %4268 = vperm.xlu0 %4267, %v4242
  %v4269 = vpop.permute.xlu0 %4268
  %4270 = vset.pattern.permute.xlu0 0
  %4271 = vperm.xlu0 %4270, %v4244
  %v4272 = vpop.permute.xlu0 %4271
  %4273 = vset.pattern.permute.xlu0 0
  %4274 = vperm.xlu0 %4273, %v4246
  %v4275 = vpop.permute.xlu0 %4274
  %4276 = vset.pattern.permute.xlu0 0
  %4277 = vperm.xlu0 %4276, %v4248
  %v4278 = vpop.permute.xlu0 %4277
  %4279 = vset.pattern.permute.xlu0 0
  %4280 = vperm.xlu0 %4279, %v4250
  %v4281 = vpop.permute.xlu0 %4280
  %4282 = vset.pattern.permute.xlu0 0
  %4283 = vperm.xlu0 %4282, %v4252
  %v4284 = vpop.permute.xlu0 %4283
  %v4285 = vlaneseq
  %v4286 = vshrl.u32 %v4285, 7
  %v4287 = vsub.s32 %v558, %v4286
  %v4288 = vrot.slane %v4263, %v4287
  %v4289 = vlaneseq
  %v4290 = vshrl.u32 %v4289, 7
  %v4291 = vsub.s32 %v558, %v4290
  %v4292 = vrot.slane %v4266, %v4291
  %v4293 = vlaneseq
  %v4294 = vshrl.u32 %v4293, 7
  %v4295 = vsub.s32 %v558, %v4294
  %v4296 = vrot.slane %v4269, %v4295
  %v4297 = vlaneseq
  %v4298 = vshrl.u32 %v4297, 7
  %v4299 = vsub.s32 %v558, %v4298
  %v4300 = vrot.slane %v4272, %v4299
  %v4301 = vlaneseq
  %v4302 = vshrl.u32 %v4301, 7
  %v4303 = vsub.s32 %v558, %v4302
  %v4304 = vrot.slane %v4275, %v4303
  %v4305 = vlaneseq
  %v4306 = vshrl.u32 %v4305, 7
  %v4307 = vsub.s32 %v558, %v4306
  %v4308 = vrot.slane %v4278, %v4307
  %v4309 = vlaneseq
  %v4310 = vshrl.u32 %v4309, 7
  %v4311 = vsub.s32 %v558, %v4310
  %v4312 = vrot.slane %v4281, %v4311
  %v4313 = vlaneseq
  %v4314 = vshrl.u32 %v4313, 7
  %v4315 = vsub.s32 %v558, %v4314
  %v4316 = vrot.slane %v4284, %v4315
  %v4317 = vsel %vm591, %v4292, %v4288
  %v4318 = vsel %vm593, %v4296, %v4317
  %v4319 = vsel %vm595, %v4300, %v4318
  %v4320 = vsel %vm597, %v4304, %v4319
  %v4321 = vsel %vm599, %v4308, %v4320
  %v4322 = vsel %vm601, %v4312, %v4321
  %v4323 = vsel %vm603, %v4316, %v4322
  %v4325 = vsel %vm606, %v4323, 0.0
  %4326 = vadd.xlane.f32.xlu0 %v4325
  %v4327 = vpop.xlane.xlu0 %4326
  %v4328 = vrcp.pop %v4327
  %v4337 = vmul.f32 %v4263, %v342
  %v4338 = vmul.f32 %v4266, %v343
  %v4339 = vmul.f32 %v4269, %v344
  %v4340 = vmul.f32 %v4272, %v345
  %v4341 = vmul.f32 %v4275, %v346
  %v4342 = vmul.f32 %v4278, %v347
  %v4343 = vmul.f32 %v4281, %v348
  %v4344 = vmul.f32 %v4284, %v349
  %v4345 = vsel %vm89, %v4337, 0.0
  %v4346 = vrot.slane %v4345, 4
  %v4347 = vadd.f32 %v4345, %v4346
  %v4348 = vrot.slane %v4347, 2
  %v4349 = vadd.f32 %v4347, %v4348
  %v4350 = vrot.slane %v4349, 1
  %v4351 = vadd.f32 %v4349, %v4350
  %v4352 = vsel %vm89, %v4338, 0.0
  %v4353 = vrot.slane %v4352, 4
  %v4354 = vadd.f32 %v4352, %v4353
  %v4355 = vrot.slane %v4354, 2
  %v4356 = vadd.f32 %v4354, %v4355
  %v4357 = vrot.slane %v4356, 1
  %v4358 = vadd.f32 %v4356, %v4357
  %v4359 = vsel %vm89, %v4339, 0.0
  %v4360 = vrot.slane %v4359, 4
  %v4361 = vadd.f32 %v4359, %v4360
  %v4362 = vrot.slane %v4361, 2
  %v4363 = vadd.f32 %v4361, %v4362
  %v4364 = vrot.slane %v4363, 1
  %v4365 = vadd.f32 %v4363, %v4364
  %v4366 = vsel %vm89, %v4340, 0.0
  %v4367 = vrot.slane %v4366, 4
  %v4368 = vadd.f32 %v4366, %v4367
  %v4369 = vrot.slane %v4368, 2
  %v4370 = vadd.f32 %v4368, %v4369
  %v4371 = vrot.slane %v4370, 1
  %v4372 = vadd.f32 %v4370, %v4371
  %v4373 = vsel %vm89, %v4341, 0.0
  %v4374 = vrot.slane %v4373, 4
  %v4375 = vadd.f32 %v4373, %v4374
  %v4376 = vrot.slane %v4375, 2
  %v4377 = vadd.f32 %v4375, %v4376
  %v4378 = vrot.slane %v4377, 1
  %v4379 = vadd.f32 %v4377, %v4378
  %v4380 = vsel %vm89, %v4342, 0.0
  %v4381 = vrot.slane %v4380, 4
  %v4382 = vadd.f32 %v4380, %v4381
  %v4383 = vrot.slane %v4382, 2
  %v4384 = vadd.f32 %v4382, %v4383
  %v4385 = vrot.slane %v4384, 1
  %v4386 = vadd.f32 %v4384, %v4385
  %v4387 = vsel %vm89, %v4343, 0.0
  %v4388 = vrot.slane %v4387, 4
  %v4389 = vadd.f32 %v4387, %v4388
  %v4390 = vrot.slane %v4389, 2
  %v4391 = vadd.f32 %v4389, %v4390
  %v4392 = vrot.slane %v4391, 1
  %v4393 = vadd.f32 %v4391, %v4392
  %v4394 = vsel %vm89, %v4344, 0.0
  %v4395 = vrot.slane %v4394, 4
  %v4396 = vadd.f32 %v4394, %v4395
  %v4397 = vrot.slane %v4396, 2
  %v4398 = vadd.f32 %v4396, %v4397
  %v4399 = vrot.slane %v4398, 1
  %v4400 = vadd.f32 %v4398, %v4399
  %v4402 = vrot.slane %v4328, 1
  %v4403 = vrot.slane %v4328, 2
  %v4404 = vrot.slane %v4328, 3
  %v4405 = vrot.slane %v4328, 4
  %v4406 = vrot.slane %v4328, 5
  %v4407 = vrot.slane %v4328, 6
  %v4408 = vrot.slane %v4328, 7
  %v4417 = vmul.f32 %v4351, %v4328
  %v4418 = vmul.f32 %v4358, %v4402
  %v4419 = vmul.f32 %v4365, %v4403
  %v4420 = vmul.f32 %v4372, %v4404
  %v4421 = vmul.f32 %v4379, %v4405
  %v4422 = vmul.f32 %v4386, %v4406
  %v4423 = vmul.f32 %v4393, %v4407
  %v4424 = vmul.f32 %v4400, %v4408
  %s4425 = scalar_lea.vmem [#allocation3], 48
  %v4426 = vld [vmem:[%s4425] sm:$0xff]
  %v4427 = vpack.c.bf16 %v4417, %v4417
  %v4428 = vpack.c.bf16 %v4418, %v4418
  %v4429 = vpack.c.bf16 %v4419, %v4419
  %v4430 = vpack.c.bf16 %v4420, %v4420
  %v4431 = vpack.c.bf16 %v4421, %v4421
  %v4432 = vpack.c.bf16 %v4422, %v4422
  %v4433 = vpack.c.bf16 %v4423, %v4423
  %v4434 = vpack.c.bf16 %v4424, %v4424
  %v4443 = vunpack.c.l.b16 %v4427
  %v4444 = vunpack.c.l.b16 %v4428
  %v4445 = vunpack.c.l.b16 %v4429
  %v4446 = vunpack.c.l.b16 %v4430
  %v4447 = vunpack.c.l.b16 %v4431
  %v4448 = vunpack.c.l.b16 %v4432
  %v4449 = vunpack.c.l.b16 %v4433
  %v4450 = vunpack.c.l.b16 %v4434
  %v4451 = vrot.slane %v4444, 7
  %v4452 = vsel %vm591, %v4451, %v4443
  %v4453 = vrot.slane %v4445, 6
  %v4454 = vsel %vm593, %v4453, %v4452
  %v4455 = vrot.slane %v4446, 5
  %v4456 = vsel %vm595, %v4455, %v4454
  %v4457 = vrot.slane %v4447, 4
  %v4458 = vsel %vm597, %v4457, %v4456
  %v4459 = vrot.slane %v4448, 3
  %v4460 = vsel %vm599, %v4459, %v4458
  %v4461 = vrot.slane %v4449, 2
  %v4462 = vsel %vm601, %v4461, %v4460
  %v4463 = vrot.slane %v4450, 1
  %v4464 = vsel %vm603, %v4463, %v4462
  %v4465 = vpack.c.b16 %v4464, %v4464
  %v4467 = vsel %vm89, %v4465, 0
  %4469 = vmatprep.subr.bf16.mxu0 0
  %4470 = vmatpush1.bf16.msra.mxu0 %v895
  %4471 = vmatprep.subr.bf16.mxu0 0
  %4472 = vmatpush1.bf16.msra.mxu0 %v896
  %4473 = vmatprep.subr.bf16.mxu0 0
  %4474 = vmatpush1.bf16.msra.mxu0 0
  %4475 = vmatprep.subr.bf16.mxu0 0
  %4476 = vmatpush1.bf16.msra.mxu0 0
  %4477 = vmatprep.subr.bf16.mxu0 0
  %4478 = vmatpush1.bf16.msra.mxu0 0
  %4479 = vmatprep.subr.bf16.mxu0 0
  %4480 = vmatpush1.bf16.msra.mxu0 0
  %4481 = vmatprep.subr.bf16.mxu0 0
  %4482 = vmatpush1.bf16.msra.mxu0 0
  %4483 = vmatprep.subr.bf16.mxu0 0
  %4484 = vmatpush1.bf16.msra.mxu0 0
  %4485 = vmatprep.subr.bf16.mxu0 0
  %4486 = vmatpush1.bf16.msra.mxu0 0
  %4487 = vmatprep.subr.bf16.mxu0 0
  %4488 = vmatpush1.bf16.msra.mxu0 0
  %4489 = vmatprep.subr.bf16.mxu0 0
  %4490 = vmatpush1.bf16.msra.mxu0 0
  %4491 = vmatprep.subr.bf16.mxu0 0
  %4492 = vmatpush1.bf16.msra.mxu0 0
  %4493 = vmatprep.subr.bf16.mxu0 0
  %4494 = vmatpush1.bf16.msra.mxu0 0
  %4495 = vmatprep.subr.bf16.mxu0 0
  %4496 = vmatpush1.bf16.msra.mxu0 0
  %4497 = vmatprep.subr.bf16.mxu0 0
  %4498 = vmatpush1.bf16.msra.mxu0 0
  %4499 = vmatprep.subr.bf16.mxu0 0
  %4500 = vmatpush1.bf16.msra.mxu0 0
  %4501 = vmatprep.mubr.bf16.mxu0 0
  %4502 = vmatmul.mubr.bf16.gmra.mrb[0].mxu0 %v4467
  %v4503 = vpop.f32.mrb[0].mxu0
  %v4504 = vadd.f32 0.0, %v4503
  %v4505 = vpop.f32.mrb[0].mxu0
  %v4506 = vpop.f32.mrb[0].mxu0
  %v4507 = vpop.f32.mrb[0].mxu0
  %4508 = vdwg.mxu0
  %v4509 = vadd.f32 %v4426, %v4504
  %4511 = vrot.lane.b32.xlu0 %v3998, 96
  %v4512 = vpop.permute.xlu0 %4511
  %v4514 = vadd.f32 %v4509, %v4512
  %v4515 = vxor.u32 %v4514, 2147483648
  %v4516 = vmul.f32 %v4515, 1.442695
  %v4517 = vpow.pop %v4516
  %v4518 = vadd.f32 %v4517, 1.0
  %v4519 = vrcp.pop %v4518
  %v4520 = vmul.f32 1.0, %v4519
  %4521 = vrot.lane.b32.xlu0 %v3998, 32
  %v4522 = vpop.permute.xlu0 %4521
  %v4524 = vmul.f32 %v4520, %v4522
  %4526 = vrot.lane.b32.xlu0 %v4524, 64
  %v4527 = vpop.permute.xlu0 %4526
  %v4529 = vadd.f32 %v4509, %v4527
  %v4530 = vtanh.pop %v4529
  %v4531 = vsub.f32 1.0, %v4520
  %4533 = vrot.lane.b32.xlu0 %v4530, 96
  %v4534 = vpop.permute.xlu0 %4533
  %v4536 = vmul.f32 %v4531, %v4534
  %v4537 = vmul.f32 %v4520, %v3944
  %v4538 = vadd.f32 %v4536, %v4537
  %4540 = vrot.lane.b32.xlu0 %v4538, 96
  %v4541 = vpop.permute.xlu0 %4540
  %s4543 = scalar_lea.vmem [#allocation2], 48
  %4544 = vst.msk [vmem:[%s4543] sm:$0xff] %vm89, %v4541
  %v4545 = vld [vmem:[#allocation2] sm:$0xff]
  %v4546 = vld [vmem:[#allocation2 + $0x8] sm:$0xff]
  %v4547 = vld [vmem:[#allocation2 + $0x10] sm:$0xff]
  %v4548 = vld [vmem:[#allocation2 + $0x18] sm:$0xff]
  %v4549 = vld [vmem:[#allocation2 + $0x20] sm:$0xff]
  %v4550 = vld [vmem:[#allocation2 + $0x28] sm:$0xff]
  %v4551 = vld [vmem:[#allocation2 + $0x30] sm:$0xff]
  %v4552 = vpack.c.bf16 %v4546, %v4545
  %v4553 = vpack.c.bf16 %v4548, %v4547
  %v4554 = vpack.c.bf16 %v4550, %v4549
  %v4555 = vpack.c.bf16 %v4551, %v4551
  %v4556 = vld [vmem:[%s11] sm:$0xf]
  %v4557 = vld [vmem:[%s11 + $0x4] sm:$0xf]
  %v4558 = vld [vmem:[%s11 + $0x8] sm:$0xf]
  %v4559 = vld [vmem:[%s11 + $0xc] sm:$0xf]
  %v4560 = vld [vmem:[%s12] sm:$0x1]
  %v4562 = vlaneseq
  %v4563 = vshrl.u32 %v4562, 7
  %v4564 = vsub.s32 0, %v4563
  %v4565 = vrot.slane %v4560, %v4564
  %v4571 = vunpack.c.l.b16 %v4556
  %v4572 = vunpack.c.l.b16 %v4557
  %v4573 = vunpack.c.l.b16 %v4558
  %v4574 = vunpack.c.l.b16 %v4559
  %v4575 = vpack.c.b16 %v4572, %v4571
  %v4576 = vpack.c.b16 %v4574, %v4573
  %v4580 = vsel %vm89, %v4552, 0
  %v4583 = vsel %vm89, %v4553, 0
  %v4586 = vsel %vm89, %v4554, 0
  %v4589 = vsel %vm89, %v4555, 0
  %4591 = vmatprep.subr.bf16.mxu0 0
  %4592 = vmatpush1.bf16.msra.mxu0 %v4575
  %4593 = vmatprep.subr.bf16.mxu0 0
  %4594 = vmatpush1.bf16.msra.mxu0 %v4576
  %4595 = vmatprep.subr.bf16.mxu0 0
  %4596 = vmatpush1.bf16.msra.mxu0 0
  %4597 = vmatprep.subr.bf16.mxu0 0
  %4598 = vmatpush1.bf16.msra.mxu0 0
  %4599 = vmatprep.subr.bf16.mxu0 0
  %4600 = vmatpush1.bf16.msra.mxu0 0
  %4601 = vmatprep.subr.bf16.mxu0 0
  %4602 = vmatpush1.bf16.msra.mxu0 0
  %4603 = vmatprep.subr.bf16.mxu0 0
  %4604 = vmatpush1.bf16.msra.mxu0 0
  %4605 = vmatprep.subr.bf16.mxu0 0
  %4606 = vmatpush1.bf16.msra.mxu0 0
  %4607 = vmatprep.subr.bf16.mxu0 0
  %4608 = vmatpush1.bf16.msra.mxu0 0
  %4609 = vmatprep.subr.bf16.mxu0 0
  %4610 = vmatpush1.bf16.msra.mxu0 0
  %4611 = vmatprep.subr.bf16.mxu0 0
  %4612 = vmatpush1.bf16.msra.mxu0 0
  %4613 = vmatprep.subr.bf16.mxu0 0
  %4614 = vmatpush1.bf16.msra.mxu0 0
  %4615 = vmatprep.subr.bf16.mxu0 0
  %4616 = vmatpush1.bf16.msra.mxu0 0
  %4617 = vmatprep.subr.bf16.mxu0 0
  %4618 = vmatpush1.bf16.msra.mxu0 0
  %4619 = vmatprep.subr.bf16.mxu0 0
  %4620 = vmatpush1.bf16.msra.mxu0 0
  %4621 = vmatprep.subr.bf16.mxu0 0
  %4622 = vmatpush1.bf16.msra.mxu0 0
  %4623 = vmatprep.mubr.bf16.mxu0 0
  %4624 = vmatmul.mubr.bf16.gmra.mrb[0].mxu0 %v4580
  %v4625 = vpop.f32.mrb[0].mxu0
  %v4626 = vadd.f32 %v4565, %v4625
  %v4627 = vpop.f32.mrb[0].mxu0
  %v4628 = vpop.f32.mrb[0].mxu0
  %v4629 = vadd.f32 %v4565, %v4628
  %v4630 = vpop.f32.mrb[0].mxu0
  %4631 = vmatprep.mubr.bf16.mxu0 0
  %4632 = vmatmul.mubr.bf16.gmra.mrb[0].mxu0 %v4583
  %v4633 = vpop.f32.mrb[0].mxu0
  %v4634 = vadd.f32 %v4565, %v4633
  %v4635 = vpop.f32.mrb[0].mxu0
  %v4636 = vpop.f32.mrb[0].mxu0
  %v4637 = vadd.f32 %v4565, %v4636
  %v4638 = vpop.f32.mrb[0].mxu0
  %4639 = vmatprep.mubr.bf16.mxu0 0
  %4640 = vmatmul.mubr.bf16.gmra.mrb[0].mxu0 %v4586
  %v4641 = vpop.f32.mrb[0].mxu0
  %v4642 = vadd.f32 %v4565, %v4641
  %v4643 = vpop.f32.mrb[0].mxu0
  %v4644 = vpop.f32.mrb[0].mxu0
  %v4645 = vadd.f32 %v4565, %v4644
  %v4646 = vpop.f32.mrb[0].mxu0
  %4647 = vmatprep.mubr.bf16.mxu0 0
  %4648 = vmatmul.mubr.bf16.gmra.mrb[0].mxu0 %v4589
  %v4649 = vpop.f32.mrb[0].mxu0
  %v4650 = vadd.f32 %v4565, %v4649
  %v4651 = vpop.f32.mrb[0].mxu0
  %v4652 = vpop.f32.mrb[0].mxu0
  %v4653 = vpop.f32.mrb[0].mxu0
  %4654 = vdwg.mxu0
  %4655 = vmax.xlane.f32.xlu0 %v4626
  %v4656 = vpop.xlane.xlu0 %4655
  %4657 = vmax.xlane.f32.xlu0 %v4629
  %v4658 = vpop.xlane.xlu0 %4657
  %4659 = vmax.xlane.f32.xlu0 %v4634
  %v4660 = vpop.xlane.xlu0 %4659
  %4661 = vmax.xlane.f32.xlu0 %v4637
  %v4662 = vpop.xlane.xlu0 %4661
  %4663 = vmax.xlane.f32.xlu0 %v4642
  %v4664 = vpop.xlane.xlu0 %4663
  %4665 = vmax.xlane.f32.xlu0 %v4645
  %v4666 = vpop.xlane.xlu0 %4665
  %4667 = vmax.xlane.f32.xlu0 %v4650
  %v4668 = vpop.xlane.xlu0 %4667
  %v4669 = vsub.f32 %v4626, %v4656
  %v4670 = vsub.f32 %v4629, %v4658
  %v4671 = vsub.f32 %v4634, %v4660
  %v4672 = vsub.f32 %v4637, %v4662
  %v4673 = vsub.f32 %v4642, %v4664
  %v4674 = vsub.f32 %v4645, %v4666
  %v4675 = vsub.f32 %v4650, %v4668
  %v4676 = vmul.f32 %v4669, 1.442695
  %v4677 = vpow.pop %v4676
  %v4678 = vmul.f32 %v4670, 1.442695
  %v4679 = vpow.pop %v4678
  %v4680 = vmul.f32 %v4671, 1.442695
  %v4681 = vpow.pop %v4680
  %v4682 = vmul.f32 %v4672, 1.442695
  %v4683 = vpow.pop %v4682
  %v4684 = vmul.f32 %v4673, 1.442695
  %v4685 = vpow.pop %v4684
  %v4686 = vmul.f32 %v4674, 1.442695
  %v4687 = vpow.pop %v4686
  %v4688 = vmul.f32 %v4675, 1.442695
  %v4689 = vpow.pop %v4688
  %4690 = vadd.xlane.f32.xlu0 %v4677
  %v4691 = vpop.xlane.xlu0 %4690
  %4692 = vadd.xlane.f32.xlu0 %v4679
  %v4693 = vpop.xlane.xlu0 %4692
  %4694 = vadd.xlane.f32.xlu0 %v4681
  %v4695 = vpop.xlane.xlu0 %4694
  %4696 = vadd.xlane.f32.xlu0 %v4683
  %v4697 = vpop.xlane.xlu0 %4696
  %4698 = vadd.xlane.f32.xlu0 %v4685
  %v4699 = vpop.xlane.xlu0 %4698
  %4700 = vadd.xlane.f32.xlu0 %v4687
  %v4701 = vpop.xlane.xlu0 %4700
  %4702 = vadd.xlane.f32.xlu0 %v4689
  %v4703 = vpop.xlane.xlu0 %4702
  %v4704 = vlog2.pop %v4691
  %v4705 = vmul.f32 %v4704, 0.6931472
  %v4706 = vlog2.pop %v4693
  %v4707 = vmul.f32 %v4706, 0.6931472
  %v4708 = vlog2.pop %v4695
  %v4709 = vmul.f32 %v4708, 0.6931472
  %v4710 = vlog2.pop %v4697
  %v4711 = vmul.f32 %v4710, 0.6931472
  %v4712 = vlog2.pop %v4699
  %v4713 = vmul.f32 %v4712, 0.6931472
  %v4714 = vlog2.pop %v4701
  %v4715 = vmul.f32 %v4714, 0.6931472
  %v4716 = vlog2.pop %v4703
  %v4717 = vmul.f32 %v4716, 0.6931472
  %v4718 = vadd.f32 %v4705, %v4656
  %v4719 = vadd.f32 %v4707, %v4658
  %v4720 = vadd.f32 %v4709, %v4660
  %v4721 = vadd.f32 %v4711, %v4662
  %v4722 = vadd.f32 %v4713, %v4664
  %v4723 = vadd.f32 %v4715, %v4666
  %v4724 = vadd.f32 %v4717, %v4668
  %v4725 = vsub.f32 %v4626, %v4718
  %v4726 = vsub.f32 %v4629, %v4719
  %v4727 = vsub.f32 %v4634, %v4720
  %v4728 = vsub.f32 %v4637, %v4721
  %v4729 = vsub.f32 %v4642, %v4722
  %v4730 = vsub.f32 %v4645, %v4723
  %v4731 = vsub.f32 %v4650, %v4724
  %4732 = vst [vmem:[%s13] sm:$0xff] %v4725
  %4733 = vst [vmem:[%s13 + $0x8] sm:$0xff] %v4726
  %4734 = vst [vmem:[%s13 + $0x10] sm:$0xff] %v4727
  %4735 = vst [vmem:[%s13 + $0x18] sm:$0xff] %v4728
  %4736 = vst [vmem:[%s13 + $0x20] sm:$0xff] %v4729
  %4737 = vst [vmem:[%s13 + $0x28] sm:$0xff] %v4730
  %4738 = vst [vmem:[%s13 + $0x30] sm:$0xff] %v4731
  // Predicated region
  $region54: #{decoder_rnn_train_forward.1} parent=0 // pred_check
    _
  $region55: #{decoder_rnn_train_forward.1} parent=0 // pred_check_branch
    %4740 = sbr.rel (0) target = $region57
  $region56: #{decoder_rnn_train_forward.1} parent=0 // pred_region
    _
  $region57: #{decoder_rnn_train_forward.1} parent=0 // pred_fallthru
    _
  // Predicated region
  $region58: #{decoder_rnn_train_forward.1} parent=0 // pred_check
    _
  $region59: #{decoder_rnn_train_forward.1} parent=0 // pred_check_branch
    %4742 = sbr.rel (0) target = $region61
  $region60: #{decoder_rnn_train_forward.1} parent=0 // pred_region
    _
  $region61: #{decoder_rnn_train_forward.1} parent=0 // pred_fallthru
    _

</llo_original>
